<compile_context>
chip_gen: v5e
topology: v5e:2x2
jax: 0.10.0
libtpu: 0.0.40
codegen_flags: <defaults>
</compile_context>

<pallas_src>
import functools

import numpy as np
import jax
import jax.numpy as jnp
from jax.experimental import pallas as pl
from jax.experimental.pallas import tpu as pltpu

# ----------------------------- config (small) --------------------------------
NUM_PATCHES   = 8
PATCH_DIM     = 16
EMBED_DIM     = 32
NUM_HEADS     = 4
NUM_LAYERS    = 2
HIDDEN_DIM    = 64
OBJ_MAX_NUM   = 7
OBJ_FEAT_DIM  = 6          # raw per-object feature dim
DESC_EMBED    = 10         # info_embed.weight_embedding output dim
OBJ_DIM       = OBJ_FEAT_DIM + DESC_EMBED     # obj_dim of linear_obj_encoding
DESC_VOCAB    = 12
SEQ_LEN       = NUM_PATCHES + 1               # cls + patches
TOTAL_SEQ     = SEQ_LEN + OBJ_MAX_NUM
LN_EPS        = 1e-5


# --------------------------- fused Pallas kernel ------------------------------
def _vit_fused_kernel(x_ref, obj_ref, desc_ref, px_ref, po_ref,
                      wenc_ref, wobja_ref, wobjd_ref, wemb_ref, cpos_ref,
                      ln1g_ref, ln1b_ref, wq_ref, wk_ref, wv_ref, wo_ref, bo_ref,
                      ln2g_ref, ln2b_ref, w1_ref, b1_ref, w2_ref, b2_ref,
                      o_ref, *, num_heads, num_layers):
    B, S, E = o_ref.shape
    H = num_heads
    D = E // H
    scale = 1.0 / (float(D) ** 0.5)
    N = NUM_PATCHES
    O = OBJ_MAX_NUM
    BS = B * S

    def layer_norm(v, g, b):
        mu = jnp.mean(v, axis=-1, keepdims=True)
        var = jnp.mean((v - mu) ** 2, axis=-1, keepdims=True)
        return (v - mu) * jax.lax.rsqrt(var + LN_EPS) * g + b

    # ---- input assembly, entirely in registers (no VMEM scratch) ------------
    # patch projection (bias folded into cpos table)
    xe = jnp.dot(x_ref[...], wenc_ref[...],
                 preferred_element_type=jnp.float32)                       # (B*N, E)

    # in-kernel embedding gather: one-hot (B*O, VOCAB) @ weight_embed on the
    # idle MXU replaces the wrapper-side jnp.take + concat (no extra launch,
    # no HBM obj_info materialization).
    dids = desc_ref[...]                                                    # (B*O, 1) i32
    iota = jax.lax.broadcasted_iota(jnp.int32, (B * O, DESC_VOCAB), 1)
    onehot = jnp.where(dids == iota, 1.0, 0.0)                              # (B*O, VOCAB)
    de = jnp.dot(onehot, wemb_ref[...],
                 preferred_element_type=jnp.float32)                        # (B*O, DESC_EMBED)
    # [obj | desc_feat] @ Wobj  ==  obj @ Wobj[:6] + desc_feat @ Wobj[6:]
    oe = (jnp.dot(obj_ref[...], wobja_ref[...], preferred_element_type=jnp.float32)
          + jnp.dot(de, wobjd_ref[...], preferred_element_type=jnp.float32))  # (B*O, E)

    # scatter patch / object rows to their sequence positions with constant 0/1
    # placement matmuls (MXU idle -> free); cls token, linear biases and both
    # positional encodings arrive as the precomputed per-position table cpos.
    h = (jnp.dot(px_ref[...], xe, preferred_element_type=jnp.float32)
         + jnp.dot(po_ref[...], oe, preferred_element_type=jnp.float32))    # (B*S, E)
    h = (h.reshape(B, S, E) + cpos_ref[...]).reshape(BS, E)
    # pe_dropout p=0.0 -> identity

    # ---- transformer encoder stack (statically unrolled over layers) ---------
    # TODO(synk): TransformerModel source not provided; implemented as the
    #             standard pre-LN encoder stack (MHSA + GELU MLP) its args imply.
    for l in range(num_layers):
        # pre-LN multi-head self-attention + residual
        hn = layer_norm(h, ln1g_ref[l], ln1b_ref[l])
        q = jnp.dot(hn, wq_ref[l], preferred_element_type=jnp.float32).reshape(B, S, E)
        k = jnp.dot(hn, wk_ref[l], preferred_element_type=jnp.float32).reshape(B, S, E)
        v = jnp.dot(hn, wv_ref[l], preferred_element_type=jnp.float32).reshape(B, S, E)

        # head-batched attention: group heads on the leading (batch) axis so a
        # single einsum / softmax / einsum handles all heads at once.
        qg = jnp.concatenate([q[:, :, hd * D:(hd + 1) * D] for hd in range(H)], axis=0)
        kg = jnp.concatenate([k[:, :, hd * D:(hd + 1) * D] for hd in range(H)], axis=0)
        vg = jnp.concatenate([v[:, :, hd * D:(hd + 1) * D] for hd in range(H)], axis=0)
        s = jnp.einsum('gqd,gkd->gqk', qg, kg,
                       preferred_element_type=jnp.float32) * scale          # (H*B, S, S)
        s = s - jnp.max(s, axis=-1, keepdims=True)
        p = jnp.exp(s)
        p = p * pl.reciprocal(jnp.sum(p, axis=-1, keepdims=True), approx=True)
        og = jnp.einsum('gqk,gkd->gqd', p, vg,
                        preferred_element_type=jnp.float32)                 # (H*B, S, D)

        # merge heads through the output projection: per-head (D,E) weight
        # blocks summed (no lane-axis concat, no masked stores; MXU has slack).
        wo_l = wo_ref[l]                                                    # (H, D, E)
        attn = bo_ref[l]                                                    # (1, E)
        for hd in range(H):
            attn = attn + jnp.dot(og[hd * B:(hd + 1) * B].reshape(BS, D), wo_l[hd],
                                  preferred_element_type=jnp.float32)
        h = h + attn

        # pre-LN feed-forward + residual
        hn2 = layer_norm(h, ln2g_ref[l], ln2b_ref[l])
        m = jnp.dot(hn2, w1_ref[l], preferred_element_type=jnp.float32) + b1_ref[l]
        m = jax.nn.gelu(m, approximate=True)   # TODO(synk): nn.GELU() default is exact erf
        m = jnp.dot(m, w2_ref[l], preferred_element_type=jnp.float32) + b2_ref[l]
        h = h + m

    # single full-value store (write o_ref exactly once from a formed value)
    o_ref[...] = h.reshape(B, S, E).astype(o_ref.dtype)


def _fullspec(shape):
    nd = len(shape)
    return pl.BlockSpec(shape, lambda i, _nd=nd: (0,) * _nd)


# ------------------------------ parameters -----------------------------------
def init_params(key):
    ks = iter(jax.random.split(key, 32))
    n = lambda shape, s=0.02: s * jax.random.normal(next(ks), shape, jnp.float32)
    L, E, Hd = NUM_LAYERS, EMBED_DIM, HIDDEN_DIM

    # raw module parameters (then pre-fused / pre-transposed for the kernel)
    cls_token   = jnp.zeros((E,), jnp.float32)          # torch.zeros init
    lin_enc_w_t = n((PATCH_DIM, E))                     # linear_encoding, (in,out)
    lin_enc_b   = jnp.zeros((E,), jnp.float32)
    lin_obj_w_t = n((OBJ_DIM, E))                       # linear_obj_encoding
    lin_obj_b   = jnp.zeros((E,), jnp.float32)
    pos_emb     = n((SEQ_LEN, E))                       # learned PE (cls+patches)
    obj_pos_emb = n((OBJ_MAX_NUM, E))                   # learned PE (objects)
    weight_embed = n((DESC_VOCAB, DESC_EMBED))          # info_embed.weight_embedding

    # fused per-position additive table:
    #   row 0       = cls_token + pos[0]
    #   rows 1..N   = linear_encoding.bias + pos[1..N]
    #   rows N+1..  = linear_obj_encoding.bias + obj_pos
    pos_bias = jnp.concatenate([
        (cls_token + pos_emb[0])[None, :],
        lin_enc_b[None, :] + pos_emb[1:],
        lin_obj_b[None, :] + obj_pos_emb], axis=0)      # (TOTAL_SEQ, E)

    return {
        "lin_enc_w_t": lin_enc_w_t,
        "lin_obj_w_obj_t": lin_obj_w_t[:OBJ_FEAT_DIM],      # rows hit by obj feats
        "lin_obj_w_desc_t": lin_obj_w_t[OBJ_FEAT_DIM:],     # rows hit by desc embed
        "weight_embed": weight_embed,
        "pos_bias": pos_bias,
        # per-layer weights stacked on a leading layer axis
        "ln1_g": jnp.ones((L, 1, E), jnp.float32),
        "ln1_b": jnp.zeros((L, 1, E), jnp.float32),
        "wq_t": n((L, E, E)),
        "wk_t": n((L, E, E)),
        "wv_t": n((L, E, E)),
        "wo_t": n((L, NUM_HEADS, E // NUM_HEADS, E)),        # (E,E) split into head blocks
        "bo": jnp.zeros((L, 1, E), jnp.float32),
        "ln2_g": jnp.ones((L, 1, E), jnp.float32),
        "ln2_b": jnp.zeros((L, 1, E), jnp.float32),
        "w1_t": n((L, E, Hd)),
        "b1": jnp.zeros((L, 1, Hd), jnp.float32),
        "w2_t": n((L, Hd, E)),
        "b2": jnp.zeros((L, 1, E), jnp.float32),
    }


# ----------------------------- forward pass -----------------------------------
@jax.jit
def vision_transformer_forward(params, x, obj, desc):
    B = x.shape[0]
    E = EMBED_DIM
    S = TOTAL_SEQ

    # only free, contiguous reshapes on runtime data outside the kernel
    x2 = x.reshape(B * NUM_PATCHES, PATCH_DIM)
    obj2 = obj.reshape(B * OBJ_MAX_NUM, OBJ_FEAT_DIM)
    desc2 = desc.reshape(B * OBJ_MAX_NUM, 1)

    # constant 0/1 placement matrices (built at trace time with numpy -> baked
    # in as constants, no runtime XLA op): scatter patch/object rows into their
    # positions of the joint [cls, patches, objects] sequence.
    px = np.zeros((B * S, B * NUM_PATCHES), np.float32)
    po = np.zeros((B * S, B * OBJ_MAX_NUM), np.float32)
    for b in range(B):
        for p_ in range(NUM_PATCHES):
            px[b * S + 1 + p_, b * NUM_PATCHES + p_] = 1.0
        for o_ in range(OBJ_MAX_NUM):
            po[b * S + SEQ_LEN + o_, b * OBJ_MAX_NUM + o_] = 1.0

    args = (x2, obj2, desc2, jnp.asarray(px), jnp.asarray(po),
            params["lin_enc_w_t"], params["lin_obj_w_obj_t"],
            params["lin_obj_w_desc_t"], params["weight_embed"], params["pos_bias"],
            params["ln1_g"], params["ln1_b"],
            params["wq_t"], params["wk_t"], params["wv_t"],
            params["wo_t"], params["bo"],
            params["ln2_g"], params["ln2_b"],
            params["w1_t"], params["b1"], params["w2_t"], params["b2"])

    kern = functools.partial(_vit_fused_kernel,
                             num_heads=NUM_HEADS, num_layers=NUM_LAYERS)

    return pl.pallas_call(
        kern,
        out_shape=jax.ShapeDtypeStruct((B, TOTAL_SEQ, E), x.dtype),
        grid=(1,),                                   # whole batch in one step
        in_specs=[_fullspec(a.shape) for a in args],
        out_specs=_fullspec((B, TOTAL_SEQ, E)),
        compiler_params=pltpu.CompilerParams(dimension_semantics=("arbitrary",)),
    )(*args)                                          # returns all embeddings


# --------------------------------- main ---------------------------------------
if __name__ == "__main__":
    key = jax.random.PRNGKey(0)
    kx, ko, kd, kp = jax.random.split(key, 4)

    B = 2
    x = jax.random.normal(kx, (B, NUM_PATCHES, PATCH_DIM), jnp.float32)
    obj = jax.random.normal(ko, (B, OBJ_MAX_NUM, OBJ_FEAT_DIM), jnp.float32)
    desc = jax.random.randint(kd, (B, OBJ_MAX_NUM, 1), 0, DESC_VOCAB, jnp.int32)

    params = init_params(kp)
    out = vision_transformer_forward(params, x, obj, desc)
    jax.block_until_ready(out)
    assert out.shape == (B, TOTAL_SEQ, EMBED_DIM), out.shape
    print("KERNEL_OK")
</pallas_src>

<mosaic_0001>
module attributes {stable_mosaic.version = 11 : i64} {
  func.func @_vit_fused_kernel(%arg0: i32, %arg1: memref<16x16xf32, #tpu.memory_space<vmem>>, %arg2: memref<14x6xf32, #tpu.memory_space<vmem>>, %arg3: memref<14x1xi32, #tpu.memory_space<vmem>>, %arg4: memref<32x16xf32, #tpu.memory_space<vmem>>, %arg5: memref<32x14xf32, #tpu.memory_space<vmem>>, %arg6: memref<16x32xf32, #tpu.memory_space<vmem>>, %arg7: memref<6x32xf32, #tpu.memory_space<vmem>>, %arg8: memref<10x32xf32, #tpu.memory_space<vmem>>, %arg9: memref<12x10xf32, #tpu.memory_space<vmem>>, %arg10: memref<16x32xf32, #tpu.memory_space<vmem>>, %arg11: memref<2x1x32xf32, #tpu.memory_space<vmem>>, %arg12: memref<2x1x32xf32, #tpu.memory_space<vmem>>, %arg13: memref<2x32x32xf32, #tpu.memory_space<vmem>>, %arg14: memref<2x32x32xf32, #tpu.memory_space<vmem>>, %arg15: memref<2x32x32xf32, #tpu.memory_space<vmem>>, %arg16: memref<2x4x8x32xf32, #tpu.memory_space<vmem>>, %arg17: memref<2x1x32xf32, #tpu.memory_space<vmem>>, %arg18: memref<2x1x32xf32, #tpu.memory_space<vmem>>, %arg19: memref<2x1x32xf32, #tpu.memory_space<vmem>>, %arg20: memref<2x32x64xf32, #tpu.memory_space<vmem>>, %arg21: memref<2x1x64xf32, #tpu.memory_space<vmem>>, %arg22: memref<2x64x32xf32, #tpu.memory_space<vmem>>, %arg23: memref<2x1x32xf32, #tpu.memory_space<vmem>>, %arg24: memref<2x16x32xf32, #tpu.memory_space<vmem>>) attributes {dimension_semantics = [#tpu.dimension_semantics<arbitrary>], iteration_bounds = array<i64: 1>, scalar_prefetch = 0 : i64, scratch_operands = 0 : i64, tpu.core_type = #tpu.core_type<tc>, window_params = [{pipeline_mode = #tpu.pipeline_mode<synchronous>, transform_indices = @transform_0, window_bounds = array<i64: 16, 16>}, {pipeline_mode = #tpu.pipeline_mode<synchronous>, transform_indices = @transform_1, window_bounds = array<i64: 14, 6>}, {pipeline_mode = #tpu.pipeline_mode<synchronous>, transform_indices = @transform_2, window_bounds = array<i64: 14, 1>}, {pipeline_mode = #tpu.pipeline_mode<synchronous>, transform_indices = @transform_3, window_bounds = array<i64: 32, 16>}, {pipeline_mode = #tpu.pipeline_mode<synchronous>, transform_indices = @transform_4, window_bounds = array<i64: 32, 14>}, {pipeline_mode = #tpu.pipeline_mode<synchronous>, transform_indices = @transform_5, window_bounds = array<i64: 16, 32>}, {pipeline_mode = #tpu.pipeline_mode<synchronous>, transform_indices = @transform_6, window_bounds = array<i64: 6, 32>}, {pipeline_mode = #tpu.pipeline_mode<synchronous>, transform_indices = @transform_7, window_bounds = array<i64: 10, 32>}, {pipeline_mode = #tpu.pipeline_mode<synchronous>, transform_indices = @transform_8, window_bounds = array<i64: 12, 10>}, {pipeline_mode = #tpu.pipeline_mode<synchronous>, transform_indices = @transform_9, window_bounds = array<i64: 16, 32>}, {pipeline_mode = #tpu.pipeline_mode<synchronous>, transform_indices = @transform_10, window_bounds = array<i64: 2, 1, 32>}, {pipeline_mode = #tpu.pipeline_mode<synchronous>, transform_indices = @transform_11, window_bounds = array<i64: 2, 1, 32>}, {pipeline_mode = #tpu.pipeline_mode<synchronous>, transform_indices = @transform_12, window_bounds = array<i64: 2, 32, 32>}, {pipeline_mode = #tpu.pipeline_mode<synchronous>, transform_indices = @transform_13, window_bounds = array<i64: 2, 32, 32>}, {pipeline_mode = #tpu.pipeline_mode<synchronous>, transform_indices = @transform_14, window_bounds = array<i64: 2, 32, 32>}, {pipeline_mode = #tpu.pipeline_mode<synchronous>, transform_indices = @transform_15, window_bounds = array<i64: 2, 4, 8, 32>}, {pipeline_mode = #tpu.pipeline_mode<synchronous>, transform_indices = @transform_16, window_bounds = array<i64: 2, 1, 32>}, {pipeline_mode = #tpu.pipeline_mode<synchronous>, transform_indices = @transform_17, window_bounds = array<i64: 2, 1, 32>}, {pipeline_mode = #tpu.pipeline_mode<synchronous>, transform_indices = @transform_18, window_bounds = array<i64: 2, 1, 32>}, {pipeline_mode = #tpu.pipeline_mode<synchronous>, transform_indices = @transform_19, window_bounds = array<i64: 2, 32, 64>}, {pipeline_mode = #tpu.pipeline_mode<synchronous>, transform_indices = @transform_20, window_bounds = array<i64: 2, 1, 64>}, {pipeline_mode = #tpu.pipeline_mode<synchronous>, transform_indices = @transform_21, window_bounds = array<i64: 2, 64, 32>}, {pipeline_mode = #tpu.pipeline_mode<synchronous>, transform_indices = @transform_22, window_bounds = array<i64: 2, 1, 32>}, {pipeline_mode = #tpu.pipeline_mode<synchronous>, transform_indices = @transform_23, window_bounds = array<i64: 2, 16, 32>}]} {
    %c0 = arith.constant 0 : index
    %c0_0 = arith.constant 0 : index
    %0 = vector.load %arg1[%c0, %c0_0] : memref<16x16xf32, #tpu.memory_space<vmem>>, vector<16x16xf32>
    %c0_1 = arith.constant 0 : index
    %c0_2 = arith.constant 0 : index
    %1 = vector.load %arg6[%c0_1, %c0_2] : memref<16x32xf32, #tpu.memory_space<vmem>>, vector<16x32xf32>
    %cst = arith.constant dense<0.000000e+00> : vector<16x32xf32>
    %2 = tpu.matmul %0, %1, %cst {dimension_numbers = #tpu.dot_dimension_numbers<[1], [0], [0], [1], [0, 0, 1, 1], [], []>} : vector<16x16xf32>, vector<16x32xf32>, vector<16x32xf32> -> vector<16x32xf32>
    %c0_3 = arith.constant 0 : index
    %c0_4 = arith.constant 0 : index
    %3 = vector.load %arg3[%c0_3, %c0_4] : memref<14x1xi32, #tpu.memory_space<vmem>>, vector<14x1xi32>
    %4 = tpu.iota {dimensions = array<i32: 1>} : vector<14x12xi32>
    %5 = vector.broadcast %3 : vector<14x1xi32> to vector<14x12xi32>
    %6 = arith.cmpi eq, %5, %4 : vector<14x12xi32>
    %cst_5 = arith.constant 1.000000e+00 : f32
    %cst_6 = arith.constant 0.000000e+00 : f32
    %7 = vector.broadcast %cst_5 : f32 to vector<14x12xf32>
    %8 = vector.broadcast %cst_6 : f32 to vector<14x12xf32>
    %9 = arith.select %6, %7, %8 : vector<14x12xi1>, vector<14x12xf32>
    %c0_7 = arith.constant 0 : index
    %c0_8 = arith.constant 0 : index
    %10 = vector.load %arg9[%c0_7, %c0_8] : memref<12x10xf32, #tpu.memory_space<vmem>>, vector<12x10xf32>
    %cst_9 = arith.constant dense<0.000000e+00> : vector<14x10xf32>
    %11 = tpu.matmul %9, %10, %cst_9 {dimension_numbers = #tpu.dot_dimension_numbers<[1], [0], [0], [1], [0, 0, 1, 1], [], []>} : vector<14x12xf32>, vector<12x10xf32>, vector<14x10xf32> -> vector<14x10xf32>
    %c0_10 = arith.constant 0 : index
    %c0_11 = arith.constant 0 : index
    %12 = vector.load %arg2[%c0_10, %c0_11] : memref<14x6xf32, #tpu.memory_space<vmem>>, vector<14x6xf32>
    %c0_12 = arith.constant 0 : index
    %c0_13 = arith.constant 0 : index
    %13 = vector.load %arg7[%c0_12, %c0_13] : memref<6x32xf32, #tpu.memory_space<vmem>>, vector<6x32xf32>
    %cst_14 = arith.constant dense<0.000000e+00> : vector<14x32xf32>
    %14 = tpu.matmul %12, %13, %cst_14 {dimension_numbers = #tpu.dot_dimension_numbers<[1], [0], [0], [1], [0, 0, 1, 1], [], []>} : vector<14x6xf32>, vector<6x32xf32>, vector<14x32xf32> -> vector<14x32xf32>
    %c0_15 = arith.constant 0 : index
    %c0_16 = arith.constant 0 : index
    %15 = vector.load %arg8[%c0_15, %c0_16] : memref<10x32xf32, #tpu.memory_space<vmem>>, vector<10x32xf32>
    %cst_17 = arith.constant dense<0.000000e+00> : vector<14x32xf32>
    %16 = tpu.matmul %11, %15, %cst_17 {dimension_numbers = #tpu.dot_dimension_numbers<[1], [0], [0], [1], [0, 0, 1, 1], [], []>} : vector<14x10xf32>, vector<10x32xf32>, vector<14x32xf32> -> vector<14x32xf32>
    %17 = arith.addf %14, %16 : vector<14x32xf32>
    %c0_18 = arith.constant 0 : index
    %c0_19 = arith.constant 0 : index
    %18 = vector.load %arg4[%c0_18, %c0_19] : memref<32x16xf32, #tpu.memory_space<vmem>>, vector<32x16xf32>
    %cst_20 = arith.constant dense<0.000000e+00> : vector<32x32xf32>
    %19 = tpu.matmul %18, %2, %cst_20 {dimension_numbers = #tpu.dot_dimension_numbers<[1], [0], [0], [1], [0, 0, 1, 1], [], []>} : vector<32x16xf32>, vector<16x32xf32>, vector<32x32xf32> -> vector<32x32xf32>
    %c0_21 = arith.constant 0 : index
    %c0_22 = arith.constant 0 : index
    %20 = vector.load %arg5[%c0_21, %c0_22] : memref<32x14xf32, #tpu.memory_space<vmem>>, vector<32x14xf32>
    %cst_23 = arith.constant dense<0.000000e+00> : vector<32x32xf32>
    %21 = tpu.matmul %20, %17, %cst_23 {dimension_numbers = #tpu.dot_dimension_numbers<[1], [0], [0], [1], [0, 0, 1, 1], [], []>} : vector<32x14xf32>, vector<14x32xf32>, vector<32x32xf32> -> vector<32x32xf32>
    %22 = arith.addf %19, %21 : vector<32x32xf32>
    %23 = vector.shape_cast %22 : vector<32x32xf32> to vector<2x16x32xf32>
    %c0_24 = arith.constant 0 : index
    %c0_25 = arith.constant 0 : index
    %24 = vector.load %arg10[%c0_24, %c0_25] : memref<16x32xf32, #tpu.memory_space<vmem>>, vector<16x32xf32>
    %25 = vector.shape_cast %24 : vector<16x32xf32> to vector<1x16x32xf32>
    %26 = vector.broadcast %25 : vector<1x16x32xf32> to vector<2x16x32xf32>
    %27 = arith.addf %23, %26 : vector<2x16x32xf32>
    %28 = vector.shape_cast %27 : vector<2x16x32xf32> to vector<32x32xf32>
    %c0_26 = arith.constant 0 : index
    %c0_27 = arith.constant 0 : index
    %c0_28 = arith.constant 0 : index
    %29 = vector.load %arg11[%c0_26, %c0_27, %c0_28] : memref<2x1x32xf32, #tpu.memory_space<vmem>>, vector<1x1x32xf32>
    %30 = vector.shape_cast %29 : vector<1x1x32xf32> to vector<1x32xf32>
    %c0_29 = arith.constant 0 : index
    %c0_30 = arith.constant 0 : index
    %c0_31 = arith.constant 0 : index
    %31 = vector.load %arg12[%c0_29, %c0_30, %c0_31] : memref<2x1x32xf32, #tpu.memory_space<vmem>>, vector<1x1x32xf32>
    %32 = vector.shape_cast %31 : vector<1x1x32xf32> to vector<1x32xf32>
    %cst_32 = arith.constant dense<0.000000e+00> : vector<32xf32>
    %33 = vector.multi_reduction <add>, %28, %cst_32 [1] : vector<32x32xf32> to vector<32xf32>
    %34 = vector.shape_cast %33 : vector<32xf32> to vector<32x1xf32>
    %cst_33 = arith.constant 3.200000e+01 : f32
    %35 = vector.broadcast %cst_33 : f32 to vector<32x1xf32>
    %36 = arith.divf %34, %35 : vector<32x1xf32>
    %37 = vector.broadcast %36 : vector<32x1xf32> to vector<32x32xf32>
    %38 = arith.subf %28, %37 : vector<32x32xf32>
    %39 = arith.mulf %38, %38 : vector<32x32xf32>
    %cst_34 = arith.constant dense<0.000000e+00> : vector<32xf32>
    %40 = vector.multi_reduction <add>, %39, %cst_34 [1] : vector<32x32xf32> to vector<32xf32>
    %41 = vector.shape_cast %40 : vector<32xf32> to vector<32x1xf32>
    %cst_35 = arith.constant 3.200000e+01 : f32
    %42 = vector.broadcast %cst_35 : f32 to vector<32x1xf32>
    %43 = arith.divf %41, %42 : vector<32x1xf32>
    %44 = vector.broadcast %36 : vector<32x1xf32> to vector<32x32xf32>
    %45 = arith.subf %28, %44 : vector<32x32xf32>
    %cst_36 = arith.constant 9.99999974E-6 : f32
    %46 = vector.broadcast %cst_36 : f32 to vector<32x1xf32>
    %47 = arith.addf %43, %46 : vector<32x1xf32>
    %48 = math.rsqrt %47 : vector<32x1xf32>
    %49 = vector.broadcast %48 : vector<32x1xf32> to vector<32x32xf32>
    %50 = arith.mulf %45, %49 : vector<32x32xf32>
    %51 = vector.broadcast %30 : vector<1x32xf32> to vector<32x32xf32>
    %52 = arith.mulf %50, %51 : vector<32x32xf32>
    %53 = vector.broadcast %32 : vector<1x32xf32> to vector<32x32xf32>
    %54 = arith.addf %52, %53 : vector<32x32xf32>
    %c0_37 = arith.constant 0 : index
    %c0_38 = arith.constant 0 : index
    %c0_39 = arith.constant 0 : index
    %55 = vector.load %arg13[%c0_37, %c0_38, %c0_39] : memref<2x32x32xf32, #tpu.memory_space<vmem>>, vector<1x32x32xf32>
    %56 = vector.shape_cast %55 : vector<1x32x32xf32> to vector<32x32xf32>
    %cst_40 = arith.constant dense<0.000000e+00> : vector<32x32xf32>
    %57 = tpu.matmul %54, %56, %cst_40 {dimension_numbers = #tpu.dot_dimension_numbers<[1], [0], [0], [1], [0, 0, 1, 1], [], []>} : vector<32x32xf32>, vector<32x32xf32>, vector<32x32xf32> -> vector<32x32xf32>
    %58 = vector.shape_cast %57 : vector<32x32xf32> to vector<2x16x32xf32>
    %c0_41 = arith.constant 0 : index
    %c0_42 = arith.constant 0 : index
    %c0_43 = arith.constant 0 : index
    %59 = vector.load %arg14[%c0_41, %c0_42, %c0_43] : memref<2x32x32xf32, #tpu.memory_space<vmem>>, vector<1x32x32xf32>
    %60 = vector.shape_cast %59 : vector<1x32x32xf32> to vector<32x32xf32>
    %cst_44 = arith.constant dense<0.000000e+00> : vector<32x32xf32>
    %61 = tpu.matmul %54, %60, %cst_44 {dimension_numbers = #tpu.dot_dimension_numbers<[1], [0], [0], [1], [0, 0, 1, 1], [], []>} : vector<32x32xf32>, vector<32x32xf32>, vector<32x32xf32> -> vector<32x32xf32>
    %62 = vector.shape_cast %61 : vector<32x32xf32> to vector<2x16x32xf32>
    %c0_45 = arith.constant 0 : index
    %c0_46 = arith.constant 0 : index
    %c0_47 = arith.constant 0 : index
    %63 = vector.load %arg15[%c0_45, %c0_46, %c0_47] : memref<2x32x32xf32, #tpu.memory_space<vmem>>, vector<1x32x32xf32>
    %64 = vector.shape_cast %63 : vector<1x32x32xf32> to vector<32x32xf32>
    %cst_48 = arith.constant dense<0.000000e+00> : vector<32x32xf32>
    %65 = tpu.matmul %54, %64, %cst_48 {dimension_numbers = #tpu.dot_dimension_numbers<[1], [0], [0], [1], [0, 0, 1, 1], [], []>} : vector<32x32xf32>, vector<32x32xf32>, vector<32x32xf32> -> vector<32x32xf32>
    %66 = vector.shape_cast %65 : vector<32x32xf32> to vector<2x16x32xf32>
    %67 = vector.extract_strided_slice %58 {offsets = [0, 0, 0], sizes = [2, 16, 8], strides = [1, 1, 1]} : vector<2x16x32xf32> to vector<2x16x8xf32>
    %68 = vector.extract_strided_slice %58 {offsets = [0, 0, 8], sizes = [2, 16, 8], strides = [1, 1, 1]} : vector<2x16x32xf32> to vector<2x16x8xf32>
    %69 = vector.extract_strided_slice %58 {offsets = [0, 0, 16], sizes = [2, 16, 8], strides = [1, 1, 1]} : vector<2x16x32xf32> to vector<2x16x8xf32>
    %70 = vector.extract_strided_slice %58 {offsets = [0, 0, 24], sizes = [2, 16, 8], strides = [1, 1, 1]} : vector<2x16x32xf32> to vector<2x16x8xf32>
    %71 = tpu.concatenate %67, %68, %69, %70 in 0 : vector<2x16x8xf32>, vector<2x16x8xf32>, vector<2x16x8xf32>, vector<2x16x8xf32> -> vector<8x16x8xf32>
    %72 = vector.extract_strided_slice %62 {offsets = [0, 0, 0], sizes = [2, 16, 8], strides = [1, 1, 1]} : vector<2x16x32xf32> to vector<2x16x8xf32>
    %73 = vector.extract_strided_slice %62 {offsets = [0, 0, 8], sizes = [2, 16, 8], strides = [1, 1, 1]} : vector<2x16x32xf32> to vector<2x16x8xf32>
    %74 = vector.extract_strided_slice %62 {offsets = [0, 0, 16], sizes = [2, 16, 8], strides = [1, 1, 1]} : vector<2x16x32xf32> to vector<2x16x8xf32>
    %75 = vector.extract_strided_slice %62 {offsets = [0, 0, 24], sizes = [2, 16, 8], strides = [1, 1, 1]} : vector<2x16x32xf32> to vector<2x16x8xf32>
    %76 = tpu.concatenate %72, %73, %74, %75 in 0 : vector<2x16x8xf32>, vector<2x16x8xf32>, vector<2x16x8xf32>, vector<2x16x8xf32> -> vector<8x16x8xf32>
    %77 = vector.extract_strided_slice %66 {offsets = [0, 0, 0], sizes = [2, 16, 8], strides = [1, 1, 1]} : vector<2x16x32xf32> to vector<2x16x8xf32>
    %78 = vector.extract_strided_slice %66 {offsets = [0, 0, 8], sizes = [2, 16, 8], strides = [1, 1, 1]} : vector<2x16x32xf32> to vector<2x16x8xf32>
    %79 = vector.extract_strided_slice %66 {offsets = [0, 0, 16], sizes = [2, 16, 8], strides = [1, 1, 1]} : vector<2x16x32xf32> to vector<2x16x8xf32>
    %80 = vector.extract_strided_slice %66 {offsets = [0, 0, 24], sizes = [2, 16, 8], strides = [1, 1, 1]} : vector<2x16x32xf32> to vector<2x16x8xf32>
    %81 = tpu.concatenate %77, %78, %79, %80 in 0 : vector<2x16x8xf32>, vector<2x16x8xf32>, vector<2x16x8xf32>, vector<2x16x8xf32> -> vector<8x16x8xf32>
    "tpu.trace_start"() <{level = 10 : i32, message = "gqd,gkd->gqk"}> : () -> ()
    %cst_49 = arith.constant dense<0.000000e+00> : vector<8x16x16xf32>
    %82 = tpu.matmul %71, %76, %cst_49 {dimension_numbers = #tpu.dot_dimension_numbers<[2], [2], [1], [1], [0, 0, 0, 1, 1, 1], [0], [0]>} : vector<8x16x8xf32>, vector<8x16x8xf32>, vector<8x16x16xf32> -> vector<8x16x16xf32>
    "tpu.trace_stop"() : () -> ()
    %cst_50 = arith.constant 0.353553385 : f32
    %83 = vector.broadcast %cst_50 : f32 to vector<8x16x16xf32>
    %84 = arith.mulf %82, %83 : vector<8x16x16xf32>
    %cst_51 = arith.constant dense<0xFF800000> : vector<8x16xf32>
    %85 = vector.multi_reduction <maximumf>, %84, %cst_51 [2] : vector<8x16x16xf32> to vector<8x16xf32>
    %86 = vector.shape_cast %85 : vector<8x16xf32> to vector<8x16x1xf32>
    %87 = vector.broadcast %86 : vector<8x16x1xf32> to vector<8x16x16xf32>
    %88 = arith.subf %84, %87 : vector<8x16x16xf32>
    %89 = math.exp %88 : vector<8x16x16xf32>
    %cst_52 = arith.constant dense<0.000000e+00> : vector<8x16xf32>
    %90 = vector.multi_reduction <add>, %89, %cst_52 [2] : vector<8x16x16xf32> to vector<8x16xf32>
    %91 = vector.shape_cast %90 : vector<8x16xf32> to vector<8x16x1xf32>
    %92 = tpu.reciprocal %91 {approx = true} : vector<8x16x1xf32> -> vector<8x16x1xf32>
    %93 = vector.broadcast %92 : vector<8x16x1xf32> to vector<8x16x16xf32>
    %94 = arith.mulf %89, %93 : vector<8x16x16xf32>
    "tpu.trace_start"() <{level = 10 : i32, message = "gqk,gkd->gqd"}> : () -> ()
    %cst_53 = arith.constant dense<0.000000e+00> : vector<8x16x8xf32>
    %95 = tpu.matmul %94, %81, %cst_53 {dimension_numbers = #tpu.dot_dimension_numbers<[2], [1], [1], [2], [0, 0, 0, 1, 1, 2], [0], [0]>} : vector<8x16x16xf32>, vector<8x16x8xf32>, vector<8x16x8xf32> -> vector<8x16x8xf32>
    "tpu.trace_stop"() : () -> ()
    %c0_54 = arith.constant 0 : index
    %c0_55 = arith.constant 0 : index
    %c0_56 = arith.constant 0 : index
    %c0_57 = arith.constant 0 : index
    %96 = vector.load %arg16[%c0_54, %c0_55, %c0_56, %c0_57] : memref<2x4x8x32xf32, #tpu.memory_space<vmem>>, vector<1x4x8x32xf32>
    %97 = vector.shape_cast %96 : vector<1x4x8x32xf32> to vector<4x8x32xf32>
    %c0_58 = arith.constant 0 : index
    %c0_59 = arith.constant 0 : index
    %c0_60 = arith.constant 0 : index
    %98 = vector.load %arg17[%c0_58, %c0_59, %c0_60] : memref<2x1x32xf32, #tpu.memory_space<vmem>>, vector<1x1x32xf32>
    %99 = vector.shape_cast %98 : vector<1x1x32xf32> to vector<1x32xf32>
    %100 = vector.extract_strided_slice %95 {offsets = [0, 0, 0], sizes = [2, 16, 8], strides = [1, 1, 1]} : vector<8x16x8xf32> to vector<2x16x8xf32>
    %101 = vector.shape_cast %100 : vector<2x16x8xf32> to vector<32x8xf32>
    %102 = vector.extract_strided_slice %97 {offsets = [0, 0, 0], sizes = [1, 8, 32], strides = [1, 1, 1]} : vector<4x8x32xf32> to vector<1x8x32xf32>
    %103 = vector.shape_cast %102 : vector<1x8x32xf32> to vector<8x32xf32>
    %cst_61 = arith.constant dense<0.000000e+00> : vector<32x32xf32>
    %104 = tpu.matmul %101, %103, %cst_61 {dimension_numbers = #tpu.dot_dimension_numbers<[1], [0], [0], [1], [0, 0, 1, 1], [], []>} : vector<32x8xf32>, vector<8x32xf32>, vector<32x32xf32> -> vector<32x32xf32>
    %105 = vector.broadcast %99 : vector<1x32xf32> to vector<32x32xf32>
    %106 = arith.addf %105, %104 : vector<32x32xf32>
    %107 = vector.extract_strided_slice %95 {offsets = [2, 0, 0], sizes = [2, 16, 8], strides = [1, 1, 1]} : vector<8x16x8xf32> to vector<2x16x8xf32>
    %108 = vector.shape_cast %107 : vector<2x16x8xf32> to vector<32x8xf32>
    %109 = vector.extract_strided_slice %97 {offsets = [1, 0, 0], sizes = [1, 8, 32], strides = [1, 1, 1]} : vector<4x8x32xf32> to vector<1x8x32xf32>
    %110 = vector.shape_cast %109 : vector<1x8x32xf32> to vector<8x32xf32>
    %cst_62 = arith.constant dense<0.000000e+00> : vector<32x32xf32>
    %111 = tpu.matmul %108, %110, %cst_62 {dimension_numbers = #tpu.dot_dimension_numbers<[1], [0], [0], [1], [0, 0, 1, 1], [], []>} : vector<32x8xf32>, vector<8x32xf32>, vector<32x32xf32> -> vector<32x32xf32>
    %112 = arith.addf %106, %111 : vector<32x32xf32>
    %113 = vector.extract_strided_slice %95 {offsets = [4, 0, 0], sizes = [2, 16, 8], strides = [1, 1, 1]} : vector<8x16x8xf32> to vector<2x16x8xf32>
    %114 = vector.shape_cast %113 : vector<2x16x8xf32> to vector<32x8xf32>
    %115 = vector.extract_strided_slice %97 {offsets = [2, 0, 0], sizes = [1, 8, 32], strides = [1, 1, 1]} : vector<4x8x32xf32> to vector<1x8x32xf32>
    %116 = vector.shape_cast %115 : vector<1x8x32xf32> to vector<8x32xf32>
    %cst_63 = arith.constant dense<0.000000e+00> : vector<32x32xf32>
    %117 = tpu.matmul %114, %116, %cst_63 {dimension_numbers = #tpu.dot_dimension_numbers<[1], [0], [0], [1], [0, 0, 1, 1], [], []>} : vector<32x8xf32>, vector<8x32xf32>, vector<32x32xf32> -> vector<32x32xf32>
    %118 = arith.addf %112, %117 : vector<32x32xf32>
    %119 = vector.extract_strided_slice %95 {offsets = [6, 0, 0], sizes = [2, 16, 8], strides = [1, 1, 1]} : vector<8x16x8xf32> to vector<2x16x8xf32>
    %120 = vector.shape_cast %119 : vector<2x16x8xf32> to vector<32x8xf32>
    %121 = vector.extract_strided_slice %97 {offsets = [3, 0, 0], sizes = [1, 8, 32], strides = [1, 1, 1]} : vector<4x8x32xf32> to vector<1x8x32xf32>
    %122 = vector.shape_cast %121 : vector<1x8x32xf32> to vector<8x32xf32>
    %cst_64 = arith.constant dense<0.000000e+00> : vector<32x32xf32>
    %123 = tpu.matmul %120, %122, %cst_64 {dimension_numbers = #tpu.dot_dimension_numbers<[1], [0], [0], [1], [0, 0, 1, 1], [], []>} : vector<32x8xf32>, vector<8x32xf32>, vector<32x32xf32> -> vector<32x32xf32>
    %124 = arith.addf %118, %123 : vector<32x32xf32>
    %125 = arith.addf %28, %124 : vector<32x32xf32>
    %c0_65 = arith.constant 0 : index
    %c0_66 = arith.constant 0 : index
    %c0_67 = arith.constant 0 : index
    %126 = vector.load %arg18[%c0_65, %c0_66, %c0_67] : memref<2x1x32xf32, #tpu.memory_space<vmem>>, vector<1x1x32xf32>
    %127 = vector.shape_cast %126 : vector<1x1x32xf32> to vector<1x32xf32>
    %c0_68 = arith.constant 0 : index
    %c0_69 = arith.constant 0 : index
    %c0_70 = arith.constant 0 : index
    %128 = vector.load %arg19[%c0_68, %c0_69, %c0_70] : memref<2x1x32xf32, #tpu.memory_space<vmem>>, vector<1x1x32xf32>
    %129 = vector.shape_cast %128 : vector<1x1x32xf32> to vector<1x32xf32>
    %cst_71 = arith.constant dense<0.000000e+00> : vector<32xf32>
    %130 = vector.multi_reduction <add>, %125, %cst_71 [1] : vector<32x32xf32> to vector<32xf32>
    %131 = vector.shape_cast %130 : vector<32xf32> to vector<32x1xf32>
    %cst_72 = arith.constant 3.200000e+01 : f32
    %132 = vector.broadcast %cst_72 : f32 to vector<32x1xf32>
    %133 = arith.divf %131, %132 : vector<32x1xf32>
    %134 = vector.broadcast %133 : vector<32x1xf32> to vector<32x32xf32>
    %135 = arith.subf %125, %134 : vector<32x32xf32>
    %136 = arith.mulf %135, %135 : vector<32x32xf32>
    %cst_73 = arith.constant dense<0.000000e+00> : vector<32xf32>
    %137 = vector.multi_reduction <add>, %136, %cst_73 [1] : vector<32x32xf32> to vector<32xf32>
    %138 = vector.shape_cast %137 : vector<32xf32> to vector<32x1xf32>
    %cst_74 = arith.constant 3.200000e+01 : f32
    %139 = vector.broadcast %cst_74 : f32 to vector<32x1xf32>
    %140 = arith.divf %138, %139 : vector<32x1xf32>
    %141 = vector.broadcast %133 : vector<32x1xf32> to vector<32x32xf32>
    %142 = arith.subf %125, %141 : vector<32x32xf32>
    %cst_75 = arith.constant 9.99999974E-6 : f32
    %143 = vector.broadcast %cst_75 : f32 to vector<32x1xf32>
    %144 = arith.addf %140, %143 : vector<32x1xf32>
    %145 = math.rsqrt %144 : vector<32x1xf32>
    %146 = vector.broadcast %145 : vector<32x1xf32> to vector<32x32xf32>
    %147 = arith.mulf %142, %146 : vector<32x32xf32>
    %148 = vector.broadcast %127 : vector<1x32xf32> to vector<32x32xf32>
    %149 = arith.mulf %147, %148 : vector<32x32xf32>
    %150 = vector.broadcast %129 : vector<1x32xf32> to vector<32x32xf32>
    %151 = arith.addf %149, %150 : vector<32x32xf32>
    %c0_76 = arith.constant 0 : index
    %c0_77 = arith.constant 0 : index
    %c0_78 = arith.constant 0 : index
    %152 = vector.load %arg20[%c0_76, %c0_77, %c0_78] : memref<2x32x64xf32, #tpu.memory_space<vmem>>, vector<1x32x64xf32>
    %153 = vector.shape_cast %152 : vector<1x32x64xf32> to vector<32x64xf32>
    %cst_79 = arith.constant dense<0.000000e+00> : vector<32x64xf32>
    %154 = tpu.matmul %151, %153, %cst_79 {dimension_numbers = #tpu.dot_dimension_numbers<[1], [0], [0], [1], [0, 0, 1, 1], [], []>} : vector<32x32xf32>, vector<32x64xf32>, vector<32x64xf32> -> vector<32x64xf32>
    %c0_80 = arith.constant 0 : index
    %c0_81 = arith.constant 0 : index
    %c0_82 = arith.constant 0 : index
    %155 = vector.load %arg21[%c0_80, %c0_81, %c0_82] : memref<2x1x64xf32, #tpu.memory_space<vmem>>, vector<1x1x64xf32>
    %156 = vector.shape_cast %155 : vector<1x1x64xf32> to vector<1x64xf32>
    %157 = vector.broadcast %156 : vector<1x64xf32> to vector<32x64xf32>
    %158 = arith.addf %154, %157 : vector<32x64xf32>
    %159 = arith.mulf %158, %158 : vector<32x64xf32>
    %160 = arith.mulf %158, %159 : vector<32x64xf32>
    %cst_83 = arith.constant 4.471500e-02 : f32
    %161 = vector.broadcast %cst_83 : f32 to vector<32x64xf32>
    %162 = arith.mulf %161, %160 : vector<32x64xf32>
    %163 = arith.addf %158, %162 : vector<32x64xf32>
    %cst_84 = arith.constant 0.797884583 : f32
    %164 = vector.broadcast %cst_84 : f32 to vector<32x64xf32>
    %165 = arith.mulf %164, %163 : vector<32x64xf32>
    %166 = math.tanh %165 : vector<32x64xf32>
    %cst_85 = arith.constant 1.000000e+00 : f32
    %167 = vector.broadcast %cst_85 : f32 to vector<32x64xf32>
    %168 = arith.addf %167, %166 : vector<32x64xf32>
    %cst_86 = arith.constant 5.000000e-01 : f32
    %169 = vector.broadcast %cst_86 : f32 to vector<32x64xf32>
    %170 = arith.mulf %169, %168 : vector<32x64xf32>
    %171 = arith.mulf %158, %170 : vector<32x64xf32>
    %c0_87 = arith.constant 0 : index
    %c0_88 = arith.constant 0 : index
    %c0_89 = arith.constant 0 : index
    %172 = vector.load %arg22[%c0_87, %c0_88, %c0_89] : memref<2x64x32xf32, #tpu.memory_space<vmem>>, vector<1x64x32xf32>
    %173 = vector.shape_cast %172 : vector<1x64x32xf32> to vector<64x32xf32>
    %cst_90 = arith.constant dense<0.000000e+00> : vector<32x32xf32>
    %174 = tpu.matmul %171, %173, %cst_90 {dimension_numbers = #tpu.dot_dimension_numbers<[1], [0], [0], [1], [0, 0, 1, 1], [], []>} : vector<32x64xf32>, vector<64x32xf32>, vector<32x32xf32> -> vector<32x32xf32>
    %c0_91 = arith.constant 0 : index
    %c0_92 = arith.constant 0 : index
    %c0_93 = arith.constant 0 : index
    %175 = vector.load %arg23[%c0_91, %c0_92, %c0_93] : memref<2x1x32xf32, #tpu.memory_space<vmem>>, vector<1x1x32xf32>
    %176 = vector.shape_cast %175 : vector<1x1x32xf32> to vector<1x32xf32>
    %177 = vector.broadcast %176 : vector<1x32xf32> to vector<32x32xf32>
    %178 = arith.addf %174, %177 : vector<32x32xf32>
    %179 = arith.addf %125, %178 : vector<32x32xf32>
    %c1 = arith.constant 1 : index
    %c0_94 = arith.constant 0 : index
    %c0_95 = arith.constant 0 : index
    %180 = vector.load %arg11[%c1, %c0_94, %c0_95] : memref<2x1x32xf32, #tpu.memory_space<vmem>>, vector<1x1x32xf32>
    %181 = vector.shape_cast %180 : vector<1x1x32xf32> to vector<1x32xf32>
    %c1_96 = arith.constant 1 : index
    %c0_97 = arith.constant 0 : index
    %c0_98 = arith.constant 0 : index
    %182 = vector.load %arg12[%c1_96, %c0_97, %c0_98] : memref<2x1x32xf32, #tpu.memory_space<vmem>>, vector<1x1x32xf32>
    %183 = vector.shape_cast %182 : vector<1x1x32xf32> to vector<1x32xf32>
    %cst_99 = arith.constant dense<0.000000e+00> : vector<32xf32>
    %184 = vector.multi_reduction <add>, %179, %cst_99 [1] : vector<32x32xf32> to vector<32xf32>
    %185 = vector.shape_cast %184 : vector<32xf32> to vector<32x1xf32>
    %cst_100 = arith.constant 3.200000e+01 : f32
    %186 = vector.broadcast %cst_100 : f32 to vector<32x1xf32>
    %187 = arith.divf %185, %186 : vector<32x1xf32>
    %188 = vector.broadcast %187 : vector<32x1xf32> to vector<32x32xf32>
    %189 = arith.subf %179, %188 : vector<32x32xf32>
    %190 = arith.mulf %189, %189 : vector<32x32xf32>
    %cst_101 = arith.constant dense<0.000000e+00> : vector<32xf32>
    %191 = vector.multi_reduction <add>, %190, %cst_101 [1] : vector<32x32xf32> to vector<32xf32>
    %192 = vector.shape_cast %191 : vector<32xf32> to vector<32x1xf32>
    %cst_102 = arith.constant 3.200000e+01 : f32
    %193 = vector.broadcast %cst_102 : f32 to vector<32x1xf32>
    %194 = arith.divf %192, %193 : vector<32x1xf32>
    %195 = vector.broadcast %187 : vector<32x1xf32> to vector<32x32xf32>
    %196 = arith.subf %179, %195 : vector<32x32xf32>
    %cst_103 = arith.constant 9.99999974E-6 : f32
    %197 = vector.broadcast %cst_103 : f32 to vector<32x1xf32>
    %198 = arith.addf %194, %197 : vector<32x1xf32>
    %199 = math.rsqrt %198 : vector<32x1xf32>
    %200 = vector.broadcast %199 : vector<32x1xf32> to vector<32x32xf32>
    %201 = arith.mulf %196, %200 : vector<32x32xf32>
    %202 = vector.broadcast %181 : vector<1x32xf32> to vector<32x32xf32>
    %203 = arith.mulf %201, %202 : vector<32x32xf32>
    %204 = vector.broadcast %183 : vector<1x32xf32> to vector<32x32xf32>
    %205 = arith.addf %203, %204 : vector<32x32xf32>
    %c1_104 = arith.constant 1 : index
    %c0_105 = arith.constant 0 : index
    %c0_106 = arith.constant 0 : index
    %206 = vector.load %arg13[%c1_104, %c0_105, %c0_106] : memref<2x32x32xf32, #tpu.memory_space<vmem>>, vector<1x32x32xf32>
    %207 = vector.shape_cast %206 : vector<1x32x32xf32> to vector<32x32xf32>
    %cst_107 = arith.constant dense<0.000000e+00> : vector<32x32xf32>
    %208 = tpu.matmul %205, %207, %cst_107 {dimension_numbers = #tpu.dot_dimension_numbers<[1], [0], [0], [1], [0, 0, 1, 1], [], []>} : vector<32x32xf32>, vector<32x32xf32>, vector<32x32xf32> -> vector<32x32xf32>
    %209 = vector.shape_cast %208 : vector<32x32xf32> to vector<2x16x32xf32>
    %c1_108 = arith.constant 1 : index
    %c0_109 = arith.constant 0 : index
    %c0_110 = arith.constant 0 : index
    %210 = vector.load %arg14[%c1_108, %c0_109, %c0_110] : memref<2x32x32xf32, #tpu.memory_space<vmem>>, vector<1x32x32xf32>
    %211 = vector.shape_cast %210 : vector<1x32x32xf32> to vector<32x32xf32>
    %cst_111 = arith.constant dense<0.000000e+00> : vector<32x32xf32>
    %212 = tpu.matmul %205, %211, %cst_111 {dimension_numbers = #tpu.dot_dimension_numbers<[1], [0], [0], [1], [0, 0, 1, 1], [], []>} : vector<32x32xf32>, vector<32x32xf32>, vector<32x32xf32> -> vector<32x32xf32>
    %213 = vector.shape_cast %212 : vector<32x32xf32> to vector<2x16x32xf32>
    %c1_112 = arith.constant 1 : index
    %c0_113 = arith.constant 0 : index
    %c0_114 = arith.constant 0 : index
    %214 = vector.load %arg15[%c1_112, %c0_113, %c0_114] : memref<2x32x32xf32, #tpu.memory_space<vmem>>, vector<1x32x32xf32>
    %215 = vector.shape_cast %214 : vector<1x32x32xf32> to vector<32x32xf32>
    %cst_115 = arith.constant dense<0.000000e+00> : vector<32x32xf32>
    %216 = tpu.matmul %205, %215, %cst_115 {dimension_numbers = #tpu.dot_dimension_numbers<[1], [0], [0], [1], [0, 0, 1, 1], [], []>} : vector<32x32xf32>, vector<32x32xf32>, vector<32x32xf32> -> vector<32x32xf32>
    %217 = vector.shape_cast %216 : vector<32x32xf32> to vector<2x16x32xf32>
    %218 = vector.extract_strided_slice %209 {offsets = [0, 0, 0], sizes = [2, 16, 8], strides = [1, 1, 1]} : vector<2x16x32xf32> to vector<2x16x8xf32>
    %219 = vector.extract_strided_slice %209 {offsets = [0, 0, 8], sizes = [2, 16, 8], strides = [1, 1, 1]} : vector<2x16x32xf32> to vector<2x16x8xf32>
    %220 = vector.extract_strided_slice %209 {offsets = [0, 0, 16], sizes = [2, 16, 8], strides = [1, 1, 1]} : vector<2x16x32xf32> to vector<2x16x8xf32>
    %221 = vector.extract_strided_slice %209 {offsets = [0, 0, 24], sizes = [2, 16, 8], strides = [1, 1, 1]} : vector<2x16x32xf32> to vector<2x16x8xf32>
    %222 = tpu.concatenate %218, %219, %220, %221 in 0 : vector<2x16x8xf32>, vector<2x16x8xf32>, vector<2x16x8xf32>, vector<2x16x8xf32> -> vector<8x16x8xf32>
    %223 = vector.extract_strided_slice %213 {offsets = [0, 0, 0], sizes = [2, 16, 8], strides = [1, 1, 1]} : vector<2x16x32xf32> to vector<2x16x8xf32>
    %224 = vector.extract_strided_slice %213 {offsets = [0, 0, 8], sizes = [2, 16, 8], strides = [1, 1, 1]} : vector<2x16x32xf32> to vector<2x16x8xf32>
    %225 = vector.extract_strided_slice %213 {offsets = [0, 0, 16], sizes = [2, 16, 8], strides = [1, 1, 1]} : vector<2x16x32xf32> to vector<2x16x8xf32>
    %226 = vector.extract_strided_slice %213 {offsets = [0, 0, 24], sizes = [2, 16, 8], strides = [1, 1, 1]} : vector<2x16x32xf32> to vector<2x16x8xf32>
    %227 = tpu.concatenate %223, %224, %225, %226 in 0 : vector<2x16x8xf32>, vector<2x16x8xf32>, vector<2x16x8xf32>, vector<2x16x8xf32> -> vector<8x16x8xf32>
    %228 = vector.extract_strided_slice %217 {offsets = [0, 0, 0], sizes = [2, 16, 8], strides = [1, 1, 1]} : vector<2x16x32xf32> to vector<2x16x8xf32>
    %229 = vector.extract_strided_slice %217 {offsets = [0, 0, 8], sizes = [2, 16, 8], strides = [1, 1, 1]} : vector<2x16x32xf32> to vector<2x16x8xf32>
    %230 = vector.extract_strided_slice %217 {offsets = [0, 0, 16], sizes = [2, 16, 8], strides = [1, 1, 1]} : vector<2x16x32xf32> to vector<2x16x8xf32>
    %231 = vector.extract_strided_slice %217 {offsets = [0, 0, 24], sizes = [2, 16, 8], strides = [1, 1, 1]} : vector<2x16x32xf32> to vector<2x16x8xf32>
    %232 = tpu.concatenate %228, %229, %230, %231 in 0 : vector<2x16x8xf32>, vector<2x16x8xf32>, vector<2x16x8xf32>, vector<2x16x8xf32> -> vector<8x16x8xf32>
    "tpu.trace_start"() <{level = 10 : i32, message = "gqd,gkd->gqk"}> : () -> ()
    %cst_116 = arith.constant dense<0.000000e+00> : vector<8x16x16xf32>
    %233 = tpu.matmul %222, %227, %cst_116 {dimension_numbers = #tpu.dot_dimension_numbers<[2], [2], [1], [1], [0, 0, 0, 1, 1, 1], [0], [0]>} : vector<8x16x8xf32>, vector<8x16x8xf32>, vector<8x16x16xf32> -> vector<8x16x16xf32>
    "tpu.trace_stop"() : () -> ()
    %cst_117 = arith.constant 0.353553385 : f32
    %234 = vector.broadcast %cst_117 : f32 to vector<8x16x16xf32>
    %235 = arith.mulf %233, %234 : vector<8x16x16xf32>
    %cst_118 = arith.constant dense<0xFF800000> : vector<8x16xf32>
    %236 = vector.multi_reduction <maximumf>, %235, %cst_118 [2] : vector<8x16x16xf32> to vector<8x16xf32>
    %237 = vector.shape_cast %236 : vector<8x16xf32> to vector<8x16x1xf32>
    %238 = vector.broadcast %237 : vector<8x16x1xf32> to vector<8x16x16xf32>
    %239 = arith.subf %235, %238 : vector<8x16x16xf32>
    %240 = math.exp %239 : vector<8x16x16xf32>
    %cst_119 = arith.constant dense<0.000000e+00> : vector<8x16xf32>
    %241 = vector.multi_reduction <add>, %240, %cst_119 [2] : vector<8x16x16xf32> to vector<8x16xf32>
    %242 = vector.shape_cast %241 : vector<8x16xf32> to vector<8x16x1xf32>
    %243 = tpu.reciprocal %242 {approx = true} : vector<8x16x1xf32> -> vector<8x16x1xf32>
    %244 = vector.broadcast %243 : vector<8x16x1xf32> to vector<8x16x16xf32>
    %245 = arith.mulf %240, %244 : vector<8x16x16xf32>
    "tpu.trace_start"() <{level = 10 : i32, message = "gqk,gkd->gqd"}> : () -> ()
    %cst_120 = arith.constant dense<0.000000e+00> : vector<8x16x8xf32>
    %246 = tpu.matmul %245, %232, %cst_120 {dimension_numbers = #tpu.dot_dimension_numbers<[2], [1], [1], [2], [0, 0, 0, 1, 1, 2], [0], [0]>} : vector<8x16x16xf32>, vector<8x16x8xf32>, vector<8x16x8xf32> -> vector<8x16x8xf32>
    "tpu.trace_stop"() : () -> ()
    %c1_121 = arith.constant 1 : index
    %c0_122 = arith.constant 0 : index
    %c0_123 = arith.constant 0 : index
    %c0_124 = arith.constant 0 : index
    %247 = vector.load %arg16[%c1_121, %c0_122, %c0_123, %c0_124] : memref<2x4x8x32xf32, #tpu.memory_space<vmem>>, vector<1x4x8x32xf32>
    %248 = vector.shape_cast %247 : vector<1x4x8x32xf32> to vector<4x8x32xf32>
    %c1_125 = arith.constant 1 : index
    %c0_126 = arith.constant 0 : index
    %c0_127 = arith.constant 0 : index
    %249 = vector.load %arg17[%c1_125, %c0_126, %c0_127] : memref<2x1x32xf32, #tpu.memory_space<vmem>>, vector<1x1x32xf32>
    %250 = vector.shape_cast %249 : vector<1x1x32xf32> to vector<1x32xf32>
    %251 = vector.extract_strided_slice %246 {offsets = [0, 0, 0], sizes = [2, 16, 8], strides = [1, 1, 1]} : vector<8x16x8xf32> to vector<2x16x8xf32>
    %252 = vector.shape_cast %251 : vector<2x16x8xf32> to vector<32x8xf32>
    %253 = vector.extract_strided_slice %248 {offsets = [0, 0, 0], sizes = [1, 8, 32], strides = [1, 1, 1]} : vector<4x8x32xf32> to vector<1x8x32xf32>
    %254 = vector.shape_cast %253 : vector<1x8x32xf32> to vector<8x32xf32>
    %cst_128 = arith.constant dense<0.000000e+00> : vector<32x32xf32>
    %255 = tpu.matmul %252, %254, %cst_128 {dimension_numbers = #tpu.dot_dimension_numbers<[1], [0], [0], [1], [0, 0, 1, 1], [], []>} : vector<32x8xf32>, vector<8x32xf32>, vector<32x32xf32> -> vector<32x32xf32>
    %256 = vector.broadcast %250 : vector<1x32xf32> to vector<32x32xf32>
    %257 = arith.addf %256, %255 : vector<32x32xf32>
    %258 = vector.extract_strided_slice %246 {offsets = [2, 0, 0], sizes = [2, 16, 8], strides = [1, 1, 1]} : vector<8x16x8xf32> to vector<2x16x8xf32>
    %259 = vector.shape_cast %258 : vector<2x16x8xf32> to vector<32x8xf32>
    %260 = vector.extract_strided_slice %248 {offsets = [1, 0, 0], sizes = [1, 8, 32], strides = [1, 1, 1]} : vector<4x8x32xf32> to vector<1x8x32xf32>
    %261 = vector.shape_cast %260 : vector<1x8x32xf32> to vector<8x32xf32>
    %cst_129 = arith.constant dense<0.000000e+00> : vector<32x32xf32>
    %262 = tpu.matmul %259, %261, %cst_129 {dimension_numbers = #tpu.dot_dimension_numbers<[1], [0], [0], [1], [0, 0, 1, 1], [], []>} : vector<32x8xf32>, vector<8x32xf32>, vector<32x32xf32> -> vector<32x32xf32>
    %263 = arith.addf %257, %262 : vector<32x32xf32>
    %264 = vector.extract_strided_slice %246 {offsets = [4, 0, 0], sizes = [2, 16, 8], strides = [1, 1, 1]} : vector<8x16x8xf32> to vector<2x16x8xf32>
    %265 = vector.shape_cast %264 : vector<2x16x8xf32> to vector<32x8xf32>
    %266 = vector.extract_strided_slice %248 {offsets = [2, 0, 0], sizes = [1, 8, 32], strides = [1, 1, 1]} : vector<4x8x32xf32> to vector<1x8x32xf32>
    %267 = vector.shape_cast %266 : vector<1x8x32xf32> to vector<8x32xf32>
    %cst_130 = arith.constant dense<0.000000e+00> : vector<32x32xf32>
    %268 = tpu.matmul %265, %267, %cst_130 {dimension_numbers = #tpu.dot_dimension_numbers<[1], [0], [0], [1], [0, 0, 1, 1], [], []>} : vector<32x8xf32>, vector<8x32xf32>, vector<32x32xf32> -> vector<32x32xf32>
    %269 = arith.addf %263, %268 : vector<32x32xf32>
    %270 = vector.extract_strided_slice %246 {offsets = [6, 0, 0], sizes = [2, 16, 8], strides = [1, 1, 1]} : vector<8x16x8xf32> to vector<2x16x8xf32>
    %271 = vector.shape_cast %270 : vector<2x16x8xf32> to vector<32x8xf32>
    %272 = vector.extract_strided_slice %248 {offsets = [3, 0, 0], sizes = [1, 8, 32], strides = [1, 1, 1]} : vector<4x8x32xf32> to vector<1x8x32xf32>
    %273 = vector.shape_cast %272 : vector<1x8x32xf32> to vector<8x32xf32>
    %cst_131 = arith.constant dense<0.000000e+00> : vector<32x32xf32>
    %274 = tpu.matmul %271, %273, %cst_131 {dimension_numbers = #tpu.dot_dimension_numbers<[1], [0], [0], [1], [0, 0, 1, 1], [], []>} : vector<32x8xf32>, vector<8x32xf32>, vector<32x32xf32> -> vector<32x32xf32>
    %275 = arith.addf %269, %274 : vector<32x32xf32>
    %276 = arith.addf %179, %275 : vector<32x32xf32>
    %c1_132 = arith.constant 1 : index
    %c0_133 = arith.constant 0 : index
    %c0_134 = arith.constant 0 : index
    %277 = vector.load %arg18[%c1_132, %c0_133, %c0_134] : memref<2x1x32xf32, #tpu.memory_space<vmem>>, vector<1x1x32xf32>
    %278 = vector.shape_cast %277 : vector<1x1x32xf32> to vector<1x32xf32>
    %c1_135 = arith.constant 1 : index
    %c0_136 = arith.constant 0 : index
    %c0_137 = arith.constant 0 : index
    %279 = vector.load %arg19[%c1_135, %c0_136, %c0_137] : memref<2x1x32xf32, #tpu.memory_space<vmem>>, vector<1x1x32xf32>
    %280 = vector.shape_cast %279 : vector<1x1x32xf32> to vector<1x32xf32>
    %cst_138 = arith.constant dense<0.000000e+00> : vector<32xf32>
    %281 = vector.multi_reduction <add>, %276, %cst_138 [1] : vector<32x32xf32> to vector<32xf32>
    %282 = vector.shape_cast %281 : vector<32xf32> to vector<32x1xf32>
    %cst_139 = arith.constant 3.200000e+01 : f32
    %283 = vector.broadcast %cst_139 : f32 to vector<32x1xf32>
    %284 = arith.divf %282, %283 : vector<32x1xf32>
    %285 = vector.broadcast %284 : vector<32x1xf32> to vector<32x32xf32>
    %286 = arith.subf %276, %285 : vector<32x32xf32>
    %287 = arith.mulf %286, %286 : vector<32x32xf32>
    %cst_140 = arith.constant dense<0.000000e+00> : vector<32xf32>
    %288 = vector.multi_reduction <add>, %287, %cst_140 [1] : vector<32x32xf32> to vector<32xf32>
    %289 = vector.shape_cast %288 : vector<32xf32> to vector<32x1xf32>
    %cst_141 = arith.constant 3.200000e+01 : f32
    %290 = vector.broadcast %cst_141 : f32 to vector<32x1xf32>
    %291 = arith.divf %289, %290 : vector<32x1xf32>
    %292 = vector.broadcast %284 : vector<32x1xf32> to vector<32x32xf32>
    %293 = arith.subf %276, %292 : vector<32x32xf32>
    %cst_142 = arith.constant 9.99999974E-6 : f32
    %294 = vector.broadcast %cst_142 : f32 to vector<32x1xf32>
    %295 = arith.addf %291, %294 : vector<32x1xf32>
    %296 = math.rsqrt %295 : vector<32x1xf32>
    %297 = vector.broadcast %296 : vector<32x1xf32> to vector<32x32xf32>
    %298 = arith.mulf %293, %297 : vector<32x32xf32>
    %299 = vector.broadcast %278 : vector<1x32xf32> to vector<32x32xf32>
    %300 = arith.mulf %298, %299 : vector<32x32xf32>
    %301 = vector.broadcast %280 : vector<1x32xf32> to vector<32x32xf32>
    %302 = arith.addf %300, %301 : vector<32x32xf32>
    %c1_143 = arith.constant 1 : index
    %c0_144 = arith.constant 0 : index
    %c0_145 = arith.constant 0 : index
    %303 = vector.load %arg20[%c1_143, %c0_144, %c0_145] : memref<2x32x64xf32, #tpu.memory_space<vmem>>, vector<1x32x64xf32>
    %304 = vector.shape_cast %303 : vector<1x32x64xf32> to vector<32x64xf32>
    %cst_146 = arith.constant dense<0.000000e+00> : vector<32x64xf32>
    %305 = tpu.matmul %302, %304, %cst_146 {dimension_numbers = #tpu.dot_dimension_numbers<[1], [0], [0], [1], [0, 0, 1, 1], [], []>} : vector<32x32xf32>, vector<32x64xf32>, vector<32x64xf32> -> vector<32x64xf32>
    %c1_147 = arith.constant 1 : index
    %c0_148 = arith.constant 0 : index
    %c0_149 = arith.constant 0 : index
    %306 = vector.load %arg21[%c1_147, %c0_148, %c0_149] : memref<2x1x64xf32, #tpu.memory_space<vmem>>, vector<1x1x64xf32>
    %307 = vector.shape_cast %306 : vector<1x1x64xf32> to vector<1x64xf32>
    %308 = vector.broadcast %307 : vector<1x64xf32> to vector<32x64xf32>
    %309 = arith.addf %305, %308 : vector<32x64xf32>
    %310 = arith.mulf %309, %309 : vector<32x64xf32>
    %311 = arith.mulf %309, %310 : vector<32x64xf32>
    %cst_150 = arith.constant 4.471500e-02 : f32
    %312 = vector.broadcast %cst_150 : f32 to vector<32x64xf32>
    %313 = arith.mulf %312, %311 : vector<32x64xf32>
    %314 = arith.addf %309, %313 : vector<32x64xf32>
    %cst_151 = arith.constant 0.797884583 : f32
    %315 = vector.broadcast %cst_151 : f32 to vector<32x64xf32>
    %316 = arith.mulf %315, %314 : vector<32x64xf32>
    %317 = math.tanh %316 : vector<32x64xf32>
    %cst_152 = arith.constant 1.000000e+00 : f32
    %318 = vector.broadcast %cst_152 : f32 to vector<32x64xf32>
    %319 = arith.addf %318, %317 : vector<32x64xf32>
    %cst_153 = arith.constant 5.000000e-01 : f32
    %320 = vector.broadcast %cst_153 : f32 to vector<32x64xf32>
    %321 = arith.mulf %320, %319 : vector<32x64xf32>
    %322 = arith.mulf %309, %321 : vector<32x64xf32>
    %c1_154 = arith.constant 1 : index
    %c0_155 = arith.constant 0 : index
    %c0_156 = arith.constant 0 : index
    %323 = vector.load %arg22[%c1_154, %c0_155, %c0_156] : memref<2x64x32xf32, #tpu.memory_space<vmem>>, vector<1x64x32xf32>
    %324 = vector.shape_cast %323 : vector<1x64x32xf32> to vector<64x32xf32>
    %cst_157 = arith.constant dense<0.000000e+00> : vector<32x32xf32>
    %325 = tpu.matmul %322, %324, %cst_157 {dimension_numbers = #tpu.dot_dimension_numbers<[1], [0], [0], [1], [0, 0, 1, 1], [], []>} : vector<32x64xf32>, vector<64x32xf32>, vector<32x32xf32> -> vector<32x32xf32>
    %c1_158 = arith.constant 1 : index
    %c0_159 = arith.constant 0 : index
    %c0_160 = arith.constant 0 : index
    %326 = vector.load %arg23[%c1_158, %c0_159, %c0_160] : memref<2x1x32xf32, #tpu.memory_space<vmem>>, vector<1x1x32xf32>
    %327 = vector.shape_cast %326 : vector<1x1x32xf32> to vector<1x32xf32>
    %328 = vector.broadcast %327 : vector<1x32xf32> to vector<32x32xf32>
    %329 = arith.addf %325, %328 : vector<32x32xf32>
    %330 = arith.addf %276, %329 : vector<32x32xf32>
    %331 = vector.shape_cast %330 : vector<32x32xf32> to vector<2x16x32xf32>
    %c0_161 = arith.constant 0 : index
    %c0_162 = arith.constant 0 : index
    %c0_163 = arith.constant 0 : index
    %332 = vector.load %arg24[%c0_161, %c0_162, %c0_163] : memref<2x16x32xf32, #tpu.memory_space<vmem>>, vector<2x16x32xf32>
    tpu.vector_store %arg24[%c0_161, %c0_162, %c0_163], %331 {strides = array<i32>} : memref<2x16x32xf32, #tpu.memory_space<vmem>>, vector<2x16x32xf32>,
    return
  }
  func.func @transform_0(%arg0: i32) -> (i32, i32) {
    %c0_i32 = arith.constant 0 : i32
    %c0_i32_0 = arith.constant 0 : i32
    %c0_i32_1 = arith.constant 0 : i32
    return %c0_i32, %c0_i32_0 : i32, i32
  }
  func.func @transform_1(%arg0: i32) -> (i32, i32) {
    %c0_i32 = arith.constant 0 : i32
    %c0_i32_0 = arith.constant 0 : i32
    %c0_i32_1 = arith.constant 0 : i32
    return %c0_i32, %c0_i32_0 : i32, i32
  }
  func.func @transform_2(%arg0: i32) -> (i32, i32) {
    %c0_i32 = arith.constant 0 : i32
    %c0_i32_0 = arith.constant 0 : i32
    %c0_i32_1 = arith.constant 0 : i32
    return %c0_i32, %c0_i32_0 : i32, i32
  }
  func.func @transform_3(%arg0: i32) -> (i32, i32) {
    %c0_i32 = arith.constant 0 : i32
    %c0_i32_0 = arith.constant 0 : i32
    %c0_i32_1 = arith.constant 0 : i32
    return %c0_i32, %c0_i32_0 : i32, i32
  }
  func.func @transform_4(%arg0: i32) -> (i32, i32) {
    %c0_i32 = arith.constant 0 : i32
    %c0_i32_0 = arith.constant 0 : i32
    %c0_i32_1 = arith.constant 0 : i32
    return %c0_i32, %c0_i32_0 : i32, i32
  }
  func.func @transform_5(%arg0: i32) -> (i32, i32) {
    %c0_i32 = arith.constant 0 : i32
    %c0_i32_0 = arith.constant 0 : i32
    %c0_i32_1 = arith.constant 0 : i32
    return %c0_i32, %c0_i32_0 : i32, i32
  }
  func.func @transform_6(%arg0: i32) -> (i32, i32) {
    %c0_i32 = arith.constant 0 : i32
    %c0_i32_0 = arith.constant 0 : i32
    %c0_i32_1 = arith.constant 0 : i32
    return %c0_i32, %c0_i32_0 : i32, i32
  }
  func.func @transform_7(%arg0: i32) -> (i32, i32) {
    %c0_i32 = arith.constant 0 : i32
    %c0_i32_0 = arith.constant 0 : i32
    %c0_i32_1 = arith.constant 0 : i32
    return %c0_i32, %c0_i32_0 : i32, i32
  }
  func.func @transform_8(%arg0: i32) -> (i32, i32) {
    %c0_i32 = arith.constant 0 : i32
    %c0_i32_0 = arith.constant 0 : i32
    %c0_i32_1 = arith.constant 0 : i32
    return %c0_i32, %c0_i32_0 : i32, i32
  }
  func.func @transform_9(%arg0: i32) -> (i32, i32) {
    %c0_i32 = arith.constant 0 : i32
    %c0_i32_0 = arith.constant 0 : i32
    %c0_i32_1 = arith.constant 0 : i32
    return %c0_i32, %c0_i32_0 : i32, i32
  }
  func.func @transform_10(%arg0: i32) -> (i32, i32, i32) {
    %c0_i32 = arith.constant 0 : i32
    %c0_i32_0 = arith.constant 0 : i32
    %c0_i32_1 = arith.constant 0 : i32
    %c0_i32_2 = arith.constant 0 : i32
    return %c0_i32, %c0_i32_0, %c0_i32_1 : i32, i32, i32
  }
  func.func @transform_11(%arg0: i32) -> (i32, i32, i32) {
    %c0_i32 = arith.constant 0 : i32
    %c0_i32_0 = arith.constant 0 : i32
    %c0_i32_1 = arith.constant 0 : i32
    %c0_i32_2 = arith.constant 0 : i32
    return %c0_i32, %c0_i32_0, %c0_i32_1 : i32, i32, i32
  }
  func.func @transform_12(%arg0: i32) -> (i32, i32, i32) {
    %c0_i32 = arith.constant 0 : i32
    %c0_i32_0 = arith.constant 0 : i32
    %c0_i32_1 = arith.constant 0 : i32
    %c0_i32_2 = arith.constant 0 : i32
    return %c0_i32, %c0_i32_0, %c0_i32_1 : i32, i32, i32
  }
  func.func @transform_13(%arg0: i32) -> (i32, i32, i32) {
    %c0_i32 = arith.constant 0 : i32
    %c0_i32_0 = arith.constant 0 : i32
    %c0_i32_1 = arith.constant 0 : i32
    %c0_i32_2 = arith.constant 0 : i32
    return %c0_i32, %c0_i32_0, %c0_i32_1 : i32, i32, i32
  }
  func.func @transform_14(%arg0: i32) -> (i32, i32, i32) {
    %c0_i32 = arith.constant 0 : i32
    %c0_i32_0 = arith.constant 0 : i32
    %c0_i32_1 = arith.constant 0 : i32
    %c0_i32_2 = arith.constant 0 : i32
    return %c0_i32, %c0_i32_0, %c0_i32_1 : i32, i32, i32
  }
  func.func @transform_15(%arg0: i32) -> (i32, i32, i32, i32) {
    %c0_i32 = arith.constant 0 : i32
    %c0_i32_0 = arith.constant 0 : i32
    %c0_i32_1 = arith.constant 0 : i32
    %c0_i32_2 = arith.constant 0 : i32
    %c0_i32_3 = arith.constant 0 : i32
    return %c0_i32, %c0_i32_0, %c0_i32_1, %c0_i32_2 : i32, i32, i32, i32
  }
  func.func @transform_16(%arg0: i32) -> (i32, i32, i32) {
    %c0_i32 = arith.constant 0 : i32
    %c0_i32_0 = arith.constant 0 : i32
    %c0_i32_1 = arith.constant 0 : i32
    %c0_i32_2 = arith.constant 0 : i32
    return %c0_i32, %c0_i32_0, %c0_i32_1 : i32, i32, i32
  }
  func.func @transform_17(%arg0: i32) -> (i32, i32, i32) {
    %c0_i32 = arith.constant 0 : i32
    %c0_i32_0 = arith.constant 0 : i32
    %c0_i32_1 = arith.constant 0 : i32
    %c0_i32_2 = arith.constant 0 : i32
    return %c0_i32, %c0_i32_0, %c0_i32_1 : i32, i32, i32
  }
  func.func @transform_18(%arg0: i32) -> (i32, i32, i32) {
    %c0_i32 = arith.constant 0 : i32
    %c0_i32_0 = arith.constant 0 : i32
    %c0_i32_1 = arith.constant 0 : i32
    %c0_i32_2 = arith.constant 0 : i32
    return %c0_i32, %c0_i32_0, %c0_i32_1 : i32, i32, i32
  }
  func.func @transform_19(%arg0: i32) -> (i32, i32, i32) {
    %c0_i32 = arith.constant 0 : i32
    %c0_i32_0 = arith.constant 0 : i32
    %c0_i32_1 = arith.constant 0 : i32
    %c0_i32_2 = arith.constant 0 : i32
    return %c0_i32, %c0_i32_0, %c0_i32_1 : i32, i32, i32
  }
  func.func @transform_20(%arg0: i32) -> (i32, i32, i32) {
    %c0_i32 = arith.constant 0 : i32
    %c0_i32_0 = arith.constant 0 : i32
    %c0_i32_1 = arith.constant 0 : i32
    %c0_i32_2 = arith.constant 0 : i32
    return %c0_i32, %c0_i32_0, %c0_i32_1 : i32, i32, i32
  }
  func.func @transform_21(%arg0: i32) -> (i32, i32, i32) {
    %c0_i32 = arith.constant 0 : i32
    %c0_i32_0 = arith.constant 0 : i32
    %c0_i32_1 = arith.constant 0 : i32
    %c0_i32_2 = arith.constant 0 : i32
    return %c0_i32, %c0_i32_0, %c0_i32_1 : i32, i32, i32
  }
  func.func @transform_22(%arg0: i32) -> (i32, i32, i32) {
    %c0_i32 = arith.constant 0 : i32
    %c0_i32_0 = arith.constant 0 : i32
    %c0_i32_1 = arith.constant 0 : i32
    %c0_i32_2 = arith.constant 0 : i32
    return %c0_i32, %c0_i32_0, %c0_i32_1 : i32, i32, i32
  }
  func.func @transform_23(%arg0: i32) -> (i32, i32, i32) {
    %c0_i32 = arith.constant 0 : i32
    %c0_i32_0 = arith.constant 0 : i32
    %c0_i32_1 = arith.constant 0 : i32
    %c0_i32_2 = arith.constant 0 : i32
    return %c0_i32, %c0_i32_0, %c0_i32_1 : i32, i32, i32
  }
}

</mosaic_0001>

<llo_original>
// kernel: vision_transformer_forward.1
$region0: #{vision_transformer_forward.1}
  #allocation0 [shape = 'u32[]', space=smem, size = 0x4, offset = 0x4, fixed_abs, tag = 'smem constant byte address 0x4 - core index']
  #allocation1 [shape = 'u32[72,128]{1,0:T(1,128)}', space=vmem, size = 0x9000, scoped, tag = 'internal scratch']
  %s0 = inlined_call_operand.hbm [shape: f32[16,16], index: 0, kind: input, shape index: {}]
  %s1 = inlined_call_operand.vmem [shape: f32[14,6], index: 1, kind: input, shape index: {}]
  %s2 = inlined_call_operand.vmem [shape: s32[14,1], index: 2, kind: input, shape index: {}]
  %s3 = inlined_call_operand.hbm [shape: f32[32,16], index: 3, kind: input, shape index: {}]
  %s4 = inlined_call_operand.hbm [shape: f32[32,14], index: 4, kind: input, shape index: {}]
  %s5 = inlined_call_operand.hbm [shape: f32[16,32], index: 5, kind: input, shape index: {}]
  %s6 = inlined_call_operand.vmem [shape: f32[6,32], index: 6, kind: input, shape index: {}]
  %s7 = inlined_call_operand.hbm [shape: f32[10,32], index: 7, kind: input, shape index: {}]
  %s8 = inlined_call_operand.hbm [shape: f32[12,10], index: 8, kind: input, shape index: {}]
  %s9 = inlined_call_operand.hbm [shape: f32[16,32], index: 9, kind: input, shape index: {}]
  %s10 = inlined_call_operand.hbm [shape: f32[2,1,32], index: 10, kind: input, shape index: {}]
  %s11 = inlined_call_operand.hbm [shape: f32[2,1,32], index: 11, kind: input, shape index: {}]
  %s12 = inlined_call_operand.vmem [shape: f32[2,32,32], index: 12, kind: input, shape index: {}]
  %s13 = inlined_call_operand.vmem [shape: f32[2,32,32], index: 13, kind: input, shape index: {}]
  %s14 = inlined_call_operand.vmem [shape: f32[2,32,32], index: 14, kind: input, shape index: {}]
  %s15 = inlined_call_operand.hbm [shape: f32[2,4,8,32], index: 15, kind: input, shape index: {}]
  %s16 = inlined_call_operand.hbm [shape: f32[2,1,32], index: 16, kind: input, shape index: {}]
  %s17 = inlined_call_operand.hbm [shape: f32[2,1,32], index: 17, kind: input, shape index: {}]
  %s18 = inlined_call_operand.hbm [shape: f32[2,1,32], index: 18, kind: input, shape index: {}]
  %s19 = inlined_call_operand.hbm [shape: f32[2,32,64], index: 19, kind: input, shape index: {}]
  %s20 = inlined_call_operand.hbm [shape: f32[2,1,64], index: 20, kind: input, shape index: {}]
  %s21 = inlined_call_operand.vmem [shape: f32[2,64,32], index: 21, kind: input, shape index: {}]
  %s22 = inlined_call_operand.hbm [shape: f32[2,1,32], index: 22, kind: input, shape index: {}]
  %s23 = inlined_call_operand.hbm [shape: f32[2,16,32], index: 23, kind: output, shape index: {}]
  %s24 = sld [smem:[#allocation0]]
  $region166: #{vision_transformer_forward.1} parent=0
    _
  %s26 = ssub.s32 1, %s24
  %s27 = scalar_select 0, %s26, %s24
  $region1: #{vision_transformer_forward.1} parent=0
    #allocation2 [shape = 'u8[8192]{0}', space=vmem, size = 0x2000, scoped, tag = 'input window, operand 0, single buffered']
    #allocation3 [shape = 's32[1]{0}', space=sflag, size = 0x4, scoped, tag = 'scoped memory for vision_transformer_forward.1']
    #allocation4 [shape = 's32[1]{0}', space=sflag, size = 0x4, scoped, tag = 'scoped memory for vision_transformer_forward.1']
    #allocation5 [shape = 'u8[16384]{0}', space=vmem, size = 0x4000, scoped, tag = 'input window, operand 3, single buffered']
    #allocation6 [shape = 's32[1]{0}', space=sflag, size = 0x4, scoped, tag = 'scoped memory for vision_transformer_forward.1']
    #allocation7 [shape = 'u8[16384]{0}', space=vmem, size = 0x4000, scoped, tag = 'input window, operand 4, single buffered']
    #allocation8 [shape = 'u8[8192]{0}', space=vmem, size = 0x2000, scoped, tag = 'input window, operand 5, single buffered']
    #allocation9 [shape = 's32[1]{0}', space=sflag, size = 0x4, scoped, tag = 'scoped memory for vision_transformer_forward.1']
    #allocation10 [shape = 'u8[8192]{0}', space=vmem, size = 0x2000, scoped, tag = 'input window, operand 7, single buffered']
    #allocation11 [shape = 'u8[8192]{0}', space=vmem, size = 0x2000, scoped, tag = 'input window, operand 8, single buffered']
    #allocation12 [shape = 's32[1]{0}', space=sflag, size = 0x4, scoped, tag = 'scoped memory for vision_transformer_forward.1']
    #allocation13 [shape = 'u8[8192]{0}', space=vmem, size = 0x2000, scoped, tag = 'input window, operand 9, single buffered']
    #allocation14 [shape = 'u8[1024]{0}', space=vmem, size = 0x400, scoped, tag = 'input window, operand 10, single buffered']
    #allocation15 [shape = 's32[1]{0}', space=sflag, size = 0x4, scoped, tag = 'scoped memory for vision_transformer_forward.1']
    #allocation16 [shape = 'u8[1024]{0}', space=vmem, size = 0x400, scoped, tag = 'input window, operand 11, single buffered']
    #allocation17 [shape = 'u8[32768]{0}', space=vmem, size = 0x8000, scoped, tag = 'input window, operand 15, single buffered']
    #allocation18 [shape = 's32[1]{0}', space=sflag, size = 0x4, scoped, tag = 'scoped memory for vision_transformer_forward.1']
    #allocation19 [shape = 'u8[1024]{0}', space=vmem, size = 0x400, scoped, tag = 'input window, operand 16, single buffered']
    #allocation20 [shape = 'u8[1024]{0}', space=vmem, size = 0x400, scoped, tag = 'input window, operand 17, single buffered']
    #allocation21 [shape = 's32[1]{0}', space=sflag, size = 0x4, scoped, tag = 'scoped memory for vision_transformer_forward.1']
    #allocation22 [shape = 'u8[1024]{0}', space=vmem, size = 0x400, scoped, tag = 'input window, operand 18, single buffered']
    #allocation23 [shape = 'u8[32768]{0}', space=vmem, size = 0x8000, scoped, tag = 'input window, operand 19, single buffered']
    #allocation24 [shape = 's32[1]{0}', space=sflag, size = 0x4, scoped, tag = 'scoped memory for vision_transformer_forward.1']
    #allocation25 [shape = 'u8[1024]{0}', space=vmem, size = 0x400, scoped, tag = 'input window, operand 20, single buffered']
    #allocation26 [shape = 'u8[1024]{0}', space=vmem, size = 0x400, scoped, tag = 'input window, operand 22, single buffered']
    #allocation27 [shape = 's32[1]{0}', space=sflag, size = 0x4, scoped, tag = 'scoped memory for vision_transformer_forward.1']
    #allocation28 [shape = 'u8[16384]{0}', space=vmem, size = 0x4000, scoped, tag = 'output window, operand 0, single buffered']
    %28 = vsyncpa [#allocation3], 0
    %29 = vsyncpa [#allocation6], 0
    %30 = vsyncpa [#allocation9], 0
    %31 = vsyncpa [#allocation12], 0
    %32 = vsyncpa [#allocation15], 0
    %33 = vsyncpa [#allocation18], 0
    %34 = vsyncpa [#allocation21], 0
    %35 = vsyncpa [#allocation24], 0
    %36 = vsyncpa [#allocation27], 0
    %37 = vsyncpa [#allocation4], 0
    // Predicated region
    $region2: #{vision_transformer_forward.1} parent=1 // pred_check
      _
    $region3: #{vision_transformer_forward.1} parent=1 // pred_check_branch
      %39 = sbr.rel (0) target = $region5
    $region4: #{vision_transformer_forward.1} parent=1 // pred_region
      %41 = vsyncadd [#allocation3], 0
      %s42 = sshll.u32 %s0, 4
      %s43 = int_to_ptr.hbm [resolvable:$true] %s42
      %s44 = sshll.u32 [#allocation2], 4
      %s45 = int_to_ptr.vmem [resolvable:$true] %s44
      %50 = dma.hbm_to_vmem [thread:$0]  %s43, 256, %s45, [#allocation3], 128, 128, 8
    $region5: #{vision_transformer_forward.1} parent=1 // pred_fallthru
      _
    // Predicated region
    $region6: #{vision_transformer_forward.1} parent=1 // pred_check
      _
    $region7: #{vision_transformer_forward.1} parent=1 // pred_check_branch
      %52 = sbr.rel (0) target = $region9
    $region8: #{vision_transformer_forward.1} parent=1 // pred_region
      _
    $region9: #{vision_transformer_forward.1} parent=1 // pred_fallthru
      _
    // Predicated region
    $region10: #{vision_transformer_forward.1} parent=1 // pred_check
      _
    $region11: #{vision_transformer_forward.1} parent=1 // pred_check_branch
      %54 = sbr.rel (0) target = $region13
    $region12: #{vision_transformer_forward.1} parent=1 // pred_region
      _
    $region13: #{vision_transformer_forward.1} parent=1 // pred_fallthru
      _
    // Predicated region
    $region14: #{vision_transformer_forward.1} parent=1 // pred_check
      _
    $region15: #{vision_transformer_forward.1} parent=1 // pred_check_branch
      %56 = sbr.rel (0) target = $region17
    $region16: #{vision_transformer_forward.1} parent=1 // pred_region
      %58 = vsyncadd [#allocation6], 0
      %s59 = sshll.u32 %s3, 4
      %s60 = int_to_ptr.hbm [resolvable:$true] %s59
      %s61 = sshll.u32 [#allocation5], 4
      %s62 = int_to_ptr.vmem [resolvable:$true] %s61
      %67 = dma.hbm_to_vmem [thread:$0]  %s60, 512, %s62, [#allocation6], 128, 128, 8
    $region17: #{vision_transformer_forward.1} parent=1 // pred_fallthru
      _
    // Predicated region
    $region18: #{vision_transformer_forward.1} parent=1 // pred_check
      _
    $region19: #{vision_transformer_forward.1} parent=1 // pred_check_branch
      %69 = sbr.rel (0) target = $region21
    $region20: #{vision_transformer_forward.1} parent=1 // pred_region
      %71 = vsyncadd [#allocation6], 0
      %s72 = sshll.u32 %s4, 4
      %s73 = int_to_ptr.hbm [resolvable:$true] %s72
      %s74 = sshll.u32 [#allocation7], 4
      %s75 = int_to_ptr.vmem [resolvable:$true] %s74
      %80 = dma.hbm_to_vmem [thread:$0]  %s73, 512, %s75, [#allocation6], 128, 128, 8
    $region21: #{vision_transformer_forward.1} parent=1 // pred_fallthru
      _
    // Predicated region
    $region22: #{vision_transformer_forward.1} parent=1 // pred_check
      _
    $region23: #{vision_transformer_forward.1} parent=1 // pred_check_branch
      %82 = sbr.rel (0) target = $region25
    $region24: #{vision_transformer_forward.1} parent=1 // pred_region
      %84 = vsyncadd [#allocation9], 0
      %s85 = sshll.u32 %s5, 4
      %s86 = int_to_ptr.hbm [resolvable:$true] %s85
      %s87 = sshll.u32 [#allocation8], 4
      %s88 = int_to_ptr.vmem [resolvable:$true] %s87
      %93 = dma.hbm_to_vmem [thread:$0]  %s86, 256, %s88, [#allocation9], 128, 128, 8
    $region25: #{vision_transformer_forward.1} parent=1 // pred_fallthru
      _
    // Predicated region
    $region26: #{vision_transformer_forward.1} parent=1 // pred_check
      _
    $region27: #{vision_transformer_forward.1} parent=1 // pred_check_branch
      %95 = sbr.rel (0) target = $region29
    $region28: #{vision_transformer_forward.1} parent=1 // pred_region
      _
    $region29: #{vision_transformer_forward.1} parent=1 // pred_fallthru
      _
    // Predicated region
    $region30: #{vision_transformer_forward.1} parent=1 // pred_check
      _
    $region31: #{vision_transformer_forward.1} parent=1 // pred_check_branch
      %97 = sbr.rel (0) target = $region33
    $region32: #{vision_transformer_forward.1} parent=1 // pred_region
      %99 = vsyncadd [#allocation9], 0
      %s100 = sshll.u32 %s7, 4
      %s101 = int_to_ptr.hbm [resolvable:$true] %s100
      %s102 = sshll.u32 [#allocation10], 4
      %s103 = int_to_ptr.vmem [resolvable:$true] %s102
      %108 = dma.hbm_to_vmem [thread:$0]  %s101, 256, %s103, [#allocation9], 128, 128, 8
    $region33: #{vision_transformer_forward.1} parent=1 // pred_fallthru
      _
    // Predicated region
    $region34: #{vision_transformer_forward.1} parent=1 // pred_check
      _
    $region35: #{vision_transformer_forward.1} parent=1 // pred_check_branch
      %110 = sbr.rel (0) target = $region37
    $region36: #{vision_transformer_forward.1} parent=1 // pred_region
      %112 = vsyncadd [#allocation12], 0
      %s113 = sshll.u32 %s8, 4
      %s114 = int_to_ptr.hbm [resolvable:$true] %s113
      %s115 = sshll.u32 [#allocation11], 4
      %s116 = int_to_ptr.vmem [resolvable:$true] %s115
      %121 = dma.hbm_to_vmem [thread:$0]  %s114, 256, %s116, [#allocation12], 128, 128, 8
    $region37: #{vision_transformer_forward.1} parent=1 // pred_fallthru
      _
    // Predicated region
    $region38: #{vision_transformer_forward.1} parent=1 // pred_check
      _
    $region39: #{vision_transformer_forward.1} parent=1 // pred_check_branch
      %123 = sbr.rel (0) target = $region41
    $region40: #{vision_transformer_forward.1} parent=1 // pred_region
      %125 = vsyncadd [#allocation12], 0
      %s126 = sshll.u32 %s9, 4
      %s127 = int_to_ptr.hbm [resolvable:$true] %s126
      %s128 = sshll.u32 [#allocation13], 4
      %s129 = int_to_ptr.vmem [resolvable:$true] %s128
      %134 = dma.hbm_to_vmem [thread:$0]  %s127, 256, %s129, [#allocation12], 128, 128, 8
    $region41: #{vision_transformer_forward.1} parent=1 // pred_fallthru
      _
    // Predicated region
    $region42: #{vision_transformer_forward.1} parent=1 // pred_check
      _
    $region43: #{vision_transformer_forward.1} parent=1 // pred_check_branch
      %136 = sbr.rel (0) target = $region45
    $region44: #{vision_transformer_forward.1} parent=1 // pred_region
      %138 = vsyncadd [#allocation15], 0
      %s139 = sshll.u32 %s10, 4
      %s140 = int_to_ptr.hbm [resolvable:$true] %s139
      %s141 = sshll.u32 [#allocation14], 4
      %s142 = int_to_ptr.vmem [resolvable:$true] %s141
      %147 = dma.hbm_to_vmem [thread:$0]  %s140, 32, %s142, [#allocation15], 16, 16, 1
    $region45: #{vision_transformer_forward.1} parent=1 // pred_fallthru
      _
    // Predicated region
    $region46: #{vision_transformer_forward.1} parent=1 // pred_check
      _
    $region47: #{vision_transformer_forward.1} parent=1 // pred_check_branch
      %149 = sbr.rel (0) target = $region49
    $region48: #{vision_transformer_forward.1} parent=1 // pred_region
      %151 = vsyncadd [#allocation15], 0
      %s152 = sshll.u32 %s11, 4
      %s153 = int_to_ptr.hbm [resolvable:$true] %s152
      %s154 = sshll.u32 [#allocation16], 4
      %s155 = int_to_ptr.vmem [resolvable:$true] %s154
      %160 = dma.hbm_to_vmem [thread:$0]  %s153, 32, %s155, [#allocation15], 16, 16, 1
    $region49: #{vision_transformer_forward.1} parent=1 // pred_fallthru
      _
    // Predicated region
    $region50: #{vision_transformer_forward.1} parent=1 // pred_check
      _
    $region51: #{vision_transformer_forward.1} parent=1 // pred_check_branch
      %162 = sbr.rel (0) target = $region53
    $region52: #{vision_transformer_forward.1} parent=1 // pred_region
      _
    $region53: #{vision_transformer_forward.1} parent=1 // pred_fallthru
      _
    // Predicated region
    $region54: #{vision_transformer_forward.1} parent=1 // pred_check
      _
    $region55: #{vision_transformer_forward.1} parent=1 // pred_check_branch
      %164 = sbr.rel (0) target = $region57
    $region56: #{vision_transformer_forward.1} parent=1 // pred_region
      _
    $region57: #{vision_transformer_forward.1} parent=1 // pred_fallthru
      _
    // Predicated region
    $region58: #{vision_transformer_forward.1} parent=1 // pred_check
      _
    $region59: #{vision_transformer_forward.1} parent=1 // pred_check_branch
      %166 = sbr.rel (0) target = $region61
    $region60: #{vision_transformer_forward.1} parent=1 // pred_region
      _
    $region61: #{vision_transformer_forward.1} parent=1 // pred_fallthru
      _
    // Predicated region
    $region62: #{vision_transformer_forward.1} parent=1 // pred_check
      _
    $region63: #{vision_transformer_forward.1} parent=1 // pred_check_branch
      %168 = sbr.rel (0) target = $region65
    $region64: #{vision_transformer_forward.1} parent=1 // pred_region
      %170 = vsyncadd [#allocation18], 0
      %s171 = sshll.u32 %s15, 4
      %s172 = int_to_ptr.hbm [resolvable:$true] %s171
      %s173 = sshll.u32 [#allocation17], 4
      %s174 = int_to_ptr.vmem [resolvable:$true] %s173
      %179 = dma.hbm_to_vmem [thread:$0]  %s172, 1024, %s174, [#allocation18], 128, 128, 8
    $region65: #{vision_transformer_forward.1} parent=1 // pred_fallthru
      _
    // Predicated region
    $region66: #{vision_transformer_forward.1} parent=1 // pred_check
      _
    $region67: #{vision_transformer_forward.1} parent=1 // pred_check_branch
      %181 = sbr.rel (0) target = $region69
    $region68: #{vision_transformer_forward.1} parent=1 // pred_region
      %183 = vsyncadd [#allocation18], 0
      %s184 = sshll.u32 %s16, 4
      %s185 = int_to_ptr.hbm [resolvable:$true] %s184
      %s186 = sshll.u32 [#allocation19], 4
      %s187 = int_to_ptr.vmem [resolvable:$true] %s186
      %192 = dma.hbm_to_vmem [thread:$0]  %s185, 32, %s187, [#allocation18], 16, 16, 1
    $region69: #{vision_transformer_forward.1} parent=1 // pred_fallthru
      _
    // Predicated region
    $region70: #{vision_transformer_forward.1} parent=1 // pred_check
      _
    $region71: #{vision_transformer_forward.1} parent=1 // pred_check_branch
      %194 = sbr.rel (0) target = $region73
    $region72: #{vision_transformer_forward.1} parent=1 // pred_region
      %196 = vsyncadd [#allocation21], 0
      %s197 = sshll.u32 %s17, 4
      %s198 = int_to_ptr.hbm [resolvable:$true] %s197
      %s199 = sshll.u32 [#allocation20], 4
      %s200 = int_to_ptr.vmem [resolvable:$true] %s199
      %205 = dma.hbm_to_vmem [thread:$0]  %s198, 32, %s200, [#allocation21], 16, 16, 1
    $region73: #{vision_transformer_forward.1} parent=1 // pred_fallthru
      _
    // Predicated region
    $region74: #{vision_transformer_forward.1} parent=1 // pred_check
      _
    $region75: #{vision_transformer_forward.1} parent=1 // pred_check_branch
      %207 = sbr.rel (0) target = $region77
    $region76: #{vision_transformer_forward.1} parent=1 // pred_region
      %209 = vsyncadd [#allocation21], 0
      %s210 = sshll.u32 %s18, 4
      %s211 = int_to_ptr.hbm [resolvable:$true] %s210
      %s212 = sshll.u32 [#allocation22], 4
      %s213 = int_to_ptr.vmem [resolvable:$true] %s212
      %218 = dma.hbm_to_vmem [thread:$0]  %s211, 32, %s213, [#allocation21], 16, 16, 1
    $region77: #{vision_transformer_forward.1} parent=1 // pred_fallthru
      _
    // Predicated region
    $region78: #{vision_transformer_forward.1} parent=1 // pred_check
      _
    $region79: #{vision_transformer_forward.1} parent=1 // pred_check_branch
      %220 = sbr.rel (0) target = $region81
    $region80: #{vision_transformer_forward.1} parent=1 // pred_region
      %222 = vsyncadd [#allocation24], 0
      %s223 = sshll.u32 %s19, 4
      %s224 = int_to_ptr.hbm [resolvable:$true] %s223
      %s225 = sshll.u32 [#allocation23], 4
      %s226 = int_to_ptr.vmem [resolvable:$true] %s225
      %231 = dma.hbm_to_vmem [thread:$0]  %s224, 1024, %s226, [#allocation24], 128, 128, 8
    $region81: #{vision_transformer_forward.1} parent=1 // pred_fallthru
      _
    // Predicated region
    $region82: #{vision_transformer_forward.1} parent=1 // pred_check
      _
    $region83: #{vision_transformer_forward.1} parent=1 // pred_check_branch
      %233 = sbr.rel (0) target = $region85
    $region84: #{vision_transformer_forward.1} parent=1 // pred_region
      %235 = vsyncadd [#allocation24], 0
      %s236 = sshll.u32 %s20, 4
      %s237 = int_to_ptr.hbm [resolvable:$true] %s236
      %s238 = sshll.u32 [#allocation25], 4
      %s239 = int_to_ptr.vmem [resolvable:$true] %s238
      %244 = dma.hbm_to_vmem [thread:$0]  %s237, 32, %s239, [#allocation24], 16, 16, 1
    $region85: #{vision_transformer_forward.1} parent=1 // pred_fallthru
      _
    // Predicated region
    $region86: #{vision_transformer_forward.1} parent=1 // pred_check
      _
    $region87: #{vision_transformer_forward.1} parent=1 // pred_check_branch
      %246 = sbr.rel (0) target = $region89
    $region88: #{vision_transformer_forward.1} parent=1 // pred_region
      _
    $region89: #{vision_transformer_forward.1} parent=1 // pred_fallthru
      _
    // Predicated region
    $region90: #{vision_transformer_forward.1} parent=1 // pred_check
      _
    $region91: #{vision_transformer_forward.1} parent=1 // pred_check_branch
      %248 = sbr.rel (0) target = $region93
    $region92: #{vision_transformer_forward.1} parent=1 // pred_region
      %250 = vsyncadd [#allocation27], 0
      %s251 = sshll.u32 %s22, 4
      %s252 = int_to_ptr.hbm [resolvable:$true] %s251
      %s253 = sshll.u32 [#allocation26], 4
      %s254 = int_to_ptr.vmem [resolvable:$true] %s253
      %259 = dma.hbm_to_vmem [thread:$0]  %s252, 32, %s254, [#allocation27], 16, 16, 1
    $region93: #{vision_transformer_forward.1} parent=1 // pred_fallthru
      _
    // Predicated region
    $region94: #{vision_transformer_forward.1} parent=1 // pred_check
      _
    $region95: #{vision_transformer_forward.1} parent=1 // pred_check_branch
      %261 = sbr.rel (0) target = $region97
    $region96: #{vision_transformer_forward.1} parent=1 // pred_region
      %263 = dma.done [#allocation3], 256
    $region97: #{vision_transformer_forward.1} parent=1 // pred_fallthru
      _
    // Predicated region
    $region98: #{vision_transformer_forward.1} parent=1 // pred_check
      _
    $region99: #{vision_transformer_forward.1} parent=1 // pred_check_branch
      %265 = sbr.rel (0) target = $region101
    $region100: #{vision_transformer_forward.1} parent=1 // pred_region
      %267 = dma.done [#allocation6], 512
    $region101: #{vision_transformer_forward.1} parent=1 // pred_fallthru
      _
    // Predicated region
    $region102: #{vision_transformer_forward.1} parent=1 // pred_check
      _
    $region103: #{vision_transformer_forward.1} parent=1 // pred_check_branch
      %269 = sbr.rel (0) target = $region105
    $region104: #{vision_transformer_forward.1} parent=1 // pred_region
      %271 = dma.done [#allocation6], 512
    $region105: #{vision_transformer_forward.1} parent=1 // pred_fallthru
      _
    // Predicated region
    $region106: #{vision_transformer_forward.1} parent=1 // pred_check
      _
    $region107: #{vision_transformer_forward.1} parent=1 // pred_check_branch
      %273 = sbr.rel (0) target = $region109
    $region108: #{vision_transformer_forward.1} parent=1 // pred_region
      %275 = dma.done [#allocation9], 256
    $region109: #{vision_transformer_forward.1} parent=1 // pred_fallthru
      _
    // Predicated region
    $region110: #{vision_transformer_forward.1} parent=1 // pred_check
      _
    $region111: #{vision_transformer_forward.1} parent=1 // pred_check_branch
      %277 = sbr.rel (0) target = $region113
    $region112: #{vision_transformer_forward.1} parent=1 // pred_region
      %279 = dma.done [#allocation9], 256
    $region113: #{vision_transformer_forward.1} parent=1 // pred_fallthru
      _
    // Predicated region
    $region114: #{vision_transformer_forward.1} parent=1 // pred_check
      _
    $region115: #{vision_transformer_forward.1} parent=1 // pred_check_branch
      %281 = sbr.rel (0) target = $region117
    $region116: #{vision_transformer_forward.1} parent=1 // pred_region
      %283 = dma.done [#allocation12], 256
    $region117: #{vision_transformer_forward.1} parent=1 // pred_fallthru
      _
    // Predicated region
    $region118: #{vision_transformer_forward.1} parent=1 // pred_check
      _
    $region119: #{vision_transformer_forward.1} parent=1 // pred_check_branch
      %285 = sbr.rel (0) target = $region121
    $region120: #{vision_transformer_forward.1} parent=1 // pred_region
      %287 = dma.done [#allocation12], 256
    $region121: #{vision_transformer_forward.1} parent=1 // pred_fallthru
      _
    // Predicated region
    $region122: #{vision_transformer_forward.1} parent=1 // pred_check
      _
    $region123: #{vision_transformer_forward.1} parent=1 // pred_check_branch
      %289 = sbr.rel (0) target = $region125
    $region124: #{vision_transformer_forward.1} parent=1 // pred_region
      %291 = dma.done [#allocation15], 32
    $region125: #{vision_transformer_forward.1} parent=1 // pred_fallthru
      _
    // Predicated region
    $region126: #{vision_transformer_forward.1} parent=1 // pred_check
      _
    $region127: #{vision_transformer_forward.1} parent=1 // pred_check_branch
      %293 = sbr.rel (0) target = $region129
    $region128: #{vision_transformer_forward.1} parent=1 // pred_region
      %295 = dma.done [#allocation15], 32
    $region129: #{vision_transformer_forward.1} parent=1 // pred_fallthru
      _
    // Predicated region
    $region130: #{vision_transformer_forward.1} parent=1 // pred_check
      _
    $region131: #{vision_transformer_forward.1} parent=1 // pred_check_branch
      %297 = sbr.rel (0) target = $region133
    $region132: #{vision_transformer_forward.1} parent=1 // pred_region
      %299 = dma.done [#allocation18], 1024
    $region133: #{vision_transformer_forward.1} parent=1 // pred_fallthru
      _
    // Predicated region
    $region134: #{vision_transformer_forward.1} parent=1 // pred_check
      _
    $region135: #{vision_transformer_forward.1} parent=1 // pred_check_branch
      %301 = sbr.rel (0) target = $region137
    $region136: #{vision_transformer_forward.1} parent=1 // pred_region
      %303 = dma.done [#allocation18], 32
    $region137: #{vision_transformer_forward.1} parent=1 // pred_fallthru
      _
    // Predicated region
    $region138: #{vision_transformer_forward.1} parent=1 // pred_check
      _
    $region139: #{vision_transformer_forward.1} parent=1 // pred_check_branch
      %305 = sbr.rel (0) target = $region141
    $region140: #{vision_transformer_forward.1} parent=1 // pred_region
      %307 = dma.done [#allocation21], 32
    $region141: #{vision_transformer_forward.1} parent=1 // pred_fallthru
      _
    // Predicated region
    $region142: #{vision_transformer_forward.1} parent=1 // pred_check
      _
    $region143: #{vision_transformer_forward.1} parent=1 // pred_check_branch
      %309 = sbr.rel (0) target = $region145
    $region144: #{vision_transformer_forward.1} parent=1 // pred_region
      %311 = dma.done [#allocation21], 32
    $region145: #{vision_transformer_forward.1} parent=1 // pred_fallthru
      _
    // Predicated region
    $region146: #{vision_transformer_forward.1} parent=1 // pred_check
      _
    $region147: #{vision_transformer_forward.1} parent=1 // pred_check_branch
      %313 = sbr.rel (0) target = $region149
    $region148: #{vision_transformer_forward.1} parent=1 // pred_region
      %315 = dma.done [#allocation24], 1024
    $region149: #{vision_transformer_forward.1} parent=1 // pred_fallthru
      _
    // Predicated region
    $region150: #{vision_transformer_forward.1} parent=1 // pred_check
      _
    $region151: #{vision_transformer_forward.1} parent=1 // pred_check_branch
      %317 = sbr.rel (0) target = $region153
    $region152: #{vision_transformer_forward.1} parent=1 // pred_region
      %319 = dma.done [#allocation24], 32
    $region153: #{vision_transformer_forward.1} parent=1 // pred_fallthru
      _
    // Predicated region
    $region154: #{vision_transformer_forward.1} parent=1 // pred_check
      _
    $region155: #{vision_transformer_forward.1} parent=1 // pred_check_branch
      %321 = sbr.rel (0) target = $region157
    $region156: #{vision_transformer_forward.1} parent=1 // pred_region
      %323 = dma.done [#allocation27], 32
    $region157: #{vision_transformer_forward.1} parent=1 // pred_fallthru
      _
    %v324 = vld [vmem:[#allocation2] sm:$0xff]
    %v325 = vld [vmem:[#allocation2 + $0x8] sm:$0xff]
    %v326 = vld [vmem:[#allocation8] sm:$0xff]
    %v327 = vld [vmem:[#allocation8 + $0x8] sm:$0xff]
    %vm328 = vcmask 130048
    %v330 = vsel %vm328, %v324, 0
    %v333 = vsel %vm328, %v325, 0
    %335 = vmatpush.msra.mxu0 0.0
    %336 = vmatpush.msra.mxu0 0.0
    %337 = vmatpush.msra.mxu0 0.0
    %338 = vmatpush.msra.mxu0 0.0
    %339 = vmatpush.msra.mxu0 0.0
    %340 = vmatpush.msra.mxu0 0.0
    %341 = vmatpush.msra.mxu0 0.0
    %342 = vmatpush.msra.mxu0 0.0
    %343 = vmatpush.msra.mxu0 0.0
    %344 = vmatpush.msra.mxu0 0.0
    %345 = vmatpush.msra.mxu0 0.0
    %346 = vmatpush.msra.mxu0 0.0
    %347 = vmatpush.msra.mxu0 0.0
    %348 = vmatpush.msra.mxu0 0.0
    %349 = vmatpush.msra.mxu0 %v327
    %350 = vmatpush.msra.mxu0 %v326
    %351 = vmatmul.f32.gmra.mxu0 %v330
    %v352 = vpop.f32.mrf.mxu0
    %v353 = vadd.f32 0.0, %v352
    %354 = vmatmul.f32.gmra.mxu0 %v333
    %v355 = vpop.f32.mrf.mxu0
    %v356 = vadd.f32 0.0, %v355
    %357 = vdwg.mxu0
    %v358 = vld [vmem:[%s2] sm:$0xff]
    %v359 = vld [vmem:[%s2 + $0x8] sm:$0x3f]
    %v360 = vlaneseq
    %v361 = vand.u32 %v360, 127
    %362 = vset.pattern.permute.xlu0 0
    %363 = vperm.xlu0 %362, %v358
    %v364 = vpop.permute.xlu0 %363
    %365 = vset.pattern.permute.xlu0 0
    %366 = vperm.xlu0 %365, %v359
    %v367 = vpop.permute.xlu0 %366
    %vm368 = vcmp.eq.s32.totalorder %v364, %v361
    %vm369 = vcmp.eq.s32.totalorder %v367, %v361
    %v370 = vsel %vm368, 1.0, 0.0
    %v371 = vsel %vm369, 1.0, 0.0
    %v372 = vld [vmem:[#allocation11] sm:$0xff]
    %v373 = vld [vmem:[#allocation11 + $0x8] sm:$0xf]
    %vm374 = vcmask 97280
    %v376 = vsel %vm374, %v370, 0
    %v379 = vsel %vm374, %v371, 0
    %vm381 = vcmask 1043456
    %v383 = vsel %vm381, %v373, 0
    %385 = vmatpush.msra.mxu0 0.0
    %386 = vmatpush.msra.mxu0 0.0
    %387 = vmatpush.msra.mxu0 0.0
    %388 = vmatpush.msra.mxu0 0.0
    %389 = vmatpush.msra.mxu0 0.0
    %390 = vmatpush.msra.mxu0 0.0
    %391 = vmatpush.msra.mxu0 0.0
    %392 = vmatpush.msra.mxu0 0.0
    %393 = vmatpush.msra.mxu0 0.0
    %394 = vmatpush.msra.mxu0 0.0
    %395 = vmatpush.msra.mxu0 0.0
    %396 = vmatpush.msra.mxu0 0.0
    %397 = vmatpush.msra.mxu0 0.0
    %398 = vmatpush.msra.mxu0 0.0
    %399 = vmatpush.msra.mxu0 %v383
    %400 = vmatpush.msra.mxu0 %v372
    %401 = vmatmul.f32.gmra.mxu0 %v376
    %v402 = vpop.f32.mrf.mxu0
    %v403 = vadd.f32 0.0, %v402
    %404 = vmatmul.f32.gmra.mxu0 %v379
    %v405 = vpop.f32.mrf.mxu0
    %v406 = vadd.f32 0.0, %v405
    %407 = vdwg.mxu0
    %v408 = vld [vmem:[%s1] sm:$0xff]
    %v409 = vld [vmem:[%s1 + $0x8] sm:$0x3f]
    %v410 = vld [vmem:[%s6] sm:$0x3f]
    %v411 = vld [vmem:[#allocation10] sm:$0xff]
    %v412 = vld [vmem:[#allocation10 + $0x8] sm:$0x3]
    %vm413 = vcmask 80896
    %v415 = vsel %vm413, %v403, 0
    %v418 = vsel %vm413, %v406, 0
    %vm420 = vcmask 1041408
    %v422 = vsel %vm420, %v412, 0
    %424 = vmatpush.msra.mxu0 0.0
    %425 = vmatpush.msra.mxu0 0.0
    %426 = vmatpush.msra.mxu0 0.0
    %427 = vmatpush.msra.mxu0 0.0
    %428 = vmatpush.msra.mxu0 0.0
    %429 = vmatpush.msra.mxu0 0.0
    %430 = vmatpush.msra.mxu0 0.0
    %431 = vmatpush.msra.mxu0 0.0
    %432 = vmatpush.msra.mxu0 0.0
    %433 = vmatpush.msra.mxu0 0.0
    %434 = vmatpush.msra.mxu0 0.0
    %435 = vmatpush.msra.mxu0 0.0
    %436 = vmatpush.msra.mxu0 0.0
    %437 = vmatpush.msra.mxu0 0.0
    %438 = vmatpush.msra.mxu0 %v422
    %439 = vmatpush.msra.mxu0 %v411
    %440 = vmatmul.f32.gmra.mxu0 %v415
    %v441 = vpop.f32.mrf.mxu0
    %v442 = vadd.f32 0.0, %v441
    %443 = vmatmul.f32.gmra.mxu0 %v418
    %v444 = vpop.f32.mrf.mxu0
    %v445 = vadd.f32 0.0, %v444
    %446 = vdwg.mxu0
    %vm447 = vcmask 48128
    %v449 = vsel %vm447, %v408, 0
    %v452 = vsel %vm447, %v409, 0
    %vm454 = vcmask 1045504
    %v456 = vsel %vm454, %v410, 0
    %458 = vmatpush.msra.mxu0 0.0
    %459 = vmatpush.msra.mxu0 0.0
    %460 = vmatpush.msra.mxu0 0.0
    %461 = vmatpush.msra.mxu0 0.0
    %462 = vmatpush.msra.mxu0 0.0
    %463 = vmatpush.msra.mxu0 0.0
    %464 = vmatpush.msra.mxu0 0.0
    %465 = vmatpush.msra.mxu0 0.0
    %466 = vmatpush.msra.mxu0 0.0
    %467 = vmatpush.msra.mxu0 0.0
    %468 = vmatpush.msra.mxu0 0.0
    %469 = vmatpush.msra.mxu0 0.0
    %470 = vmatpush.msra.mxu0 0.0
    %471 = vmatpush.msra.mxu0 0.0
    %472 = vmatpush.msra.mxu0 0.0
    %473 = vmatpush.msra.mxu0 %v456
    %474 = vmatmul.f32.gmra.mxu0 %v449
    %v475 = vpop.f32.mrf.mxu0
    %v476 = vadd.f32 %v442, %v475
    %477 = vmatmul.f32.gmra.mxu0 %v452
    %v478 = vpop.f32.mrf.mxu0
    %v479 = vadd.f32 %v445, %v478
    %480 = vdwg.mxu0
    %v481 = vld [vmem:[#allocation5] sm:$0xff]
    %v482 = vld [vmem:[#allocation5 + $0x8] sm:$0xff]
    %v483 = vld [vmem:[#allocation5 + $0x10] sm:$0xff]
    %v484 = vld [vmem:[#allocation5 + $0x18] sm:$0xff]
    %v485 = vld [vmem:[#allocation7] sm:$0xff]
    %v486 = vld [vmem:[#allocation7 + $0x8] sm:$0xff]
    %v487 = vld [vmem:[#allocation7 + $0x10] sm:$0xff]
    %v488 = vld [vmem:[#allocation7 + $0x18] sm:$0xff]
    %vm489 = vcmask 113664
    %v491 = vsel %vm489, %v485, 0
    %v494 = vsel %vm489, %v486, 0
    %v497 = vsel %vm489, %v487, 0
    %v500 = vsel %vm489, %v488, 0
    %v503 = vsel %vm454, %v479, 0
    %505 = vmatpush.msra.mxu0 0.0
    %506 = vmatpush.msra.mxu0 0.0
    %507 = vmatpush.msra.mxu0 0.0
    %508 = vmatpush.msra.mxu0 0.0
    %509 = vmatpush.msra.mxu0 0.0
    %510 = vmatpush.msra.mxu0 0.0
    %511 = vmatpush.msra.mxu0 0.0
    %512 = vmatpush.msra.mxu0 0.0
    %513 = vmatpush.msra.mxu0 0.0
    %514 = vmatpush.msra.mxu0 0.0
    %515 = vmatpush.msra.mxu0 0.0
    %516 = vmatpush.msra.mxu0 0.0
    %517 = vmatpush.msra.mxu0 0.0
    %518 = vmatpush.msra.mxu0 0.0
    %519 = vmatpush.msra.mxu0 %v503
    %520 = vmatpush.msra.mxu0 %v476
    %521 = vmatmul.f32.gmra.mxu0 %v491
    %v522 = vpop.f32.mrf.mxu0
    %v523 = vadd.f32 0.0, %v522
    %524 = vmatmul.f32.gmra.mxu0 %v494
    %v525 = vpop.f32.mrf.mxu0
    %v526 = vadd.f32 0.0, %v525
    %527 = vmatmul.f32.gmra.mxu0 %v497
    %v528 = vpop.f32.mrf.mxu0
    %v529 = vadd.f32 0.0, %v528
    %530 = vmatmul.f32.gmra.mxu0 %v500
    %v531 = vpop.f32.mrf.mxu0
    %v532 = vadd.f32 0.0, %v531
    %533 = vdwg.mxu0
    %v535 = vsel %vm328, %v481, 0
    %v538 = vsel %vm328, %v482, 0
    %v541 = vsel %vm328, %v483, 0
    %v544 = vsel %vm328, %v484, 0
    %546 = vmatpush.msra.mxu0 0.0
    %547 = vmatpush.msra.mxu0 0.0
    %548 = vmatpush.msra.mxu0 0.0
    %549 = vmatpush.msra.mxu0 0.0
    %550 = vmatpush.msra.mxu0 0.0
    %551 = vmatpush.msra.mxu0 0.0
    %552 = vmatpush.msra.mxu0 0.0
    %553 = vmatpush.msra.mxu0 0.0
    %554 = vmatpush.msra.mxu0 0.0
    %555 = vmatpush.msra.mxu0 0.0
    %556 = vmatpush.msra.mxu0 0.0
    %557 = vmatpush.msra.mxu0 0.0
    %558 = vmatpush.msra.mxu0 0.0
    %559 = vmatpush.msra.mxu0 0.0
    %560 = vmatpush.msra.mxu0 %v356
    %561 = vmatpush.msra.mxu0 %v353
    %562 = vmatmul.f32.gmra.mxu0 %v535
    %v563 = vpop.f32.mrf.mxu0
    %v564 = vadd.f32 %v523, %v563
    %565 = vmatmul.f32.gmra.mxu0 %v538
    %v566 = vpop.f32.mrf.mxu0
    %v567 = vadd.f32 %v526, %v566
    %568 = vmatmul.f32.gmra.mxu0 %v541
    %v569 = vpop.f32.mrf.mxu0
    %v570 = vadd.f32 %v529, %v569
    %571 = vmatmul.f32.gmra.mxu0 %v544
    %v572 = vpop.f32.mrf.mxu0
    %v573 = vadd.f32 %v532, %v572
    %574 = vdwg.mxu0
    %v575 = vld [vmem:[#allocation13] sm:$0xff]
    %v576 = vld [vmem:[#allocation13 + $0x8] sm:$0xff]
    %v577 = vadd.f32 %v564, %v575
    %v578 = vadd.f32 %v567, %v576
    %v579 = vadd.f32 %v570, %v575
    %v580 = vadd.f32 %v573, %v576
    %v581 = vld [vmem:[#allocation14] sm:$0x1]
    %v582 = vld [vmem:[#allocation16] sm:$0x1]
    %vm583 = vcmask 261120
    %v584 = vsel %vm583, %v577, 0.0
    %585 = vadd.xlane.f32.xlu0 %v584
    %v586 = vpop.xlane.xlu0 %585
    %v587 = vsel %vm583, %v578, 0.0
    %588 = vadd.xlane.f32.xlu0 %v587
    %v589 = vpop.xlane.xlu0 %588
    %v590 = vsel %vm583, %v579, 0.0
    %591 = vadd.xlane.f32.xlu0 %v590
    %v592 = vpop.xlane.xlu0 %591
    %v593 = vsel %vm583, %v580, 0.0
    %594 = vadd.xlane.f32.xlu0 %v593
    %v595 = vpop.xlane.xlu0 %594
    %v596 = vrcp.pop 32.0
    %v597 = vmul.f32 32.0, %v596
    %v598 = vsub.f32 1.0, %v597
    %v599 = vmul.f32 %v596, %v598
    %v600 = vadd.f32 %v596, %v599
    %vm601 = vweird.f32 %v596
    %v602 = vsel %vm601, %v596, %v600
    %v603 = vmul.f32 %v586, %v602
    %v604 = vmul.f32 %v589, %v602
    %v605 = vmul.f32 %v592, %v602
    %v606 = vmul.f32 %v595, %v602
    %v607 = vsub.f32 %v577, %v603
    %v608 = vsub.f32 %v578, %v604
    %v609 = vsub.f32 %v579, %v605
    %v610 = vsub.f32 %v580, %v606
    %v611 = vmul.f32 %v607, %v607
    %v612 = vmul.f32 %v608, %v608
    %v613 = vmul.f32 %v609, %v609
    %v614 = vmul.f32 %v610, %v610
    %v615 = vsel %vm583, %v611, 0.0
    %616 = vadd.xlane.f32.xlu0 %v615
    %v617 = vpop.xlane.xlu0 %616
    %v618 = vsel %vm583, %v612, 0.0
    %619 = vadd.xlane.f32.xlu0 %v618
    %v620 = vpop.xlane.xlu0 %619
    %v621 = vsel %vm583, %v613, 0.0
    %622 = vadd.xlane.f32.xlu0 %v621
    %v623 = vpop.xlane.xlu0 %622
    %v624 = vsel %vm583, %v614, 0.0
    %625 = vadd.xlane.f32.xlu0 %v624
    %v626 = vpop.xlane.xlu0 %625
    %v627 = vmul.f32 %v617, %v602
    %v628 = vmul.f32 %v620, %v602
    %v629 = vmul.f32 %v623, %v602
    %v630 = vmul.f32 %v626, %v602
    %v631 = vadd.f32 %v627, 1e-05
    %v632 = vadd.f32 %v628, 1e-05
    %v633 = vadd.f32 %v629, 1e-05
    %v634 = vadd.f32 %v630, 1e-05
    %v635 = vrsqrt.pop %v631
    %v636 = vmul.f32 %v635, %v631
    %v637 = vmul.f32 %v636, %v635
    %v638 = vmul.f32 0.5, %v637
    %v639 = vsub.f32 1.5, %v638
    %v640 = vmul.f32 %v635, %v639
    %vm641 = vweird.f32 %v631
    %vm642 = vweird.f32 %v635
    %vm643 = vmor %vm641, %vm642
    %v644 = vsel %vm643, %v635, %v640
    %v645 = vrsqrt.pop %v632
    %v646 = vmul.f32 %v645, %v632
    %v647 = vmul.f32 %v646, %v645
    %v648 = vmul.f32 0.5, %v647
    %v649 = vsub.f32 1.5, %v648
    %v650 = vmul.f32 %v645, %v649
    %vm651 = vweird.f32 %v632
    %vm652 = vweird.f32 %v645
    %vm653 = vmor %vm651, %vm652
    %v654 = vsel %vm653, %v645, %v650
    %v655 = vrsqrt.pop %v633
    %v656 = vmul.f32 %v655, %v633
    %v657 = vmul.f32 %v656, %v655
    %v658 = vmul.f32 0.5, %v657
    %v659 = vsub.f32 1.5, %v658
    %v660 = vmul.f32 %v655, %v659
    %vm661 = vweird.f32 %v633
    %vm662 = vweird.f32 %v655
    %vm663 = vmor %vm661, %vm662
    %v664 = vsel %vm663, %v655, %v660
    %v665 = vrsqrt.pop %v634
    %v666 = vmul.f32 %v665, %v634
    %v667 = vmul.f32 %v666, %v665
    %v668 = vmul.f32 0.5, %v667
    %v669 = vsub.f32 1.5, %v668
    %v670 = vmul.f32 %v665, %v669
    %vm671 = vweird.f32 %v634
    %vm672 = vweird.f32 %v665
    %vm673 = vmor %vm671, %vm672
    %v674 = vsel %vm673, %v665, %v670
    %v675 = vmul.f32 %v607, %v644
    %v676 = vmul.f32 %v608, %v654
    %v677 = vmul.f32 %v609, %v664
    %v678 = vmul.f32 %v610, %v674
    %v680 = vperm.slane %v581, 0
    %v682 = vmul.f32 %v675, %v680
    %v683 = vmul.f32 %v676, %v680
    %v684 = vmul.f32 %v677, %v680
    %v685 = vmul.f32 %v678, %v680
    %v687 = vperm.slane %v582, 0
    %v689 = vadd.f32 %v682, %v687
    %v690 = vadd.f32 %v683, %v687
    %v691 = vadd.f32 %v684, %v687
    %v692 = vadd.f32 %v685, %v687
    %v693 = vld [vmem:[%s12] sm:$0xff]
    %v694 = vld [vmem:[%s12 + $0x8] sm:$0xff]
    %v695 = vld [vmem:[%s12 + $0x10] sm:$0xff]
    %v696 = vld [vmem:[%s12 + $0x18] sm:$0xff]
    %v698 = vsel %vm583, %v689, 0
    %v701 = vsel %vm583, %v690, 0
    %v704 = vsel %vm583, %v691, 0
    %v707 = vsel %vm583, %v692, 0
    %709 = vmatpush.msra.mxu0 0.0
    %710 = vmatpush.msra.mxu0 0.0
    %711 = vmatpush.msra.mxu0 0.0
    %712 = vmatpush.msra.mxu0 0.0
    %713 = vmatpush.msra.mxu0 0.0
    %714 = vmatpush.msra.mxu0 0.0
    %715 = vmatpush.msra.mxu0 0.0
    %716 = vmatpush.msra.mxu0 0.0
    %717 = vmatpush.msra.mxu0 0.0
    %718 = vmatpush.msra.mxu0 0.0
    %719 = vmatpush.msra.mxu0 0.0
    %720 = vmatpush.msra.mxu0 0.0
    %721 = vmatpush.msra.mxu0 %v696
    %722 = vmatpush.msra.mxu0 %v695
    %723 = vmatpush.msra.mxu0 %v694
    %724 = vmatpush.msra.mxu0 %v693
    %725 = vmatmul.f32.gmra.mxu0 %v698
    %v726 = vpop.f32.mrf.mxu0
    %v727 = vadd.f32 0.0, %v726
    %728 = vmatmul.f32.gmra.mxu0 %v701
    %v729 = vpop.f32.mrf.mxu0
    %v730 = vadd.f32 0.0, %v729
    %731 = vmatmul.f32.gmra.mxu0 %v704
    %v732 = vpop.f32.mrf.mxu0
    %v733 = vadd.f32 0.0, %v732
    %734 = vmatmul.f32.gmra.mxu0 %v707
    %v735 = vpop.f32.mrf.mxu0
    %v736 = vadd.f32 0.0, %v735
    %737 = vdwg.mxu0
    %v738 = vld [vmem:[%s13] sm:$0xff]
    %v739 = vld [vmem:[%s13 + $0x8] sm:$0xff]
    %v740 = vld [vmem:[%s13 + $0x10] sm:$0xff]
    %v741 = vld [vmem:[%s13 + $0x18] sm:$0xff]
    %742 = vmatpush.msra.mxu0 0.0
    %743 = vmatpush.msra.mxu0 0.0
    %744 = vmatpush.msra.mxu0 0.0
    %745 = vmatpush.msra.mxu0 0.0
    %746 = vmatpush.msra.mxu0 0.0
    %747 = vmatpush.msra.mxu0 0.0
    %748 = vmatpush.msra.mxu0 0.0
    %749 = vmatpush.msra.mxu0 0.0
    %750 = vmatpush.msra.mxu0 0.0
    %751 = vmatpush.msra.mxu0 0.0
    %752 = vmatpush.msra.mxu0 0.0
    %753 = vmatpush.msra.mxu0 0.0
    %754 = vmatpush.msra.mxu0 %v741
    %755 = vmatpush.msra.mxu0 %v740
    %756 = vmatpush.msra.mxu0 %v739
    %757 = vmatpush.msra.mxu0 %v738
    %758 = vmatmul.f32.gmra.mxu0 %v698
    %v759 = vpop.f32.mrf.mxu0
    %v760 = vadd.f32 0.0, %v759
    %761 = vmatmul.f32.gmra.mxu0 %v701
    %v762 = vpop.f32.mrf.mxu0
    %v763 = vadd.f32 0.0, %v762
    %764 = vmatmul.f32.gmra.mxu0 %v704
    %v765 = vpop.f32.mrf.mxu0
    %v766 = vadd.f32 0.0, %v765
    %767 = vmatmul.f32.gmra.mxu0 %v707
    %v768 = vpop.f32.mrf.mxu0
    %v769 = vadd.f32 0.0, %v768
    %770 = vdwg.mxu0
    %v771 = vld [vmem:[%s14] sm:$0xff]
    %v772 = vld [vmem:[%s14 + $0x8] sm:$0xff]
    %v773 = vld [vmem:[%s14 + $0x10] sm:$0xff]
    %v774 = vld [vmem:[%s14 + $0x18] sm:$0xff]
    %775 = vmatpush.msra.mxu0 0.0
    %776 = vmatpush.msra.mxu0 0.0
    %777 = vmatpush.msra.mxu0 0.0
    %778 = vmatpush.msra.mxu0 0.0
    %779 = vmatpush.msra.mxu0 0.0
    %780 = vmatpush.msra.mxu0 0.0
    %781 = vmatpush.msra.mxu0 0.0
    %782 = vmatpush.msra.mxu0 0.0
    %783 = vmatpush.msra.mxu0 0.0
    %784 = vmatpush.msra.mxu0 0.0
    %785 = vmatpush.msra.mxu0 0.0
    %786 = vmatpush.msra.mxu0 0.0
    %787 = vmatpush.msra.mxu0 %v774
    %788 = vmatpush.msra.mxu0 %v773
    %789 = vmatpush.msra.mxu0 %v772
    %790 = vmatpush.msra.mxu0 %v771
    %791 = vmatmul.f32.gmra.mxu0 %v698
    %v792 = vpop.f32.mrf.mxu0
    %v793 = vadd.f32 0.0, %v792
    %794 = vmatmul.f32.gmra.mxu0 %v701
    %v795 = vpop.f32.mrf.mxu0
    %v796 = vadd.f32 0.0, %v795
    %797 = vmatmul.f32.gmra.mxu0 %v704
    %v798 = vpop.f32.mrf.mxu0
    %v799 = vadd.f32 0.0, %v798
    %800 = vmatmul.f32.gmra.mxu0 %v707
    %v801 = vpop.f32.mrf.mxu0
    %v802 = vadd.f32 0.0, %v801
    %803 = vdwg.mxu0
    %808 = vrot.lane.b32.xlu0 %v727, 120
    %v809 = vpop.permute.xlu0 %808
    %810 = vrot.lane.b32.xlu0 %v730, 120
    %v811 = vpop.permute.xlu0 %810
    %812 = vrot.lane.b32.xlu0 %v733, 120
    %v813 = vpop.permute.xlu0 %812
    %814 = vrot.lane.b32.xlu0 %v736, 120
    %v815 = vpop.permute.xlu0 %814
    %816 = vrot.lane.b32.xlu0 %v727, 112
    %v817 = vpop.permute.xlu0 %816
    %818 = vrot.lane.b32.xlu0 %v730, 112
    %v819 = vpop.permute.xlu0 %818
    %820 = vrot.lane.b32.xlu0 %v733, 112
    %v821 = vpop.permute.xlu0 %820
    %822 = vrot.lane.b32.xlu0 %v736, 112
    %v823 = vpop.permute.xlu0 %822
    %824 = vrot.lane.b32.xlu0 %v727, 104
    %v825 = vpop.permute.xlu0 %824
    %826 = vrot.lane.b32.xlu0 %v730, 104
    %v827 = vpop.permute.xlu0 %826
    %828 = vrot.lane.b32.xlu0 %v733, 104
    %v829 = vpop.permute.xlu0 %828
    %830 = vrot.lane.b32.xlu0 %v736, 104
    %v831 = vpop.permute.xlu0 %830
    %836 = vrot.lane.b32.xlu0 %v760, 120
    %v837 = vpop.permute.xlu0 %836
    %838 = vrot.lane.b32.xlu0 %v763, 120
    %v839 = vpop.permute.xlu0 %838
    %840 = vrot.lane.b32.xlu0 %v766, 120
    %v841 = vpop.permute.xlu0 %840
    %842 = vrot.lane.b32.xlu0 %v769, 120
    %v843 = vpop.permute.xlu0 %842
    %844 = vrot.lane.b32.xlu0 %v760, 112
    %v845 = vpop.permute.xlu0 %844
    %846 = vrot.lane.b32.xlu0 %v763, 112
    %v847 = vpop.permute.xlu0 %846
    %848 = vrot.lane.b32.xlu0 %v766, 112
    %v849 = vpop.permute.xlu0 %848
    %850 = vrot.lane.b32.xlu0 %v769, 112
    %v851 = vpop.permute.xlu0 %850
    %852 = vrot.lane.b32.xlu0 %v760, 104
    %v853 = vpop.permute.xlu0 %852
    %854 = vrot.lane.b32.xlu0 %v763, 104
    %v855 = vpop.permute.xlu0 %854
    %856 = vrot.lane.b32.xlu0 %v766, 104
    %v857 = vpop.permute.xlu0 %856
    %858 = vrot.lane.b32.xlu0 %v769, 104
    %v859 = vpop.permute.xlu0 %858
    %864 = vrot.lane.b32.xlu0 %v793, 120
    %v865 = vpop.permute.xlu0 %864
    %866 = vrot.lane.b32.xlu0 %v796, 120
    %v867 = vpop.permute.xlu0 %866
    %868 = vrot.lane.b32.xlu0 %v799, 120
    %v869 = vpop.permute.xlu0 %868
    %870 = vrot.lane.b32.xlu0 %v802, 120
    %v871 = vpop.permute.xlu0 %870
    %876 = vrot.lane.b32.xlu0 %v793, 112
    %v877 = vpop.permute.xlu0 %876
    %878 = vrot.lane.b32.xlu0 %v796, 112
    %v879 = vpop.permute.xlu0 %878
    %880 = vrot.lane.b32.xlu0 %v799, 112
    %v881 = vpop.permute.xlu0 %880
    %882 = vrot.lane.b32.xlu0 %v802, 112
    %v883 = vpop.permute.xlu0 %882
    %888 = vrot.lane.b32.xlu0 %v793, 104
    %v889 = vpop.permute.xlu0 %888
    %890 = vrot.lane.b32.xlu0 %v796, 104
    %v891 = vpop.permute.xlu0 %890
    %892 = vrot.lane.b32.xlu0 %v799, 104
    %v893 = vpop.permute.xlu0 %892
    %894 = vrot.lane.b32.xlu0 %v802, 104
    %v895 = vpop.permute.xlu0 %894
    %vm900 = vcmask 64512
    %v901 = vsel %vm900, %v727, 0
    %v903 = vsel %vm900, %v730, 0
    %v905 = vsel %vm900, %v760, 0
    %v907 = vsel %vm900, %v763, 0
    %909 = vmatpush.xpose.msra.mxu0 0.0
    %910 = vmatpush.xpose.msra.mxu0 0.0
    %911 = vmatpush.xpose.msra.mxu0 0.0
    %912 = vmatpush.xpose.msra.mxu0 0.0
    %913 = vmatpush.xpose.msra.mxu0 0.0
    %914 = vmatpush.xpose.msra.mxu0 0.0
    %915 = vmatpush.xpose.msra.mxu0 0.0
    %916 = vmatpush.xpose.msra.mxu0 0.0
    %917 = vmatpush.xpose.msra.mxu0 0.0
    %918 = vmatpush.xpose.msra.mxu0 0.0
    %919 = vmatpush.xpose.msra.mxu0 0.0
    %920 = vmatpush.xpose.msra.mxu0 0.0
    %921 = vmatpush.xpose.msra.mxu0 0.0
    %922 = vmatpush.xpose.msra.mxu0 0.0
    %923 = vmatpush.xpose.msra.mxu0 %v907
    %924 = vmatpush.xpose.msra.mxu0 %v905
    %925 = vmatmul.f32.gmra.mxu0 %v901
    %v926 = vpop.f32.mrf.mxu0
    %v927 = vadd.f32 0.0, %v926
    %928 = vmatmul.f32.gmra.mxu0 %v903
    %v929 = vpop.f32.mrf.mxu0
    %v930 = vadd.f32 0.0, %v929
    %931 = vdwg.mxu0
    %v932 = vsel %vm900, %v733, 0
    %v934 = vsel %vm900, %v736, 0
    %v936 = vsel %vm900, %v766, 0
    %v938 = vsel %vm900, %v769, 0
    %940 = vmatpush.xpose.msra.mxu0 0.0
    %941 = vmatpush.xpose.msra.mxu0 0.0
    %942 = vmatpush.xpose.msra.mxu0 0.0
    %943 = vmatpush.xpose.msra.mxu0 0.0
    %944 = vmatpush.xpose.msra.mxu0 0.0
    %945 = vmatpush.xpose.msra.mxu0 0.0
    %946 = vmatpush.xpose.msra.mxu0 0.0
    %947 = vmatpush.xpose.msra.mxu0 0.0
    %948 = vmatpush.xpose.msra.mxu0 0.0
    %949 = vmatpush.xpose.msra.mxu0 0.0
    %950 = vmatpush.xpose.msra.mxu0 0.0
    %951 = vmatpush.xpose.msra.mxu0 0.0
    %952 = vmatpush.xpose.msra.mxu0 0.0
    %953 = vmatpush.xpose.msra.mxu0 0.0
    %954 = vmatpush.xpose.msra.mxu0 %v938
    %955 = vmatpush.xpose.msra.mxu0 %v936
    %956 = vmatmul.f32.gmra.mxu0 %v932
    %v957 = vpop.f32.mrf.mxu0
    %v958 = vadd.f32 0.0, %v957
    %959 = vmatmul.f32.gmra.mxu0 %v934
    %v960 = vpop.f32.mrf.mxu0
    %v961 = vadd.f32 0.0, %v960
    %962 = vdwg.mxu0
    %v963 = vsel %vm900, %v809, 0
    %v965 = vsel %vm900, %v811, 0
    %v967 = vsel %vm900, %v837, 0
    %v969 = vsel %vm900, %v839, 0
    %971 = vmatpush.xpose.msra.mxu0 0.0
    %972 = vmatpush.xpose.msra.mxu0 0.0
    %973 = vmatpush.xpose.msra.mxu0 0.0
    %974 = vmatpush.xpose.msra.mxu0 0.0
    %975 = vmatpush.xpose.msra.mxu0 0.0
    %976 = vmatpush.xpose.msra.mxu0 0.0
    %977 = vmatpush.xpose.msra.mxu0 0.0
    %978 = vmatpush.xpose.msra.mxu0 0.0
    %979 = vmatpush.xpose.msra.mxu0 0.0
    %980 = vmatpush.xpose.msra.mxu0 0.0
    %981 = vmatpush.xpose.msra.mxu0 0.0
    %982 = vmatpush.xpose.msra.mxu0 0.0
    %983 = vmatpush.xpose.msra.mxu0 0.0
    %984 = vmatpush.xpose.msra.mxu0 0.0
    %985 = vmatpush.xpose.msra.mxu0 %v969
    %986 = vmatpush.xpose.msra.mxu0 %v967
    %987 = vmatmul.f32.gmra.mxu0 %v963
    %v988 = vpop.f32.mrf.mxu0
    %v989 = vadd.f32 0.0, %v988
    %990 = vmatmul.f32.gmra.mxu0 %v965
    %v991 = vpop.f32.mrf.mxu0
    %v992 = vadd.f32 0.0, %v991
    %993 = vdwg.mxu0
    %v994 = vsel %vm900, %v813, 0
    %v996 = vsel %vm900, %v815, 0
    %v998 = vsel %vm900, %v841, 0
    %v1000 = vsel %vm900, %v843, 0
    %1002 = vmatpush.xpose.msra.mxu0 0.0
    %1003 = vmatpush.xpose.msra.mxu0 0.0
    %1004 = vmatpush.xpose.msra.mxu0 0.0
    %1005 = vmatpush.xpose.msra.mxu0 0.0
    %1006 = vmatpush.xpose.msra.mxu0 0.0
    %1007 = vmatpush.xpose.msra.mxu0 0.0
    %1008 = vmatpush.xpose.msra.mxu0 0.0
    %1009 = vmatpush.xpose.msra.mxu0 0.0
    %1010 = vmatpush.xpose.msra.mxu0 0.0
    %1011 = vmatpush.xpose.msra.mxu0 0.0
    %1012 = vmatpush.xpose.msra.mxu0 0.0
    %1013 = vmatpush.xpose.msra.mxu0 0.0
    %1014 = vmatpush.xpose.msra.mxu0 0.0
    %1015 = vmatpush.xpose.msra.mxu0 0.0
    %1016 = vmatpush.xpose.msra.mxu0 %v1000
    %1017 = vmatpush.xpose.msra.mxu0 %v998
    %1018 = vmatmul.f32.gmra.mxu0 %v994
    %v1019 = vpop.f32.mrf.mxu0
    %v1020 = vadd.f32 0.0, %v1019
    %1021 = vmatmul.f32.gmra.mxu0 %v996
    %v1022 = vpop.f32.mrf.mxu0
    %v1023 = vadd.f32 0.0, %v1022
    %1024 = vdwg.mxu0
    %v1025 = vsel %vm900, %v817, 0
    %v1027 = vsel %vm900, %v819, 0
    %v1029 = vsel %vm900, %v845, 0
    %v1031 = vsel %vm900, %v847, 0
    %1033 = vmatpush.xpose.msra.mxu0 0.0
    %1034 = vmatpush.xpose.msra.mxu0 0.0
    %1035 = vmatpush.xpose.msra.mxu0 0.0
    %1036 = vmatpush.xpose.msra.mxu0 0.0
    %1037 = vmatpush.xpose.msra.mxu0 0.0
    %1038 = vmatpush.xpose.msra.mxu0 0.0
    %1039 = vmatpush.xpose.msra.mxu0 0.0
    %1040 = vmatpush.xpose.msra.mxu0 0.0
    %1041 = vmatpush.xpose.msra.mxu0 0.0
    %1042 = vmatpush.xpose.msra.mxu0 0.0
    %1043 = vmatpush.xpose.msra.mxu0 0.0
    %1044 = vmatpush.xpose.msra.mxu0 0.0
    %1045 = vmatpush.xpose.msra.mxu0 0.0
    %1046 = vmatpush.xpose.msra.mxu0 0.0
    %1047 = vmatpush.xpose.msra.mxu0 %v1031
    %1048 = vmatpush.xpose.msra.mxu0 %v1029
    %1049 = vmatmul.f32.gmra.mxu0 %v1025
    %v1050 = vpop.f32.mrf.mxu0
    %v1051 = vadd.f32 0.0, %v1050
    %1052 = vmatmul.f32.gmra.mxu0 %v1027
    %v1053 = vpop.f32.mrf.mxu0
    %v1054 = vadd.f32 0.0, %v1053
    %1055 = vdwg.mxu0
    %v1056 = vsel %vm900, %v821, 0
    %v1058 = vsel %vm900, %v823, 0
    %v1060 = vsel %vm900, %v849, 0
    %v1062 = vsel %vm900, %v851, 0
    %1064 = vmatpush.xpose.msra.mxu0 0.0
    %1065 = vmatpush.xpose.msra.mxu0 0.0
    %1066 = vmatpush.xpose.msra.mxu0 0.0
    %1067 = vmatpush.xpose.msra.mxu0 0.0
    %1068 = vmatpush.xpose.msra.mxu0 0.0
    %1069 = vmatpush.xpose.msra.mxu0 0.0
    %1070 = vmatpush.xpose.msra.mxu0 0.0
    %1071 = vmatpush.xpose.msra.mxu0 0.0
    %1072 = vmatpush.xpose.msra.mxu0 0.0
    %1073 = vmatpush.xpose.msra.mxu0 0.0
    %1074 = vmatpush.xpose.msra.mxu0 0.0
    %1075 = vmatpush.xpose.msra.mxu0 0.0
    %1076 = vmatpush.xpose.msra.mxu0 0.0
    %1077 = vmatpush.xpose.msra.mxu0 0.0
    %1078 = vmatpush.xpose.msra.mxu0 %v1062
    %1079 = vmatpush.xpose.msra.mxu0 %v1060
    %1080 = vmatmul.f32.gmra.mxu0 %v1056
    %v1081 = vpop.f32.mrf.mxu0
    %v1082 = vadd.f32 0.0, %v1081
    %1083 = vmatmul.f32.gmra.mxu0 %v1058
    %v1084 = vpop.f32.mrf.mxu0
    %v1085 = vadd.f32 0.0, %v1084
    %1086 = vdwg.mxu0
    %v1087 = vsel %vm900, %v825, 0
    %v1089 = vsel %vm900, %v827, 0
    %v1091 = vsel %vm900, %v853, 0
    %v1093 = vsel %vm900, %v855, 0
    %1095 = vmatpush.xpose.msra.mxu0 0.0
    %1096 = vmatpush.xpose.msra.mxu0 0.0
    %1097 = vmatpush.xpose.msra.mxu0 0.0
    %1098 = vmatpush.xpose.msra.mxu0 0.0
    %1099 = vmatpush.xpose.msra.mxu0 0.0
    %1100 = vmatpush.xpose.msra.mxu0 0.0
    %1101 = vmatpush.xpose.msra.mxu0 0.0
    %1102 = vmatpush.xpose.msra.mxu0 0.0
    %1103 = vmatpush.xpose.msra.mxu0 0.0
    %1104 = vmatpush.xpose.msra.mxu0 0.0
    %1105 = vmatpush.xpose.msra.mxu0 0.0
    %1106 = vmatpush.xpose.msra.mxu0 0.0
    %1107 = vmatpush.xpose.msra.mxu0 0.0
    %1108 = vmatpush.xpose.msra.mxu0 0.0
    %1109 = vmatpush.xpose.msra.mxu0 %v1093
    %1110 = vmatpush.xpose.msra.mxu0 %v1091
    %1111 = vmatmul.f32.gmra.mxu0 %v1087
    %v1112 = vpop.f32.mrf.mxu0
    %v1113 = vadd.f32 0.0, %v1112
    %1114 = vmatmul.f32.gmra.mxu0 %v1089
    %v1115 = vpop.f32.mrf.mxu0
    %v1116 = vadd.f32 0.0, %v1115
    %1117 = vdwg.mxu0
    %v1118 = vsel %vm900, %v829, 0
    %v1120 = vsel %vm900, %v831, 0
    %v1122 = vsel %vm900, %v857, 0
    %v1124 = vsel %vm900, %v859, 0
    %1126 = vmatpush.xpose.msra.mxu0 0.0
    %1127 = vmatpush.xpose.msra.mxu0 0.0
    %1128 = vmatpush.xpose.msra.mxu0 0.0
    %1129 = vmatpush.xpose.msra.mxu0 0.0
    %1130 = vmatpush.xpose.msra.mxu0 0.0
    %1131 = vmatpush.xpose.msra.mxu0 0.0
    %1132 = vmatpush.xpose.msra.mxu0 0.0
    %1133 = vmatpush.xpose.msra.mxu0 0.0
    %1134 = vmatpush.xpose.msra.mxu0 0.0
    %1135 = vmatpush.xpose.msra.mxu0 0.0
    %1136 = vmatpush.xpose.msra.mxu0 0.0
    %1137 = vmatpush.xpose.msra.mxu0 0.0
    %1138 = vmatpush.xpose.msra.mxu0 0.0
    %1139 = vmatpush.xpose.msra.mxu0 0.0
    %1140 = vmatpush.xpose.msra.mxu0 %v1124
    %1141 = vmatpush.xpose.msra.mxu0 %v1122
    %1142 = vmatmul.f32.gmra.mxu0 %v1118
    %v1143 = vpop.f32.mrf.mxu0
    %v1144 = vadd.f32 0.0, %v1143
    %1145 = vmatmul.f32.gmra.mxu0 %v1120
    %v1146 = vpop.f32.mrf.mxu0
    %v1147 = vadd.f32 0.0, %v1146
    %1148 = vdwg.mxu0
    %v1149 = vmul.f32 %v927, 0.35355338
    %v1150 = vmul.f32 %v930, 0.35355338
    %v1151 = vmul.f32 %v958, 0.35355338
    %v1152 = vmul.f32 %v961, 0.35355338
    %v1153 = vmul.f32 %v989, 0.35355338
    %v1154 = vmul.f32 %v992, 0.35355338
    %v1155 = vmul.f32 %v1020, 0.35355338
    %v1156 = vmul.f32 %v1023, 0.35355338
    %v1157 = vmul.f32 %v1051, 0.35355338
    %v1158 = vmul.f32 %v1054, 0.35355338
    %v1159 = vmul.f32 %v1082, 0.35355338
    %v1160 = vmul.f32 %v1085, 0.35355338
    %v1161 = vmul.f32 %v1113, 0.35355338
    %v1162 = vmul.f32 %v1116, 0.35355338
    %v1163 = vmul.f32 %v1144, 0.35355338
    %v1164 = vmul.f32 %v1147, 0.35355338
    %v1165 = vsel %vm328, %v1149, -inf
    %1166 = vmax.xlane.f32.xlu0 %v1165
    %v1167 = vpop.xlane.xlu0 %1166
    %v1168 = vsel %vm328, %v1150, -inf
    %1169 = vmax.xlane.f32.xlu0 %v1168
    %v1170 = vpop.xlane.xlu0 %1169
    %v1171 = vsel %vm328, %v1151, -inf
    %1172 = vmax.xlane.f32.xlu0 %v1171
    %v1173 = vpop.xlane.xlu0 %1172
    %v1174 = vsel %vm328, %v1152, -inf
    %1175 = vmax.xlane.f32.xlu0 %v1174
    %v1176 = vpop.xlane.xlu0 %1175
    %v1177 = vsel %vm328, %v1153, -inf
    %1178 = vmax.xlane.f32.xlu0 %v1177
    %v1179 = vpop.xlane.xlu0 %1178
    %v1180 = vsel %vm328, %v1154, -inf
    %1181 = vmax.xlane.f32.xlu0 %v1180
    %v1182 = vpop.xlane.xlu0 %1181
    %v1183 = vsel %vm328, %v1155, -inf
    %1184 = vmax.xlane.f32.xlu0 %v1183
    %v1185 = vpop.xlane.xlu0 %1184
    %v1186 = vsel %vm328, %v1156, -inf
    %1187 = vmax.xlane.f32.xlu0 %v1186
    %v1188 = vpop.xlane.xlu0 %1187
    %v1189 = vsel %vm328, %v1157, -inf
    %1190 = vmax.xlane.f32.xlu0 %v1189
    %v1191 = vpop.xlane.xlu0 %1190
    %v1192 = vsel %vm328, %v1158, -inf
    %1193 = vmax.xlane.f32.xlu0 %v1192
    %v1194 = vpop.xlane.xlu0 %1193
    %v1195 = vsel %vm328, %v1159, -inf
    %1196 = vmax.xlane.f32.xlu0 %v1195
    %v1197 = vpop.xlane.xlu0 %1196
    %v1198 = vsel %vm328, %v1160, -inf
    %1199 = vmax.xlane.f32.xlu0 %v1198
    %v1200 = vpop.xlane.xlu0 %1199
    %v1201 = vsel %vm328, %v1161, -inf
    %1202 = vmax.xlane.f32.xlu0 %v1201
    %v1203 = vpop.xlane.xlu0 %1202
    %v1204 = vsel %vm328, %v1162, -inf
    %1205 = vmax.xlane.f32.xlu0 %v1204
    %v1206 = vpop.xlane.xlu0 %1205
    %v1207 = vsel %vm328, %v1163, -inf
    %1208 = vmax.xlane.f32.xlu0 %v1207
    %v1209 = vpop.xlane.xlu0 %1208
    %v1210 = vsel %vm328, %v1164, -inf
    %1211 = vmax.xlane.f32.xlu0 %v1210
    %v1212 = vpop.xlane.xlu0 %1211
    %v1213 = vsub.f32 %v1149, %v1167
    %v1214 = vsub.f32 %v1150, %v1170
    %v1215 = vsub.f32 %v1151, %v1173
    %v1216 = vsub.f32 %v1152, %v1176
    %v1217 = vsub.f32 %v1153, %v1179
    %v1218 = vsub.f32 %v1154, %v1182
    %v1219 = vsub.f32 %v1155, %v1185
    %v1220 = vsub.f32 %v1156, %v1188
    %v1221 = vsub.f32 %v1157, %v1191
    %v1222 = vsub.f32 %v1158, %v1194
    %v1223 = vsub.f32 %v1159, %v1197
    %v1224 = vsub.f32 %v1160, %v1200
    %v1225 = vsub.f32 %v1161, %v1203
    %v1226 = vsub.f32 %v1162, %v1206
    %v1227 = vsub.f32 %v1163, %v1209
    %v1228 = vsub.f32 %v1164, %v1212
    %v1229 = vmul.f32 %v1213, 1.442695
    %v1230 = vpow.pop %v1229
    %v1231 = vmul.f32 %v1214, 1.442695
    %v1232 = vpow.pop %v1231
    %v1233 = vmul.f32 %v1215, 1.442695
    %v1234 = vpow.pop %v1233
    %v1235 = vmul.f32 %v1216, 1.442695
    %v1236 = vpow.pop %v1235
    %v1237 = vmul.f32 %v1217, 1.442695
    %v1238 = vpow.pop %v1237
    %v1239 = vmul.f32 %v1218, 1.442695
    %v1240 = vpow.pop %v1239
    %v1241 = vmul.f32 %v1219, 1.442695
    %v1242 = vpow.pop %v1241
    %v1243 = vmul.f32 %v1220, 1.442695
    %v1244 = vpow.pop %v1243
    %v1245 = vmul.f32 %v1221, 1.442695
    %v1246 = vpow.pop %v1245
    %v1247 = vmul.f32 %v1222, 1.442695
    %v1248 = vpow.pop %v1247
    %v1249 = vmul.f32 %v1223, 1.442695
    %v1250 = vpow.pop %v1249
    %v1251 = vmul.f32 %v1224, 1.442695
    %v1252 = vpow.pop %v1251
    %v1253 = vmul.f32 %v1225, 1.442695
    %v1254 = vpow.pop %v1253
    %v1255 = vmul.f32 %v1226, 1.442695
    %v1256 = vpow.pop %v1255
    %v1257 = vmul.f32 %v1227, 1.442695
    %v1258 = vpow.pop %v1257
    %v1259 = vmul.f32 %v1228, 1.442695
    %v1260 = vpow.pop %v1259
    %v1261 = vsel %vm328, %v1230, 0.0
    %1262 = vadd.xlane.f32.xlu0 %v1261
    %v1263 = vpop.xlane.xlu0 %1262
    %v1264 = vsel %vm328, %v1232, 0.0
    %1265 = vadd.xlane.f32.xlu0 %v1264
    %v1266 = vpop.xlane.xlu0 %1265
    %v1267 = vsel %vm328, %v1234, 0.0
    %1268 = vadd.xlane.f32.xlu0 %v1267
    %v1269 = vpop.xlane.xlu0 %1268
    %v1270 = vsel %vm328, %v1236, 0.0
    %1271 = vadd.xlane.f32.xlu0 %v1270
    %v1272 = vpop.xlane.xlu0 %1271
    %v1273 = vsel %vm328, %v1238, 0.0
    %1274 = vadd.xlane.f32.xlu0 %v1273
    %v1275 = vpop.xlane.xlu0 %1274
    %v1276 = vsel %vm328, %v1240, 0.0
    %1277 = vadd.xlane.f32.xlu0 %v1276
    %v1278 = vpop.xlane.xlu0 %1277
    %v1279 = vsel %vm328, %v1242, 0.0
    %1280 = vadd.xlane.f32.xlu0 %v1279
    %v1281 = vpop.xlane.xlu0 %1280
    %v1282 = vsel %vm328, %v1244, 0.0
    %1283 = vadd.xlane.f32.xlu0 %v1282
    %v1284 = vpop.xlane.xlu0 %1283
    %v1285 = vsel %vm328, %v1246, 0.0
    %1286 = vadd.xlane.f32.xlu0 %v1285
    %v1287 = vpop.xlane.xlu0 %1286
    %v1288 = vsel %vm328, %v1248, 0.0
    %1289 = vadd.xlane.f32.xlu0 %v1288
    %v1290 = vpop.xlane.xlu0 %1289
    %v1291 = vsel %vm328, %v1250, 0.0
    %1292 = vadd.xlane.f32.xlu0 %v1291
    %v1293 = vpop.xlane.xlu0 %1292
    %v1294 = vsel %vm328, %v1252, 0.0
    %1295 = vadd.xlane.f32.xlu0 %v1294
    %v1296 = vpop.xlane.xlu0 %1295
    %v1297 = vsel %vm328, %v1254, 0.0
    %1298 = vadd.xlane.f32.xlu0 %v1297
    %v1299 = vpop.xlane.xlu0 %1298
    %v1300 = vsel %vm328, %v1256, 0.0
    %1301 = vadd.xlane.f32.xlu0 %v1300
    %v1302 = vpop.xlane.xlu0 %1301
    %v1303 = vsel %vm328, %v1258, 0.0
    %1304 = vadd.xlane.f32.xlu0 %v1303
    %v1305 = vpop.xlane.xlu0 %1304
    %v1306 = vsel %vm328, %v1260, 0.0
    %1307 = vadd.xlane.f32.xlu0 %v1306
    %v1308 = vpop.xlane.xlu0 %1307
    %v1309 = vrcp.pop %v1263
    %v1310 = vrcp.pop %v1266
    %v1311 = vrcp.pop %v1269
    %v1312 = vrcp.pop %v1272
    %v1313 = vrcp.pop %v1275
    %v1314 = vrcp.pop %v1278
    %v1315 = vrcp.pop %v1281
    %v1316 = vrcp.pop %v1284
    %v1317 = vrcp.pop %v1287
    %v1318 = vrcp.pop %v1290
    %v1319 = vrcp.pop %v1293
    %v1320 = vrcp.pop %v1296
    %v1321 = vrcp.pop %v1299
    %v1322 = vrcp.pop %v1302
    %v1323 = vrcp.pop %v1305
    %v1324 = vrcp.pop %v1308
    %v1325 = vmul.f32 %v1230, %v1309
    %v1326 = vmul.f32 %v1232, %v1310
    %v1327 = vmul.f32 %v1234, %v1311
    %v1328 = vmul.f32 %v1236, %v1312
    %v1329 = vmul.f32 %v1238, %v1313
    %v1330 = vmul.f32 %v1240, %v1314
    %v1331 = vmul.f32 %v1242, %v1315
    %v1332 = vmul.f32 %v1244, %v1316
    %v1333 = vmul.f32 %v1246, %v1317
    %v1334 = vmul.f32 %v1248, %v1318
    %v1335 = vmul.f32 %v1250, %v1319
    %v1336 = vmul.f32 %v1252, %v1320
    %v1337 = vmul.f32 %v1254, %v1321
    %v1338 = vmul.f32 %v1256, %v1322
    %v1339 = vmul.f32 %v1258, %v1323
    %v1340 = vmul.f32 %v1260, %v1324
    %v1342 = vsel %vm328, %v1325, 0
    %v1345 = vsel %vm328, %v1326, 0
    %1347 = vmatpush.msra.mxu0 0.0
    %1348 = vmatpush.msra.mxu0 0.0
    %1349 = vmatpush.msra.mxu0 0.0
    %1350 = vmatpush.msra.mxu0 0.0
    %1351 = vmatpush.msra.mxu0 0.0
    %1352 = vmatpush.msra.mxu0 0.0
    %1353 = vmatpush.msra.mxu0 0.0
    %1354 = vmatpush.msra.mxu0 0.0
    %1355 = vmatpush.msra.mxu0 0.0
    %1356 = vmatpush.msra.mxu0 0.0
    %1357 = vmatpush.msra.mxu0 0.0
    %1358 = vmatpush.msra.mxu0 0.0
    %1359 = vmatpush.msra.mxu0 0.0
    %1360 = vmatpush.msra.mxu0 0.0
    %1361 = vmatpush.msra.mxu0 %v796
    %1362 = vmatpush.msra.mxu0 %v793
    %1363 = vmatmul.f32.gmra.mxu0 %v1342
    %v1364 = vpop.f32.mrf.mxu0
    %v1365 = vadd.f32 0.0, %v1364
    %1366 = vmatmul.f32.gmra.mxu0 %v1345
    %v1367 = vpop.f32.mrf.mxu0
    %v1368 = vadd.f32 0.0, %v1367
    %1369 = vdwg.mxu0
    %v1371 = vsel %vm328, %v1327, 0
    %v1374 = vsel %vm328, %v1328, 0
    %1376 = vmatpush.msra.mxu0 0.0
    %1377 = vmatpush.msra.mxu0 0.0
    %1378 = vmatpush.msra.mxu0 0.0
    %1379 = vmatpush.msra.mxu0 0.0
    %1380 = vmatpush.msra.mxu0 0.0
    %1381 = vmatpush.msra.mxu0 0.0
    %1382 = vmatpush.msra.mxu0 0.0
    %1383 = vmatpush.msra.mxu0 0.0
    %1384 = vmatpush.msra.mxu0 0.0
    %1385 = vmatpush.msra.mxu0 0.0
    %1386 = vmatpush.msra.mxu0 0.0
    %1387 = vmatpush.msra.mxu0 0.0
    %1388 = vmatpush.msra.mxu0 0.0
    %1389 = vmatpush.msra.mxu0 0.0
    %1390 = vmatpush.msra.mxu0 %v802
    %1391 = vmatpush.msra.mxu0 %v799
    %1392 = vmatmul.f32.gmra.mxu0 %v1371
    %v1393 = vpop.f32.mrf.mxu0
    %v1394 = vadd.f32 0.0, %v1393
    %1395 = vmatmul.f32.gmra.mxu0 %v1374
    %v1396 = vpop.f32.mrf.mxu0
    %v1397 = vadd.f32 0.0, %v1396
    %1398 = vdwg.mxu0
    %v1400 = vsel %vm328, %v1329, 0
    %v1403 = vsel %vm328, %v1330, 0
    %1405 = vmatpush.msra.mxu0 0.0
    %1406 = vmatpush.msra.mxu0 0.0
    %1407 = vmatpush.msra.mxu0 0.0
    %1408 = vmatpush.msra.mxu0 0.0
    %1409 = vmatpush.msra.mxu0 0.0
    %1410 = vmatpush.msra.mxu0 0.0
    %1411 = vmatpush.msra.mxu0 0.0
    %1412 = vmatpush.msra.mxu0 0.0
    %1413 = vmatpush.msra.mxu0 0.0
    %1414 = vmatpush.msra.mxu0 0.0
    %1415 = vmatpush.msra.mxu0 0.0
    %1416 = vmatpush.msra.mxu0 0.0
    %1417 = vmatpush.msra.mxu0 0.0
    %1418 = vmatpush.msra.mxu0 0.0
    %1419 = vmatpush.msra.mxu0 %v867
    %1420 = vmatpush.msra.mxu0 %v865
    %1421 = vmatmul.f32.gmra.mxu0 %v1400
    %v1422 = vpop.f32.mrf.mxu0
    %v1423 = vadd.f32 0.0, %v1422
    %1424 = vmatmul.f32.gmra.mxu0 %v1403
    %v1425 = vpop.f32.mrf.mxu0
    %v1426 = vadd.f32 0.0, %v1425
    %1427 = vdwg.mxu0
    %v1429 = vsel %vm328, %v1331, 0
    %v1432 = vsel %vm328, %v1332, 0
    %1434 = vmatpush.msra.mxu0 0.0
    %1435 = vmatpush.msra.mxu0 0.0
    %1436 = vmatpush.msra.mxu0 0.0
    %1437 = vmatpush.msra.mxu0 0.0
    %1438 = vmatpush.msra.mxu0 0.0
    %1439 = vmatpush.msra.mxu0 0.0
    %1440 = vmatpush.msra.mxu0 0.0
    %1441 = vmatpush.msra.mxu0 0.0
    %1442 = vmatpush.msra.mxu0 0.0
    %1443 = vmatpush.msra.mxu0 0.0
    %1444 = vmatpush.msra.mxu0 0.0
    %1445 = vmatpush.msra.mxu0 0.0
    %1446 = vmatpush.msra.mxu0 0.0
    %1447 = vmatpush.msra.mxu0 0.0
    %1448 = vmatpush.msra.mxu0 %v871
    %1449 = vmatpush.msra.mxu0 %v869
    %1450 = vmatmul.f32.gmra.mxu0 %v1429
    %v1451 = vpop.f32.mrf.mxu0
    %v1452 = vadd.f32 0.0, %v1451
    %1453 = vmatmul.f32.gmra.mxu0 %v1432
    %v1454 = vpop.f32.mrf.mxu0
    %v1455 = vadd.f32 0.0, %v1454
    %1456 = vdwg.mxu0
    %v1458 = vsel %vm328, %v1333, 0
    %v1461 = vsel %vm328, %v1334, 0
    %1463 = vmatpush.msra.mxu0 0.0
    %1464 = vmatpush.msra.mxu0 0.0
    %1465 = vmatpush.msra.mxu0 0.0
    %1466 = vmatpush.msra.mxu0 0.0
    %1467 = vmatpush.msra.mxu0 0.0
    %1468 = vmatpush.msra.mxu0 0.0
    %1469 = vmatpush.msra.mxu0 0.0
    %1470 = vmatpush.msra.mxu0 0.0
    %1471 = vmatpush.msra.mxu0 0.0
    %1472 = vmatpush.msra.mxu0 0.0
    %1473 = vmatpush.msra.mxu0 0.0
    %1474 = vmatpush.msra.mxu0 0.0
    %1475 = vmatpush.msra.mxu0 0.0
    %1476 = vmatpush.msra.mxu0 0.0
    %1477 = vmatpush.msra.mxu0 %v879
    %1478 = vmatpush.msra.mxu0 %v877
    %1479 = vmatmul.f32.gmra.mxu0 %v1458
    %v1480 = vpop.f32.mrf.mxu0
    %v1481 = vadd.f32 0.0, %v1480
    %1482 = vmatmul.f32.gmra.mxu0 %v1461
    %v1483 = vpop.f32.mrf.mxu0
    %v1484 = vadd.f32 0.0, %v1483
    %1485 = vdwg.mxu0
    %v1487 = vsel %vm328, %v1335, 0
    %v1490 = vsel %vm328, %v1336, 0
    %1492 = vmatpush.msra.mxu0 0.0
    %1493 = vmatpush.msra.mxu0 0.0
    %1494 = vmatpush.msra.mxu0 0.0
    %1495 = vmatpush.msra.mxu0 0.0
    %1496 = vmatpush.msra.mxu0 0.0
    %1497 = vmatpush.msra.mxu0 0.0
    %1498 = vmatpush.msra.mxu0 0.0
    %1499 = vmatpush.msra.mxu0 0.0
    %1500 = vmatpush.msra.mxu0 0.0
    %1501 = vmatpush.msra.mxu0 0.0
    %1502 = vmatpush.msra.mxu0 0.0
    %1503 = vmatpush.msra.mxu0 0.0
    %1504 = vmatpush.msra.mxu0 0.0
    %1505 = vmatpush.msra.mxu0 0.0
    %1506 = vmatpush.msra.mxu0 %v883
    %1507 = vmatpush.msra.mxu0 %v881
    %1508 = vmatmul.f32.gmra.mxu0 %v1487
    %v1509 = vpop.f32.mrf.mxu0
    %v1510 = vadd.f32 0.0, %v1509
    %1511 = vmatmul.f32.gmra.mxu0 %v1490
    %v1512 = vpop.f32.mrf.mxu0
    %v1513 = vadd.f32 0.0, %v1512
    %1514 = vdwg.mxu0
    %v1516 = vsel %vm328, %v1337, 0
    %v1519 = vsel %vm328, %v1338, 0
    %1521 = vmatpush.msra.mxu0 0.0
    %1522 = vmatpush.msra.mxu0 0.0
    %1523 = vmatpush.msra.mxu0 0.0
    %1524 = vmatpush.msra.mxu0 0.0
    %1525 = vmatpush.msra.mxu0 0.0
    %1526 = vmatpush.msra.mxu0 0.0
    %1527 = vmatpush.msra.mxu0 0.0
    %1528 = vmatpush.msra.mxu0 0.0
    %1529 = vmatpush.msra.mxu0 0.0
    %1530 = vmatpush.msra.mxu0 0.0
    %1531 = vmatpush.msra.mxu0 0.0
    %1532 = vmatpush.msra.mxu0 0.0
    %1533 = vmatpush.msra.mxu0 0.0
    %1534 = vmatpush.msra.mxu0 0.0
    %1535 = vmatpush.msra.mxu0 %v891
    %1536 = vmatpush.msra.mxu0 %v889
    %1537 = vmatmul.f32.gmra.mxu0 %v1516
    %v1538 = vpop.f32.mrf.mxu0
    %v1539 = vadd.f32 0.0, %v1538
    %1540 = vmatmul.f32.gmra.mxu0 %v1519
    %v1541 = vpop.f32.mrf.mxu0
    %v1542 = vadd.f32 0.0, %v1541
    %1543 = vdwg.mxu0
    %v1545 = vsel %vm328, %v1339, 0
    %v1548 = vsel %vm328, %v1340, 0
    %1550 = vmatpush.msra.mxu0 0.0
    %1551 = vmatpush.msra.mxu0 0.0
    %1552 = vmatpush.msra.mxu0 0.0
    %1553 = vmatpush.msra.mxu0 0.0
    %1554 = vmatpush.msra.mxu0 0.0
    %1555 = vmatpush.msra.mxu0 0.0
    %1556 = vmatpush.msra.mxu0 0.0
    %1557 = vmatpush.msra.mxu0 0.0
    %1558 = vmatpush.msra.mxu0 0.0
    %1559 = vmatpush.msra.mxu0 0.0
    %1560 = vmatpush.msra.mxu0 0.0
    %1561 = vmatpush.msra.mxu0 0.0
    %1562 = vmatpush.msra.mxu0 0.0
    %1563 = vmatpush.msra.mxu0 0.0
    %1564 = vmatpush.msra.mxu0 %v895
    %1565 = vmatpush.msra.mxu0 %v893
    %1566 = vmatmul.f32.gmra.mxu0 %v1545
    %v1567 = vpop.f32.mrf.mxu0
    %v1568 = vadd.f32 0.0, %v1567
    %1569 = vmatmul.f32.gmra.mxu0 %v1548
    %v1570 = vpop.f32.mrf.mxu0
    %v1571 = vadd.f32 0.0, %v1570
    %1572 = vdwg.mxu0
    %v1573 = vld [vmem:[#allocation17] sm:$0xff]
    %v1574 = vld [vmem:[#allocation17 + $0x8] sm:$0xff]
    %v1575 = vld [vmem:[#allocation17 + $0x10] sm:$0xff]
    %v1576 = vld [vmem:[#allocation17 + $0x18] sm:$0xff]
    %v1577 = vld [vmem:[#allocation19] sm:$0x1]
    %v1579 = vsel %vm900, %v1365, 0
    %v1582 = vsel %vm900, %v1368, 0
    %v1585 = vsel %vm900, %v1394, 0
    %v1588 = vsel %vm900, %v1397, 0
    %1590 = vmatpush.msra.mxu0 0.0
    %1591 = vmatpush.msra.mxu0 0.0
    %1592 = vmatpush.msra.mxu0 0.0
    %1593 = vmatpush.msra.mxu0 0.0
    %1594 = vmatpush.msra.mxu0 0.0
    %1595 = vmatpush.msra.mxu0 0.0
    %1596 = vmatpush.msra.mxu0 0.0
    %1597 = vmatpush.msra.mxu0 0.0
    %1598 = vmatpush.msra.mxu0 0.0
    %1599 = vmatpush.msra.mxu0 0.0
    %1600 = vmatpush.msra.mxu0 0.0
    %1601 = vmatpush.msra.mxu0 0.0
    %1602 = vmatpush.msra.mxu0 0.0
    %1603 = vmatpush.msra.mxu0 0.0
    %1604 = vmatpush.msra.mxu0 0.0
    %1605 = vmatpush.msra.mxu0 %v1573
    %1606 = vmatmul.f32.gmra.mxu0 %v1579
    %v1607 = vpop.f32.mrf.mxu0
    %v1608 = vadd.f32 0.0, %v1607
    %1609 = vmatmul.f32.gmra.mxu0 %v1582
    %v1610 = vpop.f32.mrf.mxu0
    %v1611 = vadd.f32 0.0, %v1610
    %1612 = vmatmul.f32.gmra.mxu0 %v1585
    %v1613 = vpop.f32.mrf.mxu0
    %v1614 = vadd.f32 0.0, %v1613
    %1615 = vmatmul.f32.gmra.mxu0 %v1588
    %v1616 = vpop.f32.mrf.mxu0
    %v1617 = vadd.f32 0.0, %v1616
    %1618 = vdwg.mxu0
    %v1620 = vperm.slane %v1577, 0
    %v1622 = vadd.f32 %v1620, %v1608
    %v1623 = vadd.f32 %v1620, %v1611
    %v1624 = vadd.f32 %v1620, %v1614
    %v1625 = vadd.f32 %v1620, %v1617
    %v1627 = vsel %vm900, %v1423, 0
    %v1630 = vsel %vm900, %v1426, 0
    %v1633 = vsel %vm900, %v1452, 0
    %v1636 = vsel %vm900, %v1455, 0
    %1638 = vmatpush.msra.mxu0 0.0
    %1639 = vmatpush.msra.mxu0 0.0
    %1640 = vmatpush.msra.mxu0 0.0
    %1641 = vmatpush.msra.mxu0 0.0
    %1642 = vmatpush.msra.mxu0 0.0
    %1643 = vmatpush.msra.mxu0 0.0
    %1644 = vmatpush.msra.mxu0 0.0
    %1645 = vmatpush.msra.mxu0 0.0
    %1646 = vmatpush.msra.mxu0 0.0
    %1647 = vmatpush.msra.mxu0 0.0
    %1648 = vmatpush.msra.mxu0 0.0
    %1649 = vmatpush.msra.mxu0 0.0
    %1650 = vmatpush.msra.mxu0 0.0
    %1651 = vmatpush.msra.mxu0 0.0
    %1652 = vmatpush.msra.mxu0 0.0
    %1653 = vmatpush.msra.mxu0 %v1574
    %1654 = vmatmul.f32.gmra.mxu0 %v1627
    %v1655 = vpop.f32.mrf.mxu0
    %v1656 = vadd.f32 0.0, %v1655
    %1657 = vmatmul.f32.gmra.mxu0 %v1630
    %v1658 = vpop.f32.mrf.mxu0
    %v1659 = vadd.f32 0.0, %v1658
    %1660 = vmatmul.f32.gmra.mxu0 %v1633
    %v1661 = vpop.f32.mrf.mxu0
    %v1662 = vadd.f32 0.0, %v1661
    %1663 = vmatmul.f32.gmra.mxu0 %v1636
    %v1664 = vpop.f32.mrf.mxu0
    %v1665 = vadd.f32 0.0, %v1664
    %1666 = vdwg.mxu0
    %v1667 = vadd.f32 %v1622, %v1656
    %v1668 = vadd.f32 %v1623, %v1659
    %v1669 = vadd.f32 %v1624, %v1662
    %v1670 = vadd.f32 %v1625, %v1665
    %v1672 = vsel %vm900, %v1481, 0
    %v1675 = vsel %vm900, %v1484, 0
    %v1678 = vsel %vm900, %v1510, 0
    %v1681 = vsel %vm900, %v1513, 0
    %1683 = vmatpush.msra.mxu0 0.0
    %1684 = vmatpush.msra.mxu0 0.0
    %1685 = vmatpush.msra.mxu0 0.0
    %1686 = vmatpush.msra.mxu0 0.0
    %1687 = vmatpush.msra.mxu0 0.0
    %1688 = vmatpush.msra.mxu0 0.0
    %1689 = vmatpush.msra.mxu0 0.0
    %1690 = vmatpush.msra.mxu0 0.0
    %1691 = vmatpush.msra.mxu0 0.0
    %1692 = vmatpush.msra.mxu0 0.0
    %1693 = vmatpush.msra.mxu0 0.0
    %1694 = vmatpush.msra.mxu0 0.0
    %1695 = vmatpush.msra.mxu0 0.0
    %1696 = vmatpush.msra.mxu0 0.0
    %1697 = vmatpush.msra.mxu0 0.0
    %1698 = vmatpush.msra.mxu0 %v1575
    %1699 = vmatmul.f32.gmra.mxu0 %v1672
    %v1700 = vpop.f32.mrf.mxu0
    %v1701 = vadd.f32 0.0, %v1700
    %1702 = vmatmul.f32.gmra.mxu0 %v1675
    %v1703 = vpop.f32.mrf.mxu0
    %v1704 = vadd.f32 0.0, %v1703
    %1705 = vmatmul.f32.gmra.mxu0 %v1678
    %v1706 = vpop.f32.mrf.mxu0
    %v1707 = vadd.f32 0.0, %v1706
    %1708 = vmatmul.f32.gmra.mxu0 %v1681
    %v1709 = vpop.f32.mrf.mxu0
    %v1710 = vadd.f32 0.0, %v1709
    %1711 = vdwg.mxu0
    %v1712 = vadd.f32 %v1667, %v1701
    %v1713 = vadd.f32 %v1668, %v1704
    %v1714 = vadd.f32 %v1669, %v1707
    %v1715 = vadd.f32 %v1670, %v1710
    %v1717 = vsel %vm900, %v1539, 0
    %v1720 = vsel %vm900, %v1542, 0
    %v1723 = vsel %vm900, %v1568, 0
    %v1726 = vsel %vm900, %v1571, 0
    %1728 = vmatpush.msra.mxu0 0.0
    %1729 = vmatpush.msra.mxu0 0.0
    %1730 = vmatpush.msra.mxu0 0.0
    %1731 = vmatpush.msra.mxu0 0.0
    %1732 = vmatpush.msra.mxu0 0.0
    %1733 = vmatpush.msra.mxu0 0.0
    %1734 = vmatpush.msra.mxu0 0.0
    %1735 = vmatpush.msra.mxu0 0.0
    %1736 = vmatpush.msra.mxu0 0.0
    %1737 = vmatpush.msra.mxu0 0.0
    %1738 = vmatpush.msra.mxu0 0.0
    %1739 = vmatpush.msra.mxu0 0.0
    %1740 = vmatpush.msra.mxu0 0.0
    %1741 = vmatpush.msra.mxu0 0.0
    %1742 = vmatpush.msra.mxu0 0.0
    %1743 = vmatpush.msra.mxu0 %v1576
    %1744 = vmatmul.f32.gmra.mxu0 %v1717
    %v1745 = vpop.f32.mrf.mxu0
    %v1746 = vadd.f32 0.0, %v1745
    %1747 = vmatmul.f32.gmra.mxu0 %v1720
    %v1748 = vpop.f32.mrf.mxu0
    %v1749 = vadd.f32 0.0, %v1748
    %1750 = vmatmul.f32.gmra.mxu0 %v1723
    %v1751 = vpop.f32.mrf.mxu0
    %v1752 = vadd.f32 0.0, %v1751
    %1753 = vmatmul.f32.gmra.mxu0 %v1726
    %v1754 = vpop.f32.mrf.mxu0
    %v1755 = vadd.f32 0.0, %v1754
    %1756 = vdwg.mxu0
    %v1757 = vadd.f32 %v1712, %v1746
    %v1758 = vadd.f32 %v1713, %v1749
    %v1759 = vadd.f32 %v1714, %v1752
    %v1760 = vadd.f32 %v1715, %v1755
    %v1761 = vadd.f32 %v577, %v1757
    %v1762 = vadd.f32 %v578, %v1758
    %v1763 = vadd.f32 %v579, %v1759
    %v1764 = vadd.f32 %v580, %v1760
    %v1765 = vld [vmem:[#allocation20] sm:$0x1]
    %v1766 = vld [vmem:[#allocation22] sm:$0x1]
    %v1767 = vsel %vm583, %v1761, 0.0
    %1768 = vadd.xlane.f32.xlu0 %v1767
    %v1769 = vpop.xlane.xlu0 %1768
    %v1770 = vsel %vm583, %v1762, 0.0
    %1771 = vadd.xlane.f32.xlu0 %v1770
    %v1772 = vpop.xlane.xlu0 %1771
    %v1773 = vsel %vm583, %v1763, 0.0
    %1774 = vadd.xlane.f32.xlu0 %v1773
    %v1775 = vpop.xlane.xlu0 %1774
    %v1776 = vsel %vm583, %v1764, 0.0
    %1777 = vadd.xlane.f32.xlu0 %v1776
    %v1778 = vpop.xlane.xlu0 %1777
    %v1779 = vmul.f32 %v1769, %v602
    %v1780 = vmul.f32 %v1772, %v602
    %v1781 = vmul.f32 %v1775, %v602
    %v1782 = vmul.f32 %v1778, %v602
    %v1783 = vsub.f32 %v1761, %v1779
    %v1784 = vsub.f32 %v1762, %v1780
    %v1785 = vsub.f32 %v1763, %v1781
    %v1786 = vsub.f32 %v1764, %v1782
    %v1787 = vmul.f32 %v1783, %v1783
    %v1788 = vmul.f32 %v1784, %v1784
    %v1789 = vmul.f32 %v1785, %v1785
    %v1790 = vmul.f32 %v1786, %v1786
    %v1791 = vsel %vm583, %v1787, 0.0
    %1792 = vadd.xlane.f32.xlu0 %v1791
    %v1793 = vpop.xlane.xlu0 %1792
    %v1794 = vsel %vm583, %v1788, 0.0
    %1795 = vadd.xlane.f32.xlu0 %v1794
    %v1796 = vpop.xlane.xlu0 %1795
    %v1797 = vsel %vm583, %v1789, 0.0
    %1798 = vadd.xlane.f32.xlu0 %v1797
    %v1799 = vpop.xlane.xlu0 %1798
    %v1800 = vsel %vm583, %v1790, 0.0
    %1801 = vadd.xlane.f32.xlu0 %v1800
    %v1802 = vpop.xlane.xlu0 %1801
    %v1803 = vmul.f32 %v1793, %v602
    %v1804 = vmul.f32 %v1796, %v602
    %v1805 = vmul.f32 %v1799, %v602
    %v1806 = vmul.f32 %v1802, %v602
    %v1807 = vadd.f32 %v1803, 1e-05
    %v1808 = vadd.f32 %v1804, 1e-05
    %v1809 = vadd.f32 %v1805, 1e-05
    %v1810 = vadd.f32 %v1806, 1e-05
    %v1811 = vrsqrt.pop %v1807
    %v1812 = vmul.f32 %v1811, %v1807
    %v1813 = vmul.f32 %v1812, %v1811
    %v1814 = vmul.f32 0.5, %v1813
    %v1815 = vsub.f32 1.5, %v1814
    %v1816 = vmul.f32 %v1811, %v1815
    %vm1817 = vweird.f32 %v1807
    %vm1818 = vweird.f32 %v1811
    %vm1819 = vmor %vm1817, %vm1818
    %v1820 = vsel %vm1819, %v1811, %v1816
    %v1821 = vrsqrt.pop %v1808
    %v1822 = vmul.f32 %v1821, %v1808
    %v1823 = vmul.f32 %v1822, %v1821
    %v1824 = vmul.f32 0.5, %v1823
    %v1825 = vsub.f32 1.5, %v1824
    %v1826 = vmul.f32 %v1821, %v1825
    %vm1827 = vweird.f32 %v1808
    %vm1828 = vweird.f32 %v1821
    %vm1829 = vmor %vm1827, %vm1828
    %v1830 = vsel %vm1829, %v1821, %v1826
    %v1831 = vrsqrt.pop %v1809
    %v1832 = vmul.f32 %v1831, %v1809
    %v1833 = vmul.f32 %v1832, %v1831
    %v1834 = vmul.f32 0.5, %v1833
    %v1835 = vsub.f32 1.5, %v1834
    %v1836 = vmul.f32 %v1831, %v1835
    %vm1837 = vweird.f32 %v1809
    %vm1838 = vweird.f32 %v1831
    %vm1839 = vmor %vm1837, %vm1838
    %v1840 = vsel %vm1839, %v1831, %v1836
    %v1841 = vrsqrt.pop %v1810
    %v1842 = vmul.f32 %v1841, %v1810
    %v1843 = vmul.f32 %v1842, %v1841
    %v1844 = vmul.f32 0.5, %v1843
    %v1845 = vsub.f32 1.5, %v1844
    %v1846 = vmul.f32 %v1841, %v1845
    %vm1847 = vweird.f32 %v1810
    %vm1848 = vweird.f32 %v1841
    %vm1849 = vmor %vm1847, %vm1848
    %v1850 = vsel %vm1849, %v1841, %v1846
    %v1851 = vmul.f32 %v1783, %v1820
    %v1852 = vmul.f32 %v1784, %v1830
    %v1853 = vmul.f32 %v1785, %v1840
    %v1854 = vmul.f32 %v1786, %v1850
    %v1856 = vperm.slane %v1765, 0
    %v1858 = vmul.f32 %v1851, %v1856
    %v1859 = vmul.f32 %v1852, %v1856
    %v1860 = vmul.f32 %v1853, %v1856
    %v1861 = vmul.f32 %v1854, %v1856
    %v1863 = vperm.slane %v1766, 0
    %v1865 = vadd.f32 %v1858, %v1863
    %v1866 = vadd.f32 %v1859, %v1863
    %v1867 = vadd.f32 %v1860, %v1863
    %v1868 = vadd.f32 %v1861, %v1863
    %v1869 = vld [vmem:[#allocation23] sm:$0xff]
    %v1870 = vld [vmem:[#allocation23 + $0x8] sm:$0xff]
    %v1871 = vld [vmem:[#allocation23 + $0x10] sm:$0xff]
    %v1872 = vld [vmem:[#allocation23 + $0x18] sm:$0xff]
    %v1873 = vld [vmem:[#allocation25] sm:$0x1]
    %v1875 = vperm.slane %v1873, 0
    %v1878 = vsel %vm583, %v1865, 0
    %v1881 = vsel %vm583, %v1866, 0
    %v1884 = vsel %vm583, %v1867, 0
    %v1887 = vsel %vm583, %v1868, 0
    %1889 = vmatpush.msra.mxu0 0.0
    %1890 = vmatpush.msra.mxu0 0.0
    %1891 = vmatpush.msra.mxu0 0.0
    %1892 = vmatpush.msra.mxu0 0.0
    %1893 = vmatpush.msra.mxu0 0.0
    %1894 = vmatpush.msra.mxu0 0.0
    %1895 = vmatpush.msra.mxu0 0.0
    %1896 = vmatpush.msra.mxu0 0.0
    %1897 = vmatpush.msra.mxu0 0.0
    %1898 = vmatpush.msra.mxu0 0.0
    %1899 = vmatpush.msra.mxu0 0.0
    %1900 = vmatpush.msra.mxu0 0.0
    %1901 = vmatpush.msra.mxu0 %v1872
    %1902 = vmatpush.msra.mxu0 %v1871
    %1903 = vmatpush.msra.mxu0 %v1870
    %1904 = vmatpush.msra.mxu0 %v1869
    %1905 = vmatmul.f32.gmra.mxu0 %v1878
    %v1906 = vpop.f32.mrf.mxu0
    %v1907 = vadd.f32 %v1875, %v1906
    %1908 = vmatmul.f32.gmra.mxu0 %v1881
    %v1909 = vpop.f32.mrf.mxu0
    %v1910 = vadd.f32 %v1875, %v1909
    %1911 = vmatmul.f32.gmra.mxu0 %v1884
    %v1912 = vpop.f32.mrf.mxu0
    %v1913 = vadd.f32 %v1875, %v1912
    %1914 = vmatmul.f32.gmra.mxu0 %v1887
    %v1915 = vpop.f32.mrf.mxu0
    %v1916 = vadd.f32 %v1875, %v1915
    %1917 = vdwg.mxu0
    %v1918 = vmul.f32 %v1907, %v1907
    %v1919 = vmul.f32 %v1910, %v1910
    %v1920 = vmul.f32 %v1913, %v1913
    %v1921 = vmul.f32 %v1916, %v1916
    %v1922 = vmul.f32 %v1907, %v1918
    %v1923 = vmul.f32 %v1910, %v1919
    %v1924 = vmul.f32 %v1913, %v1920
    %v1925 = vmul.f32 %v1916, %v1921
    %v1926 = vmul.f32 %v1922, 0.044715
    %v1927 = vmul.f32 %v1923, 0.044715
    %v1928 = vmul.f32 %v1924, 0.044715
    %v1929 = vmul.f32 %v1925, 0.044715
    %v1930 = vadd.f32 %v1907, %v1926
    %v1931 = vadd.f32 %v1910, %v1927
    %v1932 = vadd.f32 %v1913, %v1928
    %v1933 = vadd.f32 %v1916, %v1929
    %v1934 = vmul.f32 %v1930, 0.7978846
    %v1935 = vmul.f32 %v1931, 0.7978846
    %v1936 = vmul.f32 %v1932, 0.7978846
    %v1937 = vmul.f32 %v1933, 0.7978846
    %v1938 = vtanh.pop %v1934
    %v1939 = vtanh.pop %v1935
    %v1940 = vtanh.pop %v1936
    %v1941 = vtanh.pop %v1937
    %v1942 = vadd.f32 %v1938, 1.0
    %v1943 = vadd.f32 %v1939, 1.0
    %v1944 = vadd.f32 %v1940, 1.0
    %v1945 = vadd.f32 %v1941, 1.0
    %v1946 = vmul.f32 %v1942, 0.5
    %v1947 = vmul.f32 %v1943, 0.5
    %v1948 = vmul.f32 %v1944, 0.5
    %v1949 = vmul.f32 %v1945, 0.5
    %v1950 = vmul.f32 %v1907, %v1946
    %v1951 = vmul.f32 %v1910, %v1947
    %v1952 = vmul.f32 %v1913, %v1948
    %v1953 = vmul.f32 %v1916, %v1949
    %v1954 = vld [vmem:[%s21] sm:$0xff]
    %v1955 = vld [vmem:[%s21 + $0x8] sm:$0xff]
    %v1956 = vld [vmem:[%s21 + $0x10] sm:$0xff]
    %v1957 = vld [vmem:[%s21 + $0x18] sm:$0xff]
    %v1958 = vld [vmem:[%s21 + $0x20] sm:$0xff]
    %v1959 = vld [vmem:[%s21 + $0x28] sm:$0xff]
    %v1960 = vld [vmem:[%s21 + $0x30] sm:$0xff]
    %v1961 = vld [vmem:[%s21 + $0x38] sm:$0xff]
    %v1962 = vld [vmem:[#allocation26] sm:$0x1]
    %v1964 = vperm.slane %v1962, 0
    %vm1966 = vcmask 523264
    %v1968 = vsel %vm1966, %v1950, 0
    %v1971 = vsel %vm1966, %v1951, 0
    %v1974 = vsel %vm1966, %v1952, 0
    %v1977 = vsel %vm1966, %v1953, 0
    %1979 = vmatpush.msra.mxu0 0.0
    %1980 = vmatpush.msra.mxu0 0.0
    %1981 = vmatpush.msra.mxu0 0.0
    %1982 = vmatpush.msra.mxu0 0.0
    %1983 = vmatpush.msra.mxu0 0.0
    %1984 = vmatpush.msra.mxu0 0.0
    %1985 = vmatpush.msra.mxu0 0.0
    %1986 = vmatpush.msra.mxu0 0.0
    %1987 = vmatpush.msra.mxu0 %v1961
    %1988 = vmatpush.msra.mxu0 %v1960
    %1989 = vmatpush.msra.mxu0 %v1959
    %1990 = vmatpush.msra.mxu0 %v1958
    %1991 = vmatpush.msra.mxu0 %v1957
    %1992 = vmatpush.msra.mxu0 %v1956
    %1993 = vmatpush.msra.mxu0 %v1955
    %1994 = vmatpush.msra.mxu0 %v1954
    %1995 = vmatmul.f32.gmra.mxu0 %v1968
    %v1996 = vpop.f32.mrf.mxu0
    %v1997 = vadd.f32 %v1964, %v1996
    %1998 = vmatmul.f32.gmra.mxu0 %v1971
    %v1999 = vpop.f32.mrf.mxu0
    %v2000 = vadd.f32 %v1964, %v1999
    %2001 = vmatmul.f32.gmra.mxu0 %v1974
    %v2002 = vpop.f32.mrf.mxu0
    %v2003 = vadd.f32 %v1964, %v2002
    %2004 = vmatmul.f32.gmra.mxu0 %v1977
    %v2005 = vpop.f32.mrf.mxu0
    %v2006 = vadd.f32 %v1964, %v2005
    %2007 = vdwg.mxu0
    %v2008 = vadd.f32 %v1761, %v1997
    %v2009 = vadd.f32 %v1762, %v2000
    %v2010 = vadd.f32 %v1763, %v2003
    %v2011 = vadd.f32 %v1764, %v2006
    %s2012 = scalar_lea.vmem [#allocation14], 1
    %v2013 = vld [vmem:[%s2012] sm:$0x1]
    %s2014 = scalar_lea.vmem [#allocation16], 1
    %v2015 = vld [vmem:[%s2014] sm:$0x1]
    %v2016 = vsel %vm583, %v2008, 0.0
    %2017 = vadd.xlane.f32.xlu0 %v2016
    %v2018 = vpop.xlane.xlu0 %2017
    %v2019 = vsel %vm583, %v2009, 0.0
    %2020 = vadd.xlane.f32.xlu0 %v2019
    %v2021 = vpop.xlane.xlu0 %2020
    %v2022 = vsel %vm583, %v2010, 0.0
    %2023 = vadd.xlane.f32.xlu0 %v2022
    %v2024 = vpop.xlane.xlu0 %2023
    %v2025 = vsel %vm583, %v2011, 0.0
    %2026 = vadd.xlane.f32.xlu0 %v2025
    %v2027 = vpop.xlane.xlu0 %2026
    %v2028 = vmul.f32 %v2018, %v602
    %v2029 = vmul.f32 %v2021, %v602
    %v2030 = vmul.f32 %v2024, %v602
    %v2031 = vmul.f32 %v2027, %v602
    %v2032 = vsub.f32 %v2008, %v2028
    %v2033 = vsub.f32 %v2009, %v2029
    %v2034 = vsub.f32 %v2010, %v2030
    %v2035 = vsub.f32 %v2011, %v2031
    %v2036 = vmul.f32 %v2032, %v2032
    %v2037 = vmul.f32 %v2033, %v2033
    %v2038 = vmul.f32 %v2034, %v2034
    %v2039 = vmul.f32 %v2035, %v2035
    %v2040 = vsel %vm583, %v2036, 0.0
    %2041 = vadd.xlane.f32.xlu0 %v2040
    %v2042 = vpop.xlane.xlu0 %2041
    %v2043 = vsel %vm583, %v2037, 0.0
    %2044 = vadd.xlane.f32.xlu0 %v2043
    %v2045 = vpop.xlane.xlu0 %2044
    %v2046 = vsel %vm583, %v2038, 0.0
    %2047 = vadd.xlane.f32.xlu0 %v2046
    %v2048 = vpop.xlane.xlu0 %2047
    %v2049 = vsel %vm583, %v2039, 0.0
    %2050 = vadd.xlane.f32.xlu0 %v2049
    %v2051 = vpop.xlane.xlu0 %2050
    %v2052 = vmul.f32 %v2042, %v602
    %v2053 = vmul.f32 %v2045, %v602
    %v2054 = vmul.f32 %v2048, %v602
    %v2055 = vmul.f32 %v2051, %v602
    %v2056 = vadd.f32 %v2052, 1e-05
    %v2057 = vadd.f32 %v2053, 1e-05
    %v2058 = vadd.f32 %v2054, 1e-05
    %v2059 = vadd.f32 %v2055, 1e-05
    %v2060 = vrsqrt.pop %v2056
    %v2061 = vmul.f32 %v2060, %v2056
    %v2062 = vmul.f32 %v2061, %v2060
    %v2063 = vmul.f32 0.5, %v2062
    %v2064 = vsub.f32 1.5, %v2063
    %v2065 = vmul.f32 %v2060, %v2064
    %vm2066 = vweird.f32 %v2056
    %vm2067 = vweird.f32 %v2060
    %vm2068 = vmor %vm2066, %vm2067
    %v2069 = vsel %vm2068, %v2060, %v2065
    %v2070 = vrsqrt.pop %v2057
    %v2071 = vmul.f32 %v2070, %v2057
    %v2072 = vmul.f32 %v2071, %v2070
    %v2073 = vmul.f32 0.5, %v2072
    %v2074 = vsub.f32 1.5, %v2073
    %v2075 = vmul.f32 %v2070, %v2074
    %vm2076 = vweird.f32 %v2057
    %vm2077 = vweird.f32 %v2070
    %vm2078 = vmor %vm2076, %vm2077
    %v2079 = vsel %vm2078, %v2070, %v2075
    %v2080 = vrsqrt.pop %v2058
    %v2081 = vmul.f32 %v2080, %v2058
    %v2082 = vmul.f32 %v2081, %v2080
    %v2083 = vmul.f32 0.5, %v2082
    %v2084 = vsub.f32 1.5, %v2083
    %v2085 = vmul.f32 %v2080, %v2084
    %vm2086 = vweird.f32 %v2058
    %vm2087 = vweird.f32 %v2080
    %vm2088 = vmor %vm2086, %vm2087
    %v2089 = vsel %vm2088, %v2080, %v2085
    %v2090 = vrsqrt.pop %v2059
    %v2091 = vmul.f32 %v2090, %v2059
    %v2092 = vmul.f32 %v2091, %v2090
    %v2093 = vmul.f32 0.5, %v2092
    %v2094 = vsub.f32 1.5, %v2093
    %v2095 = vmul.f32 %v2090, %v2094
    %vm2096 = vweird.f32 %v2059
    %vm2097 = vweird.f32 %v2090
    %vm2098 = vmor %vm2096, %vm2097
    %v2099 = vsel %vm2098, %v2090, %v2095
    %v2100 = vmul.f32 %v2032, %v2069
    %v2101 = vmul.f32 %v2033, %v2079
    %v2102 = vmul.f32 %v2034, %v2089
    %v2103 = vmul.f32 %v2035, %v2099
    %v2105 = vperm.slane %v2013, 0
    %v2107 = vmul.f32 %v2100, %v2105
    %v2108 = vmul.f32 %v2101, %v2105
    %v2109 = vmul.f32 %v2102, %v2105
    %v2110 = vmul.f32 %v2103, %v2105
    %v2112 = vperm.slane %v2015, 0
    %v2114 = vadd.f32 %v2107, %v2112
    %v2115 = vadd.f32 %v2108, %v2112
    %v2116 = vadd.f32 %v2109, %v2112
    %v2117 = vadd.f32 %v2110, %v2112
    %s2118 = scalar_lea.vmem %s12, 32
    %v2119 = vld [vmem:[%s2118] sm:$0xff]
    %v2120 = vld [vmem:[%s2118 + $0x8] sm:$0xff]
    %v2121 = vld [vmem:[%s2118 + $0x10] sm:$0xff]
    %v2122 = vld [vmem:[%s2118 + $0x18] sm:$0xff]
    %v2124 = vsel %vm583, %v2114, 0
    %v2127 = vsel %vm583, %v2115, 0
    %v2130 = vsel %vm583, %v2116, 0
    %v2133 = vsel %vm583, %v2117, 0
    %2135 = vmatpush.msra.mxu0 0.0
    %2136 = vmatpush.msra.mxu0 0.0
    %2137 = vmatpush.msra.mxu0 0.0
    %2138 = vmatpush.msra.mxu0 0.0
    %2139 = vmatpush.msra.mxu0 0.0
    %2140 = vmatpush.msra.mxu0 0.0
    %2141 = vmatpush.msra.mxu0 0.0
    %2142 = vmatpush.msra.mxu0 0.0
    %2143 = vmatpush.msra.mxu0 0.0
    %2144 = vmatpush.msra.mxu0 0.0
    %2145 = vmatpush.msra.mxu0 0.0
    %2146 = vmatpush.msra.mxu0 0.0
    %2147 = vmatpush.msra.mxu0 %v2122
    %2148 = vmatpush.msra.mxu0 %v2121
    %2149 = vmatpush.msra.mxu0 %v2120
    %2150 = vmatpush.msra.mxu0 %v2119
    %2151 = vmatmul.f32.gmra.mxu0 %v2124
    %v2152 = vpop.f32.mrf.mxu0
    %v2153 = vadd.f32 0.0, %v2152
    %2154 = vmatmul.f32.gmra.mxu0 %v2127
    %v2155 = vpop.f32.mrf.mxu0
    %v2156 = vadd.f32 0.0, %v2155
    %2157 = vmatmul.f32.gmra.mxu0 %v2130
    %v2158 = vpop.f32.mrf.mxu0
    %v2159 = vadd.f32 0.0, %v2158
    %2160 = vmatmul.f32.gmra.mxu0 %v2133
    %v2161 = vpop.f32.mrf.mxu0
    %v2162 = vadd.f32 0.0, %v2161
    %2163 = vdwg.mxu0
    %s2164 = scalar_lea.vmem %s13, 32
    %v2165 = vld [vmem:[%s2164] sm:$0xff]
    %v2166 = vld [vmem:[%s2164 + $0x8] sm:$0xff]
    %v2167 = vld [vmem:[%s2164 + $0x10] sm:$0xff]
    %v2168 = vld [vmem:[%s2164 + $0x18] sm:$0xff]
    %2169 = vmatpush.msra.mxu0 0.0
    %2170 = vmatpush.msra.mxu0 0.0
    %2171 = vmatpush.msra.mxu0 0.0
    %2172 = vmatpush.msra.mxu0 0.0
    %2173 = vmatpush.msra.mxu0 0.0
    %2174 = vmatpush.msra.mxu0 0.0
    %2175 = vmatpush.msra.mxu0 0.0
    %2176 = vmatpush.msra.mxu0 0.0
    %2177 = vmatpush.msra.mxu0 0.0
    %2178 = vmatpush.msra.mxu0 0.0
    %2179 = vmatpush.msra.mxu0 0.0
    %2180 = vmatpush.msra.mxu0 0.0
    %2181 = vmatpush.msra.mxu0 %v2168
    %2182 = vmatpush.msra.mxu0 %v2167
    %2183 = vmatpush.msra.mxu0 %v2166
    %2184 = vmatpush.msra.mxu0 %v2165
    %2185 = vmatmul.f32.gmra.mxu0 %v2124
    %v2186 = vpop.f32.mrf.mxu0
    %v2187 = vadd.f32 0.0, %v2186
    %2188 = vmatmul.f32.gmra.mxu0 %v2127
    %v2189 = vpop.f32.mrf.mxu0
    %v2190 = vadd.f32 0.0, %v2189
    %2191 = vmatmul.f32.gmra.mxu0 %v2130
    %v2192 = vpop.f32.mrf.mxu0
    %v2193 = vadd.f32 0.0, %v2192
    %2194 = vmatmul.f32.gmra.mxu0 %v2133
    %v2195 = vpop.f32.mrf.mxu0
    %v2196 = vadd.f32 0.0, %v2195
    %2197 = vdwg.mxu0
    %s2198 = scalar_lea.vmem %s14, 32
    %v2199 = vld [vmem:[%s2198] sm:$0xff]
    %v2200 = vld [vmem:[%s2198 + $0x8] sm:$0xff]
    %v2201 = vld [vmem:[%s2198 + $0x10] sm:$0xff]
    %v2202 = vld [vmem:[%s2198 + $0x18] sm:$0xff]
    %2203 = vmatpush.msra.mxu0 0.0
    %2204 = vmatpush.msra.mxu0 0.0
    %2205 = vmatpush.msra.mxu0 0.0
    %2206 = vmatpush.msra.mxu0 0.0
    %2207 = vmatpush.msra.mxu0 0.0
    %2208 = vmatpush.msra.mxu0 0.0
    %2209 = vmatpush.msra.mxu0 0.0
    %2210 = vmatpush.msra.mxu0 0.0
    %2211 = vmatpush.msra.mxu0 0.0
    %2212 = vmatpush.msra.mxu0 0.0
    %2213 = vmatpush.msra.mxu0 0.0
    %2214 = vmatpush.msra.mxu0 0.0
    %2215 = vmatpush.msra.mxu0 %v2202
    %2216 = vmatpush.msra.mxu0 %v2201
    %2217 = vmatpush.msra.mxu0 %v2200
    %2218 = vmatpush.msra.mxu0 %v2199
    %2219 = vmatmul.f32.gmra.mxu0 %v2124
    %v2220 = vpop.f32.mrf.mxu0
    %v2221 = vadd.f32 0.0, %v2220
    %2222 = vmatmul.f32.gmra.mxu0 %v2127
    %v2223 = vpop.f32.mrf.mxu0
    %v2224 = vadd.f32 0.0, %v2223
    %2225 = vmatmul.f32.gmra.mxu0 %v2130
    %v2226 = vpop.f32.mrf.mxu0
    %v2227 = vadd.f32 0.0, %v2226
    %2228 = vmatmul.f32.gmra.mxu0 %v2133
    %v2229 = vpop.f32.mrf.mxu0
    %v2230 = vadd.f32 0.0, %v2229
    %2231 = vdwg.mxu0
    %2236 = vrot.lane.b32.xlu0 %v2153, 120
    %v2237 = vpop.permute.xlu0 %2236
    %2238 = vrot.lane.b32.xlu0 %v2156, 120
    %v2239 = vpop.permute.xlu0 %2238
    %2240 = vrot.lane.b32.xlu0 %v2159, 120
    %v2241 = vpop.permute.xlu0 %2240
    %2242 = vrot.lane.b32.xlu0 %v2162, 120
    %v2243 = vpop.permute.xlu0 %2242
    %2244 = vrot.lane.b32.xlu0 %v2153, 112
    %v2245 = vpop.permute.xlu0 %2244
    %2246 = vrot.lane.b32.xlu0 %v2156, 112
    %v2247 = vpop.permute.xlu0 %2246
    %2248 = vrot.lane.b32.xlu0 %v2159, 112
    %v2249 = vpop.permute.xlu0 %2248
    %2250 = vrot.lane.b32.xlu0 %v2162, 112
    %v2251 = vpop.permute.xlu0 %2250
    %2252 = vrot.lane.b32.xlu0 %v2153, 104
    %v2253 = vpop.permute.xlu0 %2252
    %2254 = vrot.lane.b32.xlu0 %v2156, 104
    %v2255 = vpop.permute.xlu0 %2254
    %2256 = vrot.lane.b32.xlu0 %v2159, 104
    %v2257 = vpop.permute.xlu0 %2256
    %2258 = vrot.lane.b32.xlu0 %v2162, 104
    %v2259 = vpop.permute.xlu0 %2258
    %2264 = vrot.lane.b32.xlu0 %v2187, 120
    %v2265 = vpop.permute.xlu0 %2264
    %2266 = vrot.lane.b32.xlu0 %v2190, 120
    %v2267 = vpop.permute.xlu0 %2266
    %2268 = vrot.lane.b32.xlu0 %v2193, 120
    %v2269 = vpop.permute.xlu0 %2268
    %2270 = vrot.lane.b32.xlu0 %v2196, 120
    %v2271 = vpop.permute.xlu0 %2270
    %2272 = vrot.lane.b32.xlu0 %v2187, 112
    %v2273 = vpop.permute.xlu0 %2272
    %2274 = vrot.lane.b32.xlu0 %v2190, 112
    %v2275 = vpop.permute.xlu0 %2274
    %2276 = vrot.lane.b32.xlu0 %v2193, 112
    %v2277 = vpop.permute.xlu0 %2276
    %2278 = vrot.lane.b32.xlu0 %v2196, 112
    %v2279 = vpop.permute.xlu0 %2278
    %2280 = vrot.lane.b32.xlu0 %v2187, 104
    %v2281 = vpop.permute.xlu0 %2280
    %2282 = vrot.lane.b32.xlu0 %v2190, 104
    %v2283 = vpop.permute.xlu0 %2282
    %2284 = vrot.lane.b32.xlu0 %v2193, 104
    %v2285 = vpop.permute.xlu0 %2284
    %2286 = vrot.lane.b32.xlu0 %v2196, 104
    %v2287 = vpop.permute.xlu0 %2286
    %2292 = vrot.lane.b32.xlu0 %v2221, 120
    %v2293 = vpop.permute.xlu0 %2292
    %2294 = vrot.lane.b32.xlu0 %v2224, 120
    %v2295 = vpop.permute.xlu0 %2294
    %2296 = vrot.lane.b32.xlu0 %v2227, 120
    %v2297 = vpop.permute.xlu0 %2296
    %2298 = vrot.lane.b32.xlu0 %v2230, 120
    %v2299 = vpop.permute.xlu0 %2298
    %2304 = vrot.lane.b32.xlu0 %v2221, 112
    %v2305 = vpop.permute.xlu0 %2304
    %2306 = vrot.lane.b32.xlu0 %v2224, 112
    %v2307 = vpop.permute.xlu0 %2306
    %2308 = vrot.lane.b32.xlu0 %v2227, 112
    %v2309 = vpop.permute.xlu0 %2308
    %2310 = vrot.lane.b32.xlu0 %v2230, 112
    %v2311 = vpop.permute.xlu0 %2310
    %2316 = vrot.lane.b32.xlu0 %v2221, 104
    %v2317 = vpop.permute.xlu0 %2316
    %2318 = vrot.lane.b32.xlu0 %v2224, 104
    %v2319 = vpop.permute.xlu0 %2318
    %2320 = vrot.lane.b32.xlu0 %v2227, 104
    %v2321 = vpop.permute.xlu0 %2320
    %2322 = vrot.lane.b32.xlu0 %v2230, 104
    %v2323 = vpop.permute.xlu0 %2322
    %v2328 = vsel %vm900, %v2153, 0
    %v2330 = vsel %vm900, %v2156, 0
    %v2332 = vsel %vm900, %v2187, 0
    %v2334 = vsel %vm900, %v2190, 0
    %2336 = vmatpush.xpose.msra.mxu0 0.0
    %2337 = vmatpush.xpose.msra.mxu0 0.0
    %2338 = vmatpush.xpose.msra.mxu0 0.0
    %2339 = vmatpush.xpose.msra.mxu0 0.0
    %2340 = vmatpush.xpose.msra.mxu0 0.0
    %2341 = vmatpush.xpose.msra.mxu0 0.0
    %2342 = vmatpush.xpose.msra.mxu0 0.0
    %2343 = vmatpush.xpose.msra.mxu0 0.0
    %2344 = vmatpush.xpose.msra.mxu0 0.0
    %2345 = vmatpush.xpose.msra.mxu0 0.0
    %2346 = vmatpush.xpose.msra.mxu0 0.0
    %2347 = vmatpush.xpose.msra.mxu0 0.0
    %2348 = vmatpush.xpose.msra.mxu0 0.0
    %2349 = vmatpush.xpose.msra.mxu0 0.0
    %2350 = vmatpush.xpose.msra.mxu0 %v2334
    %2351 = vmatpush.xpose.msra.mxu0 %v2332
    %2352 = vmatmul.f32.gmra.mxu0 %v2328
    %v2353 = vpop.f32.mrf.mxu0
    %v2354 = vadd.f32 0.0, %v2353
    %2355 = vmatmul.f32.gmra.mxu0 %v2330
    %v2356 = vpop.f32.mrf.mxu0
    %v2357 = vadd.f32 0.0, %v2356
    %2358 = vdwg.mxu0
    %v2359 = vsel %vm900, %v2159, 0
    %v2361 = vsel %vm900, %v2162, 0
    %v2363 = vsel %vm900, %v2193, 0
    %v2365 = vsel %vm900, %v2196, 0
    %2367 = vmatpush.xpose.msra.mxu0 0.0
    %2368 = vmatpush.xpose.msra.mxu0 0.0
    %2369 = vmatpush.xpose.msra.mxu0 0.0
    %2370 = vmatpush.xpose.msra.mxu0 0.0
    %2371 = vmatpush.xpose.msra.mxu0 0.0
    %2372 = vmatpush.xpose.msra.mxu0 0.0
    %2373 = vmatpush.xpose.msra.mxu0 0.0
    %2374 = vmatpush.xpose.msra.mxu0 0.0
    %2375 = vmatpush.xpose.msra.mxu0 0.0
    %2376 = vmatpush.xpose.msra.mxu0 0.0
    %2377 = vmatpush.xpose.msra.mxu0 0.0
    %2378 = vmatpush.xpose.msra.mxu0 0.0
    %2379 = vmatpush.xpose.msra.mxu0 0.0
    %2380 = vmatpush.xpose.msra.mxu0 0.0
    %2381 = vmatpush.xpose.msra.mxu0 %v2365
    %2382 = vmatpush.xpose.msra.mxu0 %v2363
    %2383 = vmatmul.f32.gmra.mxu0 %v2359
    %v2384 = vpop.f32.mrf.mxu0
    %v2385 = vadd.f32 0.0, %v2384
    %2386 = vmatmul.f32.gmra.mxu0 %v2361
    %v2387 = vpop.f32.mrf.mxu0
    %v2388 = vadd.f32 0.0, %v2387
    %2389 = vdwg.mxu0
    %v2390 = vsel %vm900, %v2237, 0
    %v2392 = vsel %vm900, %v2239, 0
    %v2394 = vsel %vm900, %v2265, 0
    %v2396 = vsel %vm900, %v2267, 0
    %2398 = vmatpush.xpose.msra.mxu0 0.0
    %2399 = vmatpush.xpose.msra.mxu0 0.0
    %2400 = vmatpush.xpose.msra.mxu0 0.0
    %2401 = vmatpush.xpose.msra.mxu0 0.0
    %2402 = vmatpush.xpose.msra.mxu0 0.0
    %2403 = vmatpush.xpose.msra.mxu0 0.0
    %2404 = vmatpush.xpose.msra.mxu0 0.0
    %2405 = vmatpush.xpose.msra.mxu0 0.0
    %2406 = vmatpush.xpose.msra.mxu0 0.0
    %2407 = vmatpush.xpose.msra.mxu0 0.0
    %2408 = vmatpush.xpose.msra.mxu0 0.0
    %2409 = vmatpush.xpose.msra.mxu0 0.0
    %2410 = vmatpush.xpose.msra.mxu0 0.0
    %2411 = vmatpush.xpose.msra.mxu0 0.0
    %2412 = vmatpush.xpose.msra.mxu0 %v2396
    %2413 = vmatpush.xpose.msra.mxu0 %v2394
    %2414 = vmatmul.f32.gmra.mxu0 %v2390
    %v2415 = vpop.f32.mrf.mxu0
    %v2416 = vadd.f32 0.0, %v2415
    %2417 = vmatmul.f32.gmra.mxu0 %v2392
    %v2418 = vpop.f32.mrf.mxu0
    %v2419 = vadd.f32 0.0, %v2418
    %2420 = vdwg.mxu0
    %v2421 = vsel %vm900, %v2241, 0
    %v2423 = vsel %vm900, %v2243, 0
    %v2425 = vsel %vm900, %v2269, 0
    %v2427 = vsel %vm900, %v2271, 0
    %2429 = vmatpush.xpose.msra.mxu0 0.0
    %2430 = vmatpush.xpose.msra.mxu0 0.0
    %2431 = vmatpush.xpose.msra.mxu0 0.0
    %2432 = vmatpush.xpose.msra.mxu0 0.0
    %2433 = vmatpush.xpose.msra.mxu0 0.0
    %2434 = vmatpush.xpose.msra.mxu0 0.0
    %2435 = vmatpush.xpose.msra.mxu0 0.0
    %2436 = vmatpush.xpose.msra.mxu0 0.0
    %2437 = vmatpush.xpose.msra.mxu0 0.0
    %2438 = vmatpush.xpose.msra.mxu0 0.0
    %2439 = vmatpush.xpose.msra.mxu0 0.0
    %2440 = vmatpush.xpose.msra.mxu0 0.0
    %2441 = vmatpush.xpose.msra.mxu0 0.0
    %2442 = vmatpush.xpose.msra.mxu0 0.0
    %2443 = vmatpush.xpose.msra.mxu0 %v2427
    %2444 = vmatpush.xpose.msra.mxu0 %v2425
    %2445 = vmatmul.f32.gmra.mxu0 %v2421
    %v2446 = vpop.f32.mrf.mxu0
    %v2447 = vadd.f32 0.0, %v2446
    %2448 = vmatmul.f32.gmra.mxu0 %v2423
    %v2449 = vpop.f32.mrf.mxu0
    %v2450 = vadd.f32 0.0, %v2449
    %2451 = vdwg.mxu0
    %v2452 = vsel %vm900, %v2245, 0
    %v2454 = vsel %vm900, %v2247, 0
    %v2456 = vsel %vm900, %v2273, 0
    %v2458 = vsel %vm900, %v2275, 0
    %2460 = vmatpush.xpose.msra.mxu0 0.0
    %2461 = vmatpush.xpose.msra.mxu0 0.0
    %2462 = vmatpush.xpose.msra.mxu0 0.0
    %2463 = vmatpush.xpose.msra.mxu0 0.0
    %2464 = vmatpush.xpose.msra.mxu0 0.0
    %2465 = vmatpush.xpose.msra.mxu0 0.0
    %2466 = vmatpush.xpose.msra.mxu0 0.0
    %2467 = vmatpush.xpose.msra.mxu0 0.0
    %2468 = vmatpush.xpose.msra.mxu0 0.0
    %2469 = vmatpush.xpose.msra.mxu0 0.0
    %2470 = vmatpush.xpose.msra.mxu0 0.0
    %2471 = vmatpush.xpose.msra.mxu0 0.0
    %2472 = vmatpush.xpose.msra.mxu0 0.0
    %2473 = vmatpush.xpose.msra.mxu0 0.0
    %2474 = vmatpush.xpose.msra.mxu0 %v2458
    %2475 = vmatpush.xpose.msra.mxu0 %v2456
    %2476 = vmatmul.f32.gmra.mxu0 %v2452
    %v2477 = vpop.f32.mrf.mxu0
    %v2478 = vadd.f32 0.0, %v2477
    %2479 = vmatmul.f32.gmra.mxu0 %v2454
    %v2480 = vpop.f32.mrf.mxu0
    %v2481 = vadd.f32 0.0, %v2480
    %2482 = vdwg.mxu0
    %v2483 = vsel %vm900, %v2249, 0
    %v2485 = vsel %vm900, %v2251, 0
    %v2487 = vsel %vm900, %v2277, 0
    %v2489 = vsel %vm900, %v2279, 0
    %2491 = vmatpush.xpose.msra.mxu0 0.0
    %2492 = vmatpush.xpose.msra.mxu0 0.0
    %2493 = vmatpush.xpose.msra.mxu0 0.0
    %2494 = vmatpush.xpose.msra.mxu0 0.0
    %2495 = vmatpush.xpose.msra.mxu0 0.0
    %2496 = vmatpush.xpose.msra.mxu0 0.0
    %2497 = vmatpush.xpose.msra.mxu0 0.0
    %2498 = vmatpush.xpose.msra.mxu0 0.0
    %2499 = vmatpush.xpose.msra.mxu0 0.0
    %2500 = vmatpush.xpose.msra.mxu0 0.0
    %2501 = vmatpush.xpose.msra.mxu0 0.0
    %2502 = vmatpush.xpose.msra.mxu0 0.0
    %2503 = vmatpush.xpose.msra.mxu0 0.0
    %2504 = vmatpush.xpose.msra.mxu0 0.0
    %2505 = vmatpush.xpose.msra.mxu0 %v2489
    %2506 = vmatpush.xpose.msra.mxu0 %v2487
    %2507 = vmatmul.f32.gmra.mxu0 %v2483
    %v2508 = vpop.f32.mrf.mxu0
    %v2509 = vadd.f32 0.0, %v2508
    %2510 = vmatmul.f32.gmra.mxu0 %v2485
    %v2511 = vpop.f32.mrf.mxu0
    %v2512 = vadd.f32 0.0, %v2511
    %2513 = vdwg.mxu0
    %v2514 = vsel %vm900, %v2253, 0
    %v2516 = vsel %vm900, %v2255, 0
    %v2518 = vsel %vm900, %v2281, 0
    %v2520 = vsel %vm900, %v2283, 0
    %2522 = vmatpush.xpose.msra.mxu0 0.0
    %2523 = vmatpush.xpose.msra.mxu0 0.0
    %2524 = vmatpush.xpose.msra.mxu0 0.0
    %2525 = vmatpush.xpose.msra.mxu0 0.0
    %2526 = vmatpush.xpose.msra.mxu0 0.0
    %2527 = vmatpush.xpose.msra.mxu0 0.0
    %2528 = vmatpush.xpose.msra.mxu0 0.0
    %2529 = vmatpush.xpose.msra.mxu0 0.0
    %2530 = vmatpush.xpose.msra.mxu0 0.0
    %2531 = vmatpush.xpose.msra.mxu0 0.0
    %2532 = vmatpush.xpose.msra.mxu0 0.0
    %2533 = vmatpush.xpose.msra.mxu0 0.0
    %2534 = vmatpush.xpose.msra.mxu0 0.0
    %2535 = vmatpush.xpose.msra.mxu0 0.0
    %2536 = vmatpush.xpose.msra.mxu0 %v2520
    %2537 = vmatpush.xpose.msra.mxu0 %v2518
    %2538 = vmatmul.f32.gmra.mxu0 %v2514
    %v2539 = vpop.f32.mrf.mxu0
    %v2540 = vadd.f32 0.0, %v2539
    %2541 = vmatmul.f32.gmra.mxu0 %v2516
    %v2542 = vpop.f32.mrf.mxu0
    %v2543 = vadd.f32 0.0, %v2542
    %2544 = vdwg.mxu0
    %v2545 = vsel %vm900, %v2257, 0
    %v2547 = vsel %vm900, %v2259, 0
    %v2549 = vsel %vm900, %v2285, 0
    %v2551 = vsel %vm900, %v2287, 0
    %2553 = vmatpush.xpose.msra.mxu0 0.0
    %2554 = vmatpush.xpose.msra.mxu0 0.0
    %2555 = vmatpush.xpose.msra.mxu0 0.0
    %2556 = vmatpush.xpose.msra.mxu0 0.0
    %2557 = vmatpush.xpose.msra.mxu0 0.0
    %2558 = vmatpush.xpose.msra.mxu0 0.0
    %2559 = vmatpush.xpose.msra.mxu0 0.0
    %2560 = vmatpush.xpose.msra.mxu0 0.0
    %2561 = vmatpush.xpose.msra.mxu0 0.0
    %2562 = vmatpush.xpose.msra.mxu0 0.0
    %2563 = vmatpush.xpose.msra.mxu0 0.0
    %2564 = vmatpush.xpose.msra.mxu0 0.0
    %2565 = vmatpush.xpose.msra.mxu0 0.0
    %2566 = vmatpush.xpose.msra.mxu0 0.0
    %2567 = vmatpush.xpose.msra.mxu0 %v2551
    %2568 = vmatpush.xpose.msra.mxu0 %v2549
    %2569 = vmatmul.f32.gmra.mxu0 %v2545
    %v2570 = vpop.f32.mrf.mxu0
    %v2571 = vadd.f32 0.0, %v2570
    %2572 = vmatmul.f32.gmra.mxu0 %v2547
    %v2573 = vpop.f32.mrf.mxu0
    %v2574 = vadd.f32 0.0, %v2573
    %2575 = vdwg.mxu0
    %v2576 = vmul.f32 %v2354, 0.35355338
    %v2577 = vmul.f32 %v2357, 0.35355338
    %v2578 = vmul.f32 %v2385, 0.35355338
    %v2579 = vmul.f32 %v2388, 0.35355338
    %v2580 = vmul.f32 %v2416, 0.35355338
    %v2581 = vmul.f32 %v2419, 0.35355338
    %v2582 = vmul.f32 %v2447, 0.35355338
    %v2583 = vmul.f32 %v2450, 0.35355338
    %v2584 = vmul.f32 %v2478, 0.35355338
    %v2585 = vmul.f32 %v2481, 0.35355338
    %v2586 = vmul.f32 %v2509, 0.35355338
    %v2587 = vmul.f32 %v2512, 0.35355338
    %v2588 = vmul.f32 %v2540, 0.35355338
    %v2589 = vmul.f32 %v2543, 0.35355338
    %v2590 = vmul.f32 %v2571, 0.35355338
    %v2591 = vmul.f32 %v2574, 0.35355338
    %v2592 = vsel %vm328, %v2576, -inf
    %2593 = vmax.xlane.f32.xlu0 %v2592
    %v2594 = vpop.xlane.xlu0 %2593
    %v2595 = vsel %vm328, %v2577, -inf
    %2596 = vmax.xlane.f32.xlu0 %v2595
    %v2597 = vpop.xlane.xlu0 %2596
    %v2598 = vsel %vm328, %v2578, -inf
    %2599 = vmax.xlane.f32.xlu0 %v2598
    %v2600 = vpop.xlane.xlu0 %2599
    %v2601 = vsel %vm328, %v2579, -inf
    %2602 = vmax.xlane.f32.xlu0 %v2601
    %v2603 = vpop.xlane.xlu0 %2602
    %v2604 = vsel %vm328, %v2580, -inf
    %2605 = vmax.xlane.f32.xlu0 %v2604
    %v2606 = vpop.xlane.xlu0 %2605
    %v2607 = vsel %vm328, %v2581, -inf
    %2608 = vmax.xlane.f32.xlu0 %v2607
    %v2609 = vpop.xlane.xlu0 %2608
    %v2610 = vsel %vm328, %v2582, -inf
    %2611 = vmax.xlane.f32.xlu0 %v2610
    %v2612 = vpop.xlane.xlu0 %2611
    %v2613 = vsel %vm328, %v2583, -inf
    %2614 = vmax.xlane.f32.xlu0 %v2613
    %v2615 = vpop.xlane.xlu0 %2614
    %v2616 = vsel %vm328, %v2584, -inf
    %2617 = vmax.xlane.f32.xlu0 %v2616
    %v2618 = vpop.xlane.xlu0 %2617
    %v2619 = vsel %vm328, %v2585, -inf
    %2620 = vmax.xlane.f32.xlu0 %v2619
    %v2621 = vpop.xlane.xlu0 %2620
    %v2622 = vsel %vm328, %v2586, -inf
    %2623 = vmax.xlane.f32.xlu0 %v2622
    %v2624 = vpop.xlane.xlu0 %2623
    %v2625 = vsel %vm328, %v2587, -inf
    %2626 = vmax.xlane.f32.xlu0 %v2625
    %v2627 = vpop.xlane.xlu0 %2626
    %v2628 = vsel %vm328, %v2588, -inf
    %2629 = vmax.xlane.f32.xlu0 %v2628
    %v2630 = vpop.xlane.xlu0 %2629
    %v2631 = vsel %vm328, %v2589, -inf
    %2632 = vmax.xlane.f32.xlu0 %v2631
    %v2633 = vpop.xlane.xlu0 %2632
    %v2634 = vsel %vm328, %v2590, -inf
    %2635 = vmax.xlane.f32.xlu0 %v2634
    %v2636 = vpop.xlane.xlu0 %2635
    %v2637 = vsel %vm328, %v2591, -inf
    %2638 = vmax.xlane.f32.xlu0 %v2637
    %v2639 = vpop.xlane.xlu0 %2638
    %v2640 = vsub.f32 %v2576, %v2594
    %v2641 = vsub.f32 %v2577, %v2597
    %v2642 = vsub.f32 %v2578, %v2600
    %v2643 = vsub.f32 %v2579, %v2603
    %v2644 = vsub.f32 %v2580, %v2606
    %v2645 = vsub.f32 %v2581, %v2609
    %v2646 = vsub.f32 %v2582, %v2612
    %v2647 = vsub.f32 %v2583, %v2615
    %v2648 = vsub.f32 %v2584, %v2618
    %v2649 = vsub.f32 %v2585, %v2621
    %v2650 = vsub.f32 %v2586, %v2624
    %v2651 = vsub.f32 %v2587, %v2627
    %v2652 = vsub.f32 %v2588, %v2630
    %v2653 = vsub.f32 %v2589, %v2633
    %v2654 = vsub.f32 %v2590, %v2636
    %v2655 = vsub.f32 %v2591, %v2639
    %v2656 = vmul.f32 %v2640, 1.442695
    %v2657 = vpow.pop %v2656
    %v2658 = vmul.f32 %v2641, 1.442695
    %v2659 = vpow.pop %v2658
    %v2660 = vmul.f32 %v2642, 1.442695
    %v2661 = vpow.pop %v2660
    %v2662 = vmul.f32 %v2643, 1.442695
    %v2663 = vpow.pop %v2662
    %v2664 = vmul.f32 %v2644, 1.442695
    %v2665 = vpow.pop %v2664
    %v2666 = vmul.f32 %v2645, 1.442695
    %v2667 = vpow.pop %v2666
    %v2668 = vmul.f32 %v2646, 1.442695
    %v2669 = vpow.pop %v2668
    %v2670 = vmul.f32 %v2647, 1.442695
    %v2671 = vpow.pop %v2670
    %v2672 = vmul.f32 %v2648, 1.442695
    %v2673 = vpow.pop %v2672
    %v2674 = vmul.f32 %v2649, 1.442695
    %v2675 = vpow.pop %v2674
    %v2676 = vmul.f32 %v2650, 1.442695
    %v2677 = vpow.pop %v2676
    %v2678 = vmul.f32 %v2651, 1.442695
    %v2679 = vpow.pop %v2678
    %v2680 = vmul.f32 %v2652, 1.442695
    %v2681 = vpow.pop %v2680
    %v2682 = vmul.f32 %v2653, 1.442695
    %v2683 = vpow.pop %v2682
    %v2684 = vmul.f32 %v2654, 1.442695
    %v2685 = vpow.pop %v2684
    %v2686 = vmul.f32 %v2655, 1.442695
    %v2687 = vpow.pop %v2686
    %v2688 = vsel %vm328, %v2657, 0.0
    %2689 = vadd.xlane.f32.xlu0 %v2688
    %v2690 = vpop.xlane.xlu0 %2689
    %v2691 = vsel %vm328, %v2659, 0.0
    %2692 = vadd.xlane.f32.xlu0 %v2691
    %v2693 = vpop.xlane.xlu0 %2692
    %v2694 = vsel %vm328, %v2661, 0.0
    %2695 = vadd.xlane.f32.xlu0 %v2694
    %v2696 = vpop.xlane.xlu0 %2695
    %v2697 = vsel %vm328, %v2663, 0.0
    %2698 = vadd.xlane.f32.xlu0 %v2697
    %v2699 = vpop.xlane.xlu0 %2698
    %v2700 = vsel %vm328, %v2665, 0.0
    %2701 = vadd.xlane.f32.xlu0 %v2700
    %v2702 = vpop.xlane.xlu0 %2701
    %v2703 = vsel %vm328, %v2667, 0.0
    %2704 = vadd.xlane.f32.xlu0 %v2703
    %v2705 = vpop.xlane.xlu0 %2704
    %v2706 = vsel %vm328, %v2669, 0.0
    %2707 = vadd.xlane.f32.xlu0 %v2706
    %v2708 = vpop.xlane.xlu0 %2707
    %v2709 = vsel %vm328, %v2671, 0.0
    %2710 = vadd.xlane.f32.xlu0 %v2709
    %v2711 = vpop.xlane.xlu0 %2710
    %v2712 = vsel %vm328, %v2673, 0.0
    %2713 = vadd.xlane.f32.xlu0 %v2712
    %v2714 = vpop.xlane.xlu0 %2713
    %v2715 = vsel %vm328, %v2675, 0.0
    %2716 = vadd.xlane.f32.xlu0 %v2715
    %v2717 = vpop.xlane.xlu0 %2716
    %v2718 = vsel %vm328, %v2677, 0.0
    %2719 = vadd.xlane.f32.xlu0 %v2718
    %v2720 = vpop.xlane.xlu0 %2719
    %v2721 = vsel %vm328, %v2679, 0.0
    %2722 = vadd.xlane.f32.xlu0 %v2721
    %v2723 = vpop.xlane.xlu0 %2722
    %v2724 = vsel %vm328, %v2681, 0.0
    %2725 = vadd.xlane.f32.xlu0 %v2724
    %v2726 = vpop.xlane.xlu0 %2725
    %v2727 = vsel %vm328, %v2683, 0.0
    %2728 = vadd.xlane.f32.xlu0 %v2727
    %v2729 = vpop.xlane.xlu0 %2728
    %v2730 = vsel %vm328, %v2685, 0.0
    %2731 = vadd.xlane.f32.xlu0 %v2730
    %v2732 = vpop.xlane.xlu0 %2731
    %v2733 = vsel %vm328, %v2687, 0.0
    %2734 = vadd.xlane.f32.xlu0 %v2733
    %v2735 = vpop.xlane.xlu0 %2734
    %v2736 = vrcp.pop %v2690
    %v2737 = vrcp.pop %v2693
    %v2738 = vrcp.pop %v2696
    %v2739 = vrcp.pop %v2699
    %v2740 = vrcp.pop %v2702
    %v2741 = vrcp.pop %v2705
    %v2742 = vrcp.pop %v2708
    %v2743 = vrcp.pop %v2711
    %v2744 = vrcp.pop %v2714
    %v2745 = vrcp.pop %v2717
    %v2746 = vrcp.pop %v2720
    %v2747 = vrcp.pop %v2723
    %v2748 = vrcp.pop %v2726
    %v2749 = vrcp.pop %v2729
    %v2750 = vrcp.pop %v2732
    %v2751 = vrcp.pop %v2735
    %v2752 = vmul.f32 %v2657, %v2736
    %v2753 = vmul.f32 %v2659, %v2737
    %v2754 = vmul.f32 %v2661, %v2738
    %v2755 = vmul.f32 %v2663, %v2739
    %v2756 = vmul.f32 %v2665, %v2740
    %v2757 = vmul.f32 %v2667, %v2741
    %v2758 = vmul.f32 %v2669, %v2742
    %v2759 = vmul.f32 %v2671, %v2743
    %v2760 = vmul.f32 %v2673, %v2744
    %v2761 = vmul.f32 %v2675, %v2745
    %v2762 = vmul.f32 %v2677, %v2746
    %v2763 = vmul.f32 %v2679, %v2747
    %v2764 = vmul.f32 %v2681, %v2748
    %v2765 = vmul.f32 %v2683, %v2749
    %v2766 = vmul.f32 %v2685, %v2750
    %v2767 = vmul.f32 %v2687, %v2751
    %v2769 = vsel %vm328, %v2752, 0
    %v2772 = vsel %vm328, %v2753, 0
    %2774 = vmatpush.msra.mxu0 0.0
    %2775 = vmatpush.msra.mxu0 0.0
    %2776 = vmatpush.msra.mxu0 0.0
    %2777 = vmatpush.msra.mxu0 0.0
    %2778 = vmatpush.msra.mxu0 0.0
    %2779 = vmatpush.msra.mxu0 0.0
    %2780 = vmatpush.msra.mxu0 0.0
    %2781 = vmatpush.msra.mxu0 0.0
    %2782 = vmatpush.msra.mxu0 0.0
    %2783 = vmatpush.msra.mxu0 0.0
    %2784 = vmatpush.msra.mxu0 0.0
    %2785 = vmatpush.msra.mxu0 0.0
    %2786 = vmatpush.msra.mxu0 0.0
    %2787 = vmatpush.msra.mxu0 0.0
    %2788 = vmatpush.msra.mxu0 %v2224
    %2789 = vmatpush.msra.mxu0 %v2221
    %2790 = vmatmul.f32.gmra.mxu0 %v2769
    %v2791 = vpop.f32.mrf.mxu0
    %v2792 = vadd.f32 0.0, %v2791
    %2793 = vmatmul.f32.gmra.mxu0 %v2772
    %v2794 = vpop.f32.mrf.mxu0
    %v2795 = vadd.f32 0.0, %v2794
    %2796 = vdwg.mxu0
    %v2798 = vsel %vm328, %v2754, 0
    %v2801 = vsel %vm328, %v2755, 0
    %2803 = vmatpush.msra.mxu0 0.0
    %2804 = vmatpush.msra.mxu0 0.0
    %2805 = vmatpush.msra.mxu0 0.0
    %2806 = vmatpush.msra.mxu0 0.0
    %2807 = vmatpush.msra.mxu0 0.0
    %2808 = vmatpush.msra.mxu0 0.0
    %2809 = vmatpush.msra.mxu0 0.0
    %2810 = vmatpush.msra.mxu0 0.0
    %2811 = vmatpush.msra.mxu0 0.0
    %2812 = vmatpush.msra.mxu0 0.0
    %2813 = vmatpush.msra.mxu0 0.0
    %2814 = vmatpush.msra.mxu0 0.0
    %2815 = vmatpush.msra.mxu0 0.0
    %2816 = vmatpush.msra.mxu0 0.0
    %2817 = vmatpush.msra.mxu0 %v2230
    %2818 = vmatpush.msra.mxu0 %v2227
    %2819 = vmatmul.f32.gmra.mxu0 %v2798
    %v2820 = vpop.f32.mrf.mxu0
    %v2821 = vadd.f32 0.0, %v2820
    %2822 = vmatmul.f32.gmra.mxu0 %v2801
    %v2823 = vpop.f32.mrf.mxu0
    %v2824 = vadd.f32 0.0, %v2823
    %2825 = vdwg.mxu0
    %v2827 = vsel %vm328, %v2756, 0
    %v2830 = vsel %vm328, %v2757, 0
    %2832 = vmatpush.msra.mxu0 0.0
    %2833 = vmatpush.msra.mxu0 0.0
    %2834 = vmatpush.msra.mxu0 0.0
    %2835 = vmatpush.msra.mxu0 0.0
    %2836 = vmatpush.msra.mxu0 0.0
    %2837 = vmatpush.msra.mxu0 0.0
    %2838 = vmatpush.msra.mxu0 0.0
    %2839 = vmatpush.msra.mxu0 0.0
    %2840 = vmatpush.msra.mxu0 0.0
    %2841 = vmatpush.msra.mxu0 0.0
    %2842 = vmatpush.msra.mxu0 0.0
    %2843 = vmatpush.msra.mxu0 0.0
    %2844 = vmatpush.msra.mxu0 0.0
    %2845 = vmatpush.msra.mxu0 0.0
    %2846 = vmatpush.msra.mxu0 %v2295
    %2847 = vmatpush.msra.mxu0 %v2293
    %2848 = vmatmul.f32.gmra.mxu0 %v2827
    %v2849 = vpop.f32.mrf.mxu0
    %v2850 = vadd.f32 0.0, %v2849
    %2851 = vmatmul.f32.gmra.mxu0 %v2830
    %v2852 = vpop.f32.mrf.mxu0
    %v2853 = vadd.f32 0.0, %v2852
    %2854 = vdwg.mxu0
    %v2856 = vsel %vm328, %v2758, 0
    %v2859 = vsel %vm328, %v2759, 0
    %2861 = vmatpush.msra.mxu0 0.0
    %2862 = vmatpush.msra.mxu0 0.0
    %2863 = vmatpush.msra.mxu0 0.0
    %2864 = vmatpush.msra.mxu0 0.0
    %2865 = vmatpush.msra.mxu0 0.0
    %2866 = vmatpush.msra.mxu0 0.0
    %2867 = vmatpush.msra.mxu0 0.0
    %2868 = vmatpush.msra.mxu0 0.0
    %2869 = vmatpush.msra.mxu0 0.0
    %2870 = vmatpush.msra.mxu0 0.0
    %2871 = vmatpush.msra.mxu0 0.0
    %2872 = vmatpush.msra.mxu0 0.0
    %2873 = vmatpush.msra.mxu0 0.0
    %2874 = vmatpush.msra.mxu0 0.0
    %2875 = vmatpush.msra.mxu0 %v2299
    %2876 = vmatpush.msra.mxu0 %v2297
    %2877 = vmatmul.f32.gmra.mxu0 %v2856
    %v2878 = vpop.f32.mrf.mxu0
    %v2879 = vadd.f32 0.0, %v2878
    %2880 = vmatmul.f32.gmra.mxu0 %v2859
    %v2881 = vpop.f32.mrf.mxu0
    %v2882 = vadd.f32 0.0, %v2881
    %2883 = vdwg.mxu0
    %v2885 = vsel %vm328, %v2760, 0
    %v2888 = vsel %vm328, %v2761, 0
    %2890 = vmatpush.msra.mxu0 0.0
    %2891 = vmatpush.msra.mxu0 0.0
    %2892 = vmatpush.msra.mxu0 0.0
    %2893 = vmatpush.msra.mxu0 0.0
    %2894 = vmatpush.msra.mxu0 0.0
    %2895 = vmatpush.msra.mxu0 0.0
    %2896 = vmatpush.msra.mxu0 0.0
    %2897 = vmatpush.msra.mxu0 0.0
    %2898 = vmatpush.msra.mxu0 0.0
    %2899 = vmatpush.msra.mxu0 0.0
    %2900 = vmatpush.msra.mxu0 0.0
    %2901 = vmatpush.msra.mxu0 0.0
    %2902 = vmatpush.msra.mxu0 0.0
    %2903 = vmatpush.msra.mxu0 0.0
    %2904 = vmatpush.msra.mxu0 %v2307
    %2905 = vmatpush.msra.mxu0 %v2305
    %2906 = vmatmul.f32.gmra.mxu0 %v2885
    %v2907 = vpop.f32.mrf.mxu0
    %v2908 = vadd.f32 0.0, %v2907
    %2909 = vmatmul.f32.gmra.mxu0 %v2888
    %v2910 = vpop.f32.mrf.mxu0
    %v2911 = vadd.f32 0.0, %v2910
    %2912 = vdwg.mxu0
    %v2914 = vsel %vm328, %v2762, 0
    %v2917 = vsel %vm328, %v2763, 0
    %2919 = vmatpush.msra.mxu0 0.0
    %2920 = vmatpush.msra.mxu0 0.0
    %2921 = vmatpush.msra.mxu0 0.0
    %2922 = vmatpush.msra.mxu0 0.0
    %2923 = vmatpush.msra.mxu0 0.0
    %2924 = vmatpush.msra.mxu0 0.0
    %2925 = vmatpush.msra.mxu0 0.0
    %2926 = vmatpush.msra.mxu0 0.0
    %2927 = vmatpush.msra.mxu0 0.0
    %2928 = vmatpush.msra.mxu0 0.0
    %2929 = vmatpush.msra.mxu0 0.0
    %2930 = vmatpush.msra.mxu0 0.0
    %2931 = vmatpush.msra.mxu0 0.0
    %2932 = vmatpush.msra.mxu0 0.0
    %2933 = vmatpush.msra.mxu0 %v2311
    %2934 = vmatpush.msra.mxu0 %v2309
    %2935 = vmatmul.f32.gmra.mxu0 %v2914
    %v2936 = vpop.f32.mrf.mxu0
    %v2937 = vadd.f32 0.0, %v2936
    %2938 = vmatmul.f32.gmra.mxu0 %v2917
    %v2939 = vpop.f32.mrf.mxu0
    %v2940 = vadd.f32 0.0, %v2939
    %2941 = vdwg.mxu0
    %v2943 = vsel %vm328, %v2764, 0
    %v2946 = vsel %vm328, %v2765, 0
    %2948 = vmatpush.msra.mxu0 0.0
    %2949 = vmatpush.msra.mxu0 0.0
    %2950 = vmatpush.msra.mxu0 0.0
    %2951 = vmatpush.msra.mxu0 0.0
    %2952 = vmatpush.msra.mxu0 0.0
    %2953 = vmatpush.msra.mxu0 0.0
    %2954 = vmatpush.msra.mxu0 0.0
    %2955 = vmatpush.msra.mxu0 0.0
    %2956 = vmatpush.msra.mxu0 0.0
    %2957 = vmatpush.msra.mxu0 0.0
    %2958 = vmatpush.msra.mxu0 0.0
    %2959 = vmatpush.msra.mxu0 0.0
    %2960 = vmatpush.msra.mxu0 0.0
    %2961 = vmatpush.msra.mxu0 0.0
    %2962 = vmatpush.msra.mxu0 %v2319
    %2963 = vmatpush.msra.mxu0 %v2317
    %2964 = vmatmul.f32.gmra.mxu0 %v2943
    %v2965 = vpop.f32.mrf.mxu0
    %v2966 = vadd.f32 0.0, %v2965
    %2967 = vmatmul.f32.gmra.mxu0 %v2946
    %v2968 = vpop.f32.mrf.mxu0
    %v2969 = vadd.f32 0.0, %v2968
    %2970 = vdwg.mxu0
    %v2972 = vsel %vm328, %v2766, 0
    %v2975 = vsel %vm328, %v2767, 0
    %2977 = vmatpush.msra.mxu0 0.0
    %2978 = vmatpush.msra.mxu0 0.0
    %2979 = vmatpush.msra.mxu0 0.0
    %2980 = vmatpush.msra.mxu0 0.0
    %2981 = vmatpush.msra.mxu0 0.0
    %2982 = vmatpush.msra.mxu0 0.0
    %2983 = vmatpush.msra.mxu0 0.0
    %2984 = vmatpush.msra.mxu0 0.0
    %2985 = vmatpush.msra.mxu0 0.0
    %2986 = vmatpush.msra.mxu0 0.0
    %2987 = vmatpush.msra.mxu0 0.0
    %2988 = vmatpush.msra.mxu0 0.0
    %2989 = vmatpush.msra.mxu0 0.0
    %2990 = vmatpush.msra.mxu0 0.0
    %2991 = vmatpush.msra.mxu0 %v2323
    %2992 = vmatpush.msra.mxu0 %v2321
    %2993 = vmatmul.f32.gmra.mxu0 %v2972
    %v2994 = vpop.f32.mrf.mxu0
    %v2995 = vadd.f32 0.0, %v2994
    %2996 = vmatmul.f32.gmra.mxu0 %v2975
    %v2997 = vpop.f32.mrf.mxu0
    %v2998 = vadd.f32 0.0, %v2997
    %2999 = vdwg.mxu0
    %s3000 = scalar_lea.vmem [#allocation17], 32
    %v3001 = vld [vmem:[%s3000] sm:$0xff]
    %v3002 = vld [vmem:[%s3000 + $0x8] sm:$0xff]
    %v3003 = vld [vmem:[%s3000 + $0x10] sm:$0xff]
    %v3004 = vld [vmem:[%s3000 + $0x18] sm:$0xff]
    %s3005 = scalar_lea.vmem [#allocation19], 1
    %v3006 = vld [vmem:[%s3005] sm:$0x1]
    %v3008 = vsel %vm900, %v2792, 0
    %v3011 = vsel %vm900, %v2795, 0
    %v3014 = vsel %vm900, %v2821, 0
    %v3017 = vsel %vm900, %v2824, 0
    %3019 = vmatpush.msra.mxu0 0.0
    %3020 = vmatpush.msra.mxu0 0.0
    %3021 = vmatpush.msra.mxu0 0.0
    %3022 = vmatpush.msra.mxu0 0.0
    %3023 = vmatpush.msra.mxu0 0.0
    %3024 = vmatpush.msra.mxu0 0.0
    %3025 = vmatpush.msra.mxu0 0.0
    %3026 = vmatpush.msra.mxu0 0.0
    %3027 = vmatpush.msra.mxu0 0.0
    %3028 = vmatpush.msra.mxu0 0.0
    %3029 = vmatpush.msra.mxu0 0.0
    %3030 = vmatpush.msra.mxu0 0.0
    %3031 = vmatpush.msra.mxu0 0.0
    %3032 = vmatpush.msra.mxu0 0.0
    %3033 = vmatpush.msra.mxu0 0.0
    %3034 = vmatpush.msra.mxu0 %v3001
    %3035 = vmatmul.f32.gmra.mxu0 %v3008
    %v3036 = vpop.f32.mrf.mxu0
    %v3037 = vadd.f32 0.0, %v3036
    %3038 = vmatmul.f32.gmra.mxu0 %v3011
    %v3039 = vpop.f32.mrf.mxu0
    %v3040 = vadd.f32 0.0, %v3039
    %3041 = vmatmul.f32.gmra.mxu0 %v3014
    %v3042 = vpop.f32.mrf.mxu0
    %v3043 = vadd.f32 0.0, %v3042
    %3044 = vmatmul.f32.gmra.mxu0 %v3017
    %v3045 = vpop.f32.mrf.mxu0
    %v3046 = vadd.f32 0.0, %v3045
    %3047 = vdwg.mxu0
    %v3049 = vperm.slane %v3006, 0
    %v3051 = vadd.f32 %v3049, %v3037
    %v3052 = vadd.f32 %v3049, %v3040
    %v3053 = vadd.f32 %v3049, %v3043
    %v3054 = vadd.f32 %v3049, %v3046
    %v3056 = vsel %vm900, %v2850, 0
    %v3059 = vsel %vm900, %v2853, 0
    %v3062 = vsel %vm900, %v2879, 0
    %v3065 = vsel %vm900, %v2882, 0
    %3067 = vmatpush.msra.mxu0 0.0
    %3068 = vmatpush.msra.mxu0 0.0
    %3069 = vmatpush.msra.mxu0 0.0
    %3070 = vmatpush.msra.mxu0 0.0
    %3071 = vmatpush.msra.mxu0 0.0
    %3072 = vmatpush.msra.mxu0 0.0
    %3073 = vmatpush.msra.mxu0 0.0
    %3074 = vmatpush.msra.mxu0 0.0
    %3075 = vmatpush.msra.mxu0 0.0
    %3076 = vmatpush.msra.mxu0 0.0
    %3077 = vmatpush.msra.mxu0 0.0
    %3078 = vmatpush.msra.mxu0 0.0
    %3079 = vmatpush.msra.mxu0 0.0
    %3080 = vmatpush.msra.mxu0 0.0
    %3081 = vmatpush.msra.mxu0 0.0
    %3082 = vmatpush.msra.mxu0 %v3002
    %3083 = vmatmul.f32.gmra.mxu0 %v3056
    %v3084 = vpop.f32.mrf.mxu0
    %v3085 = vadd.f32 0.0, %v3084
    %3086 = vmatmul.f32.gmra.mxu0 %v3059
    %v3087 = vpop.f32.mrf.mxu0
    %v3088 = vadd.f32 0.0, %v3087
    %3089 = vmatmul.f32.gmra.mxu0 %v3062
    %v3090 = vpop.f32.mrf.mxu0
    %v3091 = vadd.f32 0.0, %v3090
    %3092 = vmatmul.f32.gmra.mxu0 %v3065
    %v3093 = vpop.f32.mrf.mxu0
    %v3094 = vadd.f32 0.0, %v3093
    %3095 = vdwg.mxu0
    %v3096 = vadd.f32 %v3051, %v3085
    %v3097 = vadd.f32 %v3052, %v3088
    %v3098 = vadd.f32 %v3053, %v3091
    %v3099 = vadd.f32 %v3054, %v3094
    %v3101 = vsel %vm900, %v2908, 0
    %v3104 = vsel %vm900, %v2911, 0
    %v3107 = vsel %vm900, %v2937, 0
    %v3110 = vsel %vm900, %v2940, 0
    %3112 = vmatpush.msra.mxu0 0.0
    %3113 = vmatpush.msra.mxu0 0.0
    %3114 = vmatpush.msra.mxu0 0.0
    %3115 = vmatpush.msra.mxu0 0.0
    %3116 = vmatpush.msra.mxu0 0.0
    %3117 = vmatpush.msra.mxu0 0.0
    %3118 = vmatpush.msra.mxu0 0.0
    %3119 = vmatpush.msra.mxu0 0.0
    %3120 = vmatpush.msra.mxu0 0.0
    %3121 = vmatpush.msra.mxu0 0.0
    %3122 = vmatpush.msra.mxu0 0.0
    %3123 = vmatpush.msra.mxu0 0.0
    %3124 = vmatpush.msra.mxu0 0.0
    %3125 = vmatpush.msra.mxu0 0.0
    %3126 = vmatpush.msra.mxu0 0.0
    %3127 = vmatpush.msra.mxu0 %v3003
    %3128 = vmatmul.f32.gmra.mxu0 %v3101
    %v3129 = vpop.f32.mrf.mxu0
    %v3130 = vadd.f32 0.0, %v3129
    %3131 = vmatmul.f32.gmra.mxu0 %v3104
    %v3132 = vpop.f32.mrf.mxu0
    %v3133 = vadd.f32 0.0, %v3132
    %3134 = vmatmul.f32.gmra.mxu0 %v3107
    %v3135 = vpop.f32.mrf.mxu0
    %v3136 = vadd.f32 0.0, %v3135
    %3137 = vmatmul.f32.gmra.mxu0 %v3110
    %v3138 = vpop.f32.mrf.mxu0
    %v3139 = vadd.f32 0.0, %v3138
    %3140 = vdwg.mxu0
    %v3141 = vadd.f32 %v3096, %v3130
    %v3142 = vadd.f32 %v3097, %v3133
    %v3143 = vadd.f32 %v3098, %v3136
    %v3144 = vadd.f32 %v3099, %v3139
    %v3146 = vsel %vm900, %v2966, 0
    %v3149 = vsel %vm900, %v2969, 0
    %v3152 = vsel %vm900, %v2995, 0
    %v3155 = vsel %vm900, %v2998, 0
    %3157 = vmatpush.msra.mxu0 0.0
    %3158 = vmatpush.msra.mxu0 0.0
    %3159 = vmatpush.msra.mxu0 0.0
    %3160 = vmatpush.msra.mxu0 0.0
    %3161 = vmatpush.msra.mxu0 0.0
    %3162 = vmatpush.msra.mxu0 0.0
    %3163 = vmatpush.msra.mxu0 0.0
    %3164 = vmatpush.msra.mxu0 0.0
    %3165 = vmatpush.msra.mxu0 0.0
    %3166 = vmatpush.msra.mxu0 0.0
    %3167 = vmatpush.msra.mxu0 0.0
    %3168 = vmatpush.msra.mxu0 0.0
    %3169 = vmatpush.msra.mxu0 0.0
    %3170 = vmatpush.msra.mxu0 0.0
    %3171 = vmatpush.msra.mxu0 0.0
    %3172 = vmatpush.msra.mxu0 %v3004
    %3173 = vmatmul.f32.gmra.mxu0 %v3146
    %v3174 = vpop.f32.mrf.mxu0
    %v3175 = vadd.f32 0.0, %v3174
    %3176 = vmatmul.f32.gmra.mxu0 %v3149
    %v3177 = vpop.f32.mrf.mxu0
    %v3178 = vadd.f32 0.0, %v3177
    %3179 = vmatmul.f32.gmra.mxu0 %v3152
    %v3180 = vpop.f32.mrf.mxu0
    %v3181 = vadd.f32 0.0, %v3180
    %3182 = vmatmul.f32.gmra.mxu0 %v3155
    %v3183 = vpop.f32.mrf.mxu0
    %v3184 = vadd.f32 0.0, %v3183
    %3185 = vdwg.mxu0
    %v3186 = vadd.f32 %v3141, %v3175
    %v3187 = vadd.f32 %v3142, %v3178
    %v3188 = vadd.f32 %v3143, %v3181
    %v3189 = vadd.f32 %v3144, %v3184
    %v3190 = vadd.f32 %v2008, %v3186
    %v3191 = vadd.f32 %v2009, %v3187
    %v3192 = vadd.f32 %v2010, %v3188
    %v3193 = vadd.f32 %v2011, %v3189
    %s3194 = scalar_lea.vmem [#allocation20], 1
    %v3195 = vld [vmem:[%s3194] sm:$0x1]
    %s3196 = scalar_lea.vmem [#allocation22], 1
    %v3197 = vld [vmem:[%s3196] sm:$0x1]
    %v3198 = vsel %vm583, %v3190, 0.0
    %3199 = vadd.xlane.f32.xlu0 %v3198
    %v3200 = vpop.xlane.xlu0 %3199
    %v3201 = vsel %vm583, %v3191, 0.0
    %3202 = vadd.xlane.f32.xlu0 %v3201
    %v3203 = vpop.xlane.xlu0 %3202
    %v3204 = vsel %vm583, %v3192, 0.0
    %3205 = vadd.xlane.f32.xlu0 %v3204
    %v3206 = vpop.xlane.xlu0 %3205
    %v3207 = vsel %vm583, %v3193, 0.0
    %3208 = vadd.xlane.f32.xlu0 %v3207
    %v3209 = vpop.xlane.xlu0 %3208
    %v3210 = vmul.f32 %v3200, %v602
    %v3211 = vmul.f32 %v3203, %v602
    %v3212 = vmul.f32 %v3206, %v602
    %v3213 = vmul.f32 %v3209, %v602
    %v3214 = vsub.f32 %v3190, %v3210
    %v3215 = vsub.f32 %v3191, %v3211
    %v3216 = vsub.f32 %v3192, %v3212
    %v3217 = vsub.f32 %v3193, %v3213
    %v3218 = vmul.f32 %v3214, %v3214
    %v3219 = vmul.f32 %v3215, %v3215
    %v3220 = vmul.f32 %v3216, %v3216
    %v3221 = vmul.f32 %v3217, %v3217
    %v3222 = vsel %vm583, %v3218, 0.0
    %3223 = vadd.xlane.f32.xlu0 %v3222
    %v3224 = vpop.xlane.xlu0 %3223
    %v3225 = vsel %vm583, %v3219, 0.0
    %3226 = vadd.xlane.f32.xlu0 %v3225
    %v3227 = vpop.xlane.xlu0 %3226
    %v3228 = vsel %vm583, %v3220, 0.0
    %3229 = vadd.xlane.f32.xlu0 %v3228
    %v3230 = vpop.xlane.xlu0 %3229
    %v3231 = vsel %vm583, %v3221, 0.0
    %3232 = vadd.xlane.f32.xlu0 %v3231
    %v3233 = vpop.xlane.xlu0 %3232
    %v3234 = vmul.f32 %v3224, %v602
    %v3235 = vmul.f32 %v3227, %v602
    %v3236 = vmul.f32 %v3230, %v602
    %v3237 = vmul.f32 %v3233, %v602
    %v3238 = vadd.f32 %v3234, 1e-05
    %v3239 = vadd.f32 %v3235, 1e-05
    %v3240 = vadd.f32 %v3236, 1e-05
    %v3241 = vadd.f32 %v3237, 1e-05
    %v3242 = vrsqrt.pop %v3238
    %v3243 = vmul.f32 %v3242, %v3238
    %v3244 = vmul.f32 %v3243, %v3242
    %v3245 = vmul.f32 0.5, %v3244
    %v3246 = vsub.f32 1.5, %v3245
    %v3247 = vmul.f32 %v3242, %v3246
    %vm3248 = vweird.f32 %v3238
    %vm3249 = vweird.f32 %v3242
    %vm3250 = vmor %vm3248, %vm3249
    %v3251 = vsel %vm3250, %v3242, %v3247
    %v3252 = vrsqrt.pop %v3239
    %v3253 = vmul.f32 %v3252, %v3239
    %v3254 = vmul.f32 %v3253, %v3252
    %v3255 = vmul.f32 0.5, %v3254
    %v3256 = vsub.f32 1.5, %v3255
    %v3257 = vmul.f32 %v3252, %v3256
    %vm3258 = vweird.f32 %v3239
    %vm3259 = vweird.f32 %v3252
    %vm3260 = vmor %vm3258, %vm3259
    %v3261 = vsel %vm3260, %v3252, %v3257
    %v3262 = vrsqrt.pop %v3240
    %v3263 = vmul.f32 %v3262, %v3240
    %v3264 = vmul.f32 %v3263, %v3262
    %v3265 = vmul.f32 0.5, %v3264
    %v3266 = vsub.f32 1.5, %v3265
    %v3267 = vmul.f32 %v3262, %v3266
    %vm3268 = vweird.f32 %v3240
    %vm3269 = vweird.f32 %v3262
    %vm3270 = vmor %vm3268, %vm3269
    %v3271 = vsel %vm3270, %v3262, %v3267
    %v3272 = vrsqrt.pop %v3241
    %v3273 = vmul.f32 %v3272, %v3241
    %v3274 = vmul.f32 %v3273, %v3272
    %v3275 = vmul.f32 0.5, %v3274
    %v3276 = vsub.f32 1.5, %v3275
    %v3277 = vmul.f32 %v3272, %v3276
    %vm3278 = vweird.f32 %v3241
    %vm3279 = vweird.f32 %v3272
    %vm3280 = vmor %vm3278, %vm3279
    %v3281 = vsel %vm3280, %v3272, %v3277
    %v3282 = vmul.f32 %v3214, %v3251
    %v3283 = vmul.f32 %v3215, %v3261
    %v3284 = vmul.f32 %v3216, %v3271
    %v3285 = vmul.f32 %v3217, %v3281
    %v3287 = vperm.slane %v3195, 0
    %v3289 = vmul.f32 %v3282, %v3287
    %v3290 = vmul.f32 %v3283, %v3287
    %v3291 = vmul.f32 %v3284, %v3287
    %v3292 = vmul.f32 %v3285, %v3287
    %v3294 = vperm.slane %v3197, 0
    %v3296 = vadd.f32 %v3289, %v3294
    %v3297 = vadd.f32 %v3290, %v3294
    %v3298 = vadd.f32 %v3291, %v3294
    %v3299 = vadd.f32 %v3292, %v3294
    %s3300 = scalar_lea.vmem [#allocation23], 32
    %v3301 = vld [vmem:[%s3300] sm:$0xff]
    %v3302 = vld [vmem:[%s3300 + $0x8] sm:$0xff]
    %v3303 = vld [vmem:[%s3300 + $0x10] sm:$0xff]
    %v3304 = vld [vmem:[%s3300 + $0x18] sm:$0xff]
    %s3305 = scalar_lea.vmem [#allocation25], 1
    %v3306 = vld [vmem:[%s3305] sm:$0x1]
    %v3308 = vperm.slane %v3306, 0
    %v3311 = vsel %vm583, %v3296, 0
    %v3314 = vsel %vm583, %v3297, 0
    %v3317 = vsel %vm583, %v3298, 0
    %v3320 = vsel %vm583, %v3299, 0
    %3322 = vmatpush.msra.mxu0 0.0
    %3323 = vmatpush.msra.mxu0 0.0
    %3324 = vmatpush.msra.mxu0 0.0
    %3325 = vmatpush.msra.mxu0 0.0
    %3326 = vmatpush.msra.mxu0 0.0
    %3327 = vmatpush.msra.mxu0 0.0
    %3328 = vmatpush.msra.mxu0 0.0
    %3329 = vmatpush.msra.mxu0 0.0
    %3330 = vmatpush.msra.mxu0 0.0
    %3331 = vmatpush.msra.mxu0 0.0
    %3332 = vmatpush.msra.mxu0 0.0
    %3333 = vmatpush.msra.mxu0 0.0
    %3334 = vmatpush.msra.mxu0 %v3304
    %3335 = vmatpush.msra.mxu0 %v3303
    %3336 = vmatpush.msra.mxu0 %v3302
    %3337 = vmatpush.msra.mxu0 %v3301
    %3338 = vmatmul.f32.gmra.mxu0 %v3311
    %v3339 = vpop.f32.mrf.mxu0
    %v3340 = vadd.f32 %v3308, %v3339
    %3341 = vmatmul.f32.gmra.mxu0 %v3314
    %v3342 = vpop.f32.mrf.mxu0
    %v3343 = vadd.f32 %v3308, %v3342
    %3344 = vmatmul.f32.gmra.mxu0 %v3317
    %v3345 = vpop.f32.mrf.mxu0
    %v3346 = vadd.f32 %v3308, %v3345
    %3347 = vmatmul.f32.gmra.mxu0 %v3320
    %v3348 = vpop.f32.mrf.mxu0
    %v3349 = vadd.f32 %v3308, %v3348
    %3350 = vdwg.mxu0
    %v3351 = vmul.f32 %v3340, %v3340
    %v3352 = vmul.f32 %v3343, %v3343
    %v3353 = vmul.f32 %v3346, %v3346
    %v3354 = vmul.f32 %v3349, %v3349
    %v3355 = vmul.f32 %v3340, %v3351
    %v3356 = vmul.f32 %v3343, %v3352
    %v3357 = vmul.f32 %v3346, %v3353
    %v3358 = vmul.f32 %v3349, %v3354
    %v3359 = vmul.f32 %v3355, 0.044715
    %v3360 = vmul.f32 %v3356, 0.044715
    %v3361 = vmul.f32 %v3357, 0.044715
    %v3362 = vmul.f32 %v3358, 0.044715
    %v3363 = vadd.f32 %v3340, %v3359
    %v3364 = vadd.f32 %v3343, %v3360
    %v3365 = vadd.f32 %v3346, %v3361
    %v3366 = vadd.f32 %v3349, %v3362
    %v3367 = vmul.f32 %v3363, 0.7978846
    %v3368 = vmul.f32 %v3364, 0.7978846
    %v3369 = vmul.f32 %v3365, 0.7978846
    %v3370 = vmul.f32 %v3366, 0.7978846
    %v3371 = vtanh.pop %v3367
    %v3372 = vtanh.pop %v3368
    %v3373 = vtanh.pop %v3369
    %v3374 = vtanh.pop %v3370
    %v3375 = vadd.f32 %v3371, 1.0
    %v3376 = vadd.f32 %v3372, 1.0
    %v3377 = vadd.f32 %v3373, 1.0
    %v3378 = vadd.f32 %v3374, 1.0
    %v3379 = vmul.f32 %v3375, 0.5
    %v3380 = vmul.f32 %v3376, 0.5
    %v3381 = vmul.f32 %v3377, 0.5
    %v3382 = vmul.f32 %v3378, 0.5
    %v3383 = vmul.f32 %v3340, %v3379
    %v3384 = vmul.f32 %v3343, %v3380
    %v3385 = vmul.f32 %v3346, %v3381
    %v3386 = vmul.f32 %v3349, %v3382
    %s3387 = scalar_lea.vmem %s21, 64
    %v3388 = vld [vmem:[%s3387] sm:$0xff]
    %v3389 = vld [vmem:[%s3387 + $0x8] sm:$0xff]
    %v3390 = vld [vmem:[%s3387 + $0x10] sm:$0xff]
    %v3391 = vld [vmem:[%s3387 + $0x18] sm:$0xff]
    %v3392 = vld [vmem:[%s3387 + $0x20] sm:$0xff]
    %v3393 = vld [vmem:[%s3387 + $0x28] sm:$0xff]
    %v3394 = vld [vmem:[%s3387 + $0x30] sm:$0xff]
    %v3395 = vld [vmem:[%s3387 + $0x38] sm:$0xff]
    %s3396 = scalar_lea.vmem [#allocation26], 1
    %v3397 = vld [vmem:[%s3396] sm:$0x1]
    %v3399 = vperm.slane %v3397, 0
    %v3402 = vsel %vm1966, %v3383, 0
    %v3405 = vsel %vm1966, %v3384, 0
    %v3408 = vsel %vm1966, %v3385, 0
    %v3411 = vsel %vm1966, %v3386, 0
    %3413 = vmatpush.msra.mxu0 0.0
    %3414 = vmatpush.msra.mxu0 0.0
    %3415 = vmatpush.msra.mxu0 0.0
    %3416 = vmatpush.msra.mxu0 0.0
    %3417 = vmatpush.msra.mxu0 0.0
    %3418 = vmatpush.msra.mxu0 0.0
    %3419 = vmatpush.msra.mxu0 0.0
    %3420 = vmatpush.msra.mxu0 0.0
    %3421 = vmatpush.msra.mxu0 %v3395
    %3422 = vmatpush.msra.mxu0 %v3394
    %3423 = vmatpush.msra.mxu0 %v3393
    %3424 = vmatpush.msra.mxu0 %v3392
    %3425 = vmatpush.msra.mxu0 %v3391
    %3426 = vmatpush.msra.mxu0 %v3390
    %3427 = vmatpush.msra.mxu0 %v3389
    %3428 = vmatpush.msra.mxu0 %v3388
    %3429 = vmatmul.f32.gmra.mxu0 %v3402
    %v3430 = vpop.f32.mrf.mxu0
    %v3431 = vadd.f32 %v3399, %v3430
    %3432 = vmatmul.f32.gmra.mxu0 %v3405
    %v3433 = vpop.f32.mrf.mxu0
    %v3434 = vadd.f32 %v3399, %v3433
    %3435 = vmatmul.f32.gmra.mxu0 %v3408
    %v3436 = vpop.f32.mrf.mxu0
    %v3437 = vadd.f32 %v3399, %v3436
    %3438 = vmatmul.f32.gmra.mxu0 %v3411
    %v3439 = vpop.f32.mrf.mxu0
    %v3440 = vadd.f32 %v3399, %v3439
    %3441 = vdwg.mxu0
    %v3442 = vadd.f32 %v3190, %v3431
    %v3443 = vadd.f32 %v3191, %v3434
    %v3444 = vadd.f32 %v3192, %v3437
    %v3445 = vadd.f32 %v3193, %v3440
    %3446 = vst.msk [vmem:[#allocation28] sm:$0xff] %vm583, %v3442
    %3447 = vst.msk [vmem:[#allocation28 + $0x8] sm:$0xff] %vm583, %v3443
    %3448 = vst.msk [vmem:[#allocation28 + $0x10] sm:$0xff] %vm583, %v3444
    %3449 = vst.msk [vmem:[#allocation28 + $0x18] sm:$0xff] %vm583, %v3445
    // Predicated region
    $region158: #{vision_transformer_forward.1} parent=1 // pred_check
      _
    $region159: #{vision_transformer_forward.1} parent=1 // pred_check_branch
      %3451 = sbr.rel (0) target = $region161
    $region160: #{vision_transformer_forward.1} parent=1 // pred_region
      %3453 = vsyncadd [#allocation4], 0
      %s3454 = sshll.u32 [#allocation28], 4
      %s3455 = int_to_ptr.vmem [resolvable:$true] %s3454
      %s3456 = sshll.u32 %s23, 4
      %s3457 = int_to_ptr.hbm [resolvable:$true] %s3456
      %3462 = dma.vmem_to_hbm [thread:$0]  %s3455, 512, %s3457, [#allocation4], 128, 128, 8
    $region161: #{vision_transformer_forward.1} parent=1 // pred_fallthru
      _
    // Predicated region
    $region162: #{vision_transformer_forward.1} parent=1 // pred_check
      _
    $region163: #{vision_transformer_forward.1} parent=1 // pred_check_branch
      %3464 = sbr.rel (0) target = $region165
    $region164: #{vision_transformer_forward.1} parent=1 // pred_region
      %3466 = dma.done [#allocation4], 512
    $region165: #{vision_transformer_forward.1} parent=1 // pred_fallthru
      _
    %3467 = vsyncpa [#allocation3], 1
    %3468 = vsyncpa [#allocation6], 1
    %3469 = vsyncpa [#allocation9], 1
    %3470 = vsyncpa [#allocation12], 1
    %3471 = vsyncpa [#allocation15], 1
    %3472 = vsyncpa [#allocation18], 1
    %3473 = vsyncpa [#allocation21], 1
    %3474 = vsyncpa [#allocation24], 1
    %3475 = vsyncpa [#allocation27], 1
    %3476 = vsyncpa [#allocation4], 1

</llo_original>
